<compile_context>
chip_gen: v7x
topology: tpu7x:2x2x1
jax: 0.10.0
libtpu: 0.0.40
codegen_flags: <defaults>
</compile_context>

<pallas_src>
import jax
import jax.numpy as jnp
import numpy as np
from jax.experimental import pallas as pl
from jax.experimental.pallas import tpu as pltpu


# ----------------------------- fused Pallas kernel ------------------------------

def cnn_fused_kernel(x_ref, b1w_ref, b1b_ref, c2w_ref, b2b_ref,
                     fc1w_ref, fc1b_ref, fc2w_ref, fc2b_ref, out_ref):
    nt = x_ref.shape[0]
    x = x_ref[...]                       # (nt, 784)  flat 28x28 image, lane = row*28+col
    Bcat = b1w_ref[...]                  # (224, 352) conv1 folded banded weights
    Cbig = c2w_ref[...]                  # (968, 1152) conv2 full-K structured weights

    # ---------------- conv1 (k=7) + maxpool(2) + ReLU:  2 MXU dots ----------------
    # Pooled output row I = 2u+v.  For a given (v,u) the 2x2-pool / 7-row-kernel
    # window needs image rows 4u+2v .. 4u+2v+7  ==  flat lanes [112u+56v, +224):
    # a contiguous lane window.  Bcat columns are e*176 + f*88 + b*8 + co
    # (e = pool-row parity, f = pool-col parity, b = pooled col, co = channel),
    # so both pool maxes are maxes of contiguous lane halves.
    h1_pieces = [None] * 11
    for v in range(2):
        rv = 6 - v                                   # 6 even pooled rows, 5 odd
        L = jnp.concatenate(
            [x[:, 112 * u + 56 * v: 112 * u + 56 * v + 224] for u in range(rv)],
            axis=0)                                  # (rv*nt, 224), rows (u-major, n)
        P = jnp.dot(L, Bcat, preferred_element_type=jnp.float32)   # (rv*nt, 352)
        pr = jnp.maximum(P[:, :176], P[:, 176:])     # pool rows  (parity e)
        pc = jnp.maximum(pr[:, :88], pr[:, 88:])     # pool cols  (parity f)
        hv = jnp.maximum(pc + b1b_ref[...], 0.0)     # bias commutes with the maxes
        for u in range(rv):                          # (nt, 88) slab for pooled row 2u+v
            h1_pieces[2 * u + v] = hv[u * nt:(u + 1) * nt, :]
    # h1 laid out with the pooled row index in LANES: lane = I*88 + b*8 + cin.
    h1flat = jnp.concatenate(h1_pieces, axis=1)      # (nt, 968)

    # ---------------- conv2 (k=5) + maxpool(2) + ReLU:  1 MXU dot ----------------
    # TODO(synk): Dropout2d is identity in eval mode; training-mode channel dropout
    #             is not implemented.
    # Cbig columns: dy*576 + dx*288 + J*96 + bb*32 + co  (dy/dx = pool parities,
    # (J, bb) = 3x3 pooled grid, co = channel) -> pooling is again lane-half maxes
    # and the pooled result is directly the NHWC flatten fc1 expects.
    Y = jnp.dot(h1flat, Cbig, preferred_element_type=jnp.float32)  # (nt, 1152)
    Y = jnp.maximum(Y[:, :576], Y[:, 576:])          # pool rows (dy)
    Y = jnp.maximum(Y[:, :288], Y[:, 288:])          # pool cols (dx)
    h2 = jnp.maximum(Y + b2b_ref[...], 0.0)          # (nt, 288) = NHWC (J, bb, co)

    # -------------- fc1 -> ReLU -> fc2 -> ReLU -> log_softmax --------------
    z = jnp.dot(h2, fc1w_ref[...], preferred_element_type=jnp.float32) + fc1b_ref[...]
    z = jnp.maximum(z, 0.0)                          # (nt, 128); padded cols stay 0
    y = jnp.dot(z, fc2w_ref[...], preferred_element_type=jnp.float32) + fc2b_ref[...]
    y = jnp.maximum(y, 0.0)                          # (nt, 10)
    m = jnp.max(y, axis=1, keepdims=True)
    s = y - m
    out_ref[...] = s - jnp.log(jnp.sum(jnp.exp(s), axis=1, keepdims=True))


# ------------------------------- host-side prep ----------------------------------

def init_params(key):
    """Deterministic synthetic init, PyTorch-style shapes (OIHW convs, (out,in) FCs)."""
    ks = jax.random.split(key, 8)

    def u(k, shape, fan_in):
        bound = 1.0 / jnp.sqrt(float(fan_in))
        return jax.random.uniform(k, shape, jnp.float32, -bound, bound)

    w_conv1 = u(ks[0], (8, 1, 7, 7), 1 * 7 * 7)
    b_conv1 = u(ks[1], (8,), 1 * 7 * 7)
    w_conv2 = u(ks[2], (32, 8, 5, 5), 8 * 5 * 5)
    b_conv2 = u(ks[3], (32,), 8 * 5 * 5)
    w_fc1 = u(ks[4], (100, 288), 288)
    b_fc1 = u(ks[5], (100,), 288)
    w_fc2 = u(ks[6], (10, 100), 100)
    b_fc2 = u(ks[7], (10,), 100)
    return (w_conv1, b_conv1, w_conv2, b_conv2, w_fc1, b_fc1, w_fc2, b_fc2)


def prepare_params(params):
    """One-time host-side restructuring of PyTorch-layout weights into the folded
    GEMM operands consumed by the fused kernel."""
    w1, b1, w2, b2, wf1, bf1, wf2, bf2 = (np.asarray(p, np.float32) for p in params)

    # conv1 folded banded weight:
    #   LHS lane = (image_row - (4u+2v))*28 + col  over an 8-row window (224 lanes)
    #   Bcat[(e+ky)*28 + (2b+f+kx), e*176 + f*88 + b*8 + co] = w1[co, 0, ky, kx]
    Bcat = np.zeros((224, 352), np.float32)
    for e in range(2):
        for f in range(2):
            for b in range(11):
                col0 = e * 176 + f * 88 + b * 8
                for ky in range(7):
                    for kx in range(7):
                        lane = (e + ky) * 28 + (2 * b + f + kx)
                        Bcat[lane, col0:col0 + 8] = w1[:, 0, ky, kx]
    bias1 = np.tile(b1, 11).reshape(1, 88)

    # conv2 full-K structured weight over h1flat (968 = (I, b, cin)):
    #   Cbig[I*88 + b*8 + ci, dy*576 + dx*288 + J*96 + bb*32 + co]
    #       = w2[co, ci, I - (2J+dy), b - (2bb+dx)]   when kernel indices are in [0,5)
    Cbig = np.zeros((968, 1152), np.float32)
    for dy in range(2):
        for dx in range(2):
            for J in range(3):
                for bb in range(3):
                    col0 = dy * 576 + dx * 288 + J * 96 + bb * 32
                    for ky in range(5):
                        I = 2 * J + dy + ky
                        for kx in range(5):
                            b = 2 * bb + dx + kx
                            row0 = I * 88 + b * 8
                            Cbig[row0:row0 + 8, col0:col0 + 32] = w2[:, :, ky, kx].T
    bias2 = np.tile(b2, 9).reshape(1, 288)

    # fc1: permute input features from PyTorch NCHW flatten (co*9 + J*3 + bb) to the
    # kernel's NHWC flatten (J*96 + bb*32 + co); pad hidden 100 -> 128 lanes.
    wfc1 = np.zeros((288, 128), np.float32)
    for J in range(3):
        for bb in range(3):
            for co in range(32):
                wfc1[J * 96 + bb * 32 + co, :100] = wf1[:, co * 9 + J * 3 + bb]
    bfc1 = np.zeros((1, 128), np.float32)
    bfc1[0, :100] = bf1

    wfc2 = np.zeros((128, 10), np.float32)
    wfc2[:100, :] = wf2.T
    bfc2 = bf2.reshape(1, 10)

    return tuple(jnp.asarray(a) for a in (Bcat, bias1, Cbig, bias2, wfc1, bfc1, wfc2, bfc2))


# --------------------------------- forward ---------------------------------------

def _tiling(n):
    """Batch tile (multiple of 8), padded batch, grid size.  Tile up to 256; force
    >=2 grid steps for batches >=128 so "parallel" can split across v7x's two TCs."""
    num_tiles = (n + 255) // 256
    if n >= 128 and num_tiles < 2:
        num_tiles = 2
    tile = (((n + num_tiles - 1) // num_tiles) + 7) // 8 * 8
    return tile, tile * num_tiles, num_tiles


@jax.jit
def cnn_net_forward(x, prepped):
    (b1w, b1b, c2w, b2b, fc1w, fc1b, fc2w, fc2b) = prepped
    n = x.shape[0]
    assert x.shape[1:] == (1, 28, 28)      # fc1's 288 = 32*3*3 fixes the spatial size
    tile, npad, num_tiles = _tiling(n)

    xf = x.reshape(n, 784)
    if npad != n:
        xf = jnp.concatenate([xf, jnp.zeros((npad - n, 784), xf.dtype)], axis=0)

    flops = npad * (2 * 11 * 224 * 352 + 2 * 968 * 1152 + 2 * 288 * 128 + 2 * 128 * 10)
    weight_bytes = sum(int(a.size) * 4 for a in prepped)
    bytes_accessed = int(xf.size) * 4 + weight_bytes + npad * 10 * 4

    out = pl.pallas_call(
        cnn_fused_kernel,
        out_shape=jax.ShapeDtypeStruct((npad, 10), jnp.float32),
        grid_spec=pltpu.PrefetchScalarGridSpec(
            num_scalar_prefetch=0,
            grid=(num_tiles,),
            in_specs=[
                pl.BlockSpec((tile, 784), lambda i: (i, 0)),
                pl.BlockSpec((224, 352), lambda i: (0, 0)),
                pl.BlockSpec((1, 88), lambda i: (0, 0)),
                pl.BlockSpec((968, 1152), lambda i: (0, 0)),
                pl.BlockSpec((1, 288), lambda i: (0, 0)),
                pl.BlockSpec((288, 128), lambda i: (0, 0)),
                pl.BlockSpec((1, 128), lambda i: (0, 0)),
                pl.BlockSpec((128, 10), lambda i: (0, 0)),
                pl.BlockSpec((1, 10), lambda i: (0, 0)),
            ],
            out_specs=pl.BlockSpec((tile, 10), lambda i: (i, 0)),
        ),
        compiler_params=pltpu.CompilerParams(
            dimension_semantics=("parallel",),
            vmem_limit_bytes=48 * 1024 * 1024),
        cost_estimate=pl.CostEstimate(
            flops=flops, transcendentals=11 * npad, bytes_accessed=bytes_accessed),
    )(xf, b1w, b1b, c2w, b2b, fc1w, fc1b, fc2w, fc2b)

    return out[:n]


# -------------------------- pure-JAX reference -----------------------------

def reference_forward(x, params):
    (w1, b1, w2, b2, wf1, bf1, wf2, bf2) = params
    y = jax.lax.conv_general_dilated(x, w1, (1, 1), 'VALID',
                                     dimension_numbers=('NCHW', 'OIHW', 'NCHW'))
    y = y + b1[None, :, None, None]
    y = jax.lax.reduce_window(y, -jnp.inf, jax.lax.max, (1, 1, 2, 2), (1, 1, 2, 2), 'VALID')
    y = jnp.maximum(y, 0.0)
    y = jax.lax.conv_general_dilated(y, w2, (1, 1), 'VALID',
                                     dimension_numbers=('NCHW', 'OIHW', 'NCHW'))
    y = y + b2[None, :, None, None]
    y = jax.lax.reduce_window(y, -jnp.inf, jax.lax.max, (1, 1, 2, 2), (1, 1, 2, 2), 'VALID')
    y = jnp.maximum(y, 0.0)
    y = y.reshape(y.shape[0], -1)
    y = jnp.maximum(y @ wf1.T + bf1, 0.0)
    y = jnp.maximum(y @ wf2.T + bf2, 0.0)
    return jax.nn.log_softmax(y, axis=1)


if __name__ == "__main__":
    key = jax.random.PRNGKey(0)
    kx, kp = jax.random.split(key)
    # Input spatial size is fixed at 28x28 by fc1's 288 = 32*3*3 input features.
    x = jax.random.normal(kx, (2, 1, 28, 28), jnp.float32)
    params = init_params(kp)
    prepped = prepare_params(params)

    out = cnn_net_forward(x, prepped)
    out = jax.block_until_ready(out)
    assert out.shape == (2, 10)

    ref = reference_forward(x, params)
    assert jnp.allclose(out, ref, rtol=1e-3, atol=1e-3), (out, ref)

    print("KERNEL_OK")
</pallas_src>

<mosaic_0001>
module attributes {stable_mosaic.version = 11 : i64} {
  func.func @cnn_fused_kernel(%arg0: i32, %arg1: memref<8x784xf32, #tpu.memory_space<vmem>>, %arg2: memref<224x352xf32, #tpu.memory_space<vmem>>, %arg3: memref<1x88xf32, #tpu.memory_space<vmem>>, %arg4: memref<968x1152xf32, #tpu.memory_space<vmem>>, %arg5: memref<1x288xf32, #tpu.memory_space<vmem>>, %arg6: memref<288x128xf32, #tpu.memory_space<vmem>>, %arg7: memref<1x128xf32, #tpu.memory_space<vmem>>, %arg8: memref<128x10xf32, #tpu.memory_space<vmem>>, %arg9: memref<1x10xf32, #tpu.memory_space<vmem>>, %arg10: memref<8x10xf32, #tpu.memory_space<vmem>>) attributes {dimension_semantics = [#tpu.dimension_semantics<parallel>], iteration_bounds = array<i64: 1>, scalar_prefetch = 0 : i64, scratch_operands = 0 : i64, tpu.core_type = #tpu.core_type<tc>, window_params = [{transform_indices = @transform_0, window_bounds = array<i64: 8, 784>}, {pipeline_mode = #tpu.pipeline_mode<synchronous>, transform_indices = @transform_1, window_bounds = array<i64: 224, 352>}, {pipeline_mode = #tpu.pipeline_mode<synchronous>, transform_indices = @transform_2, window_bounds = array<i64: 1, 88>}, {pipeline_mode = #tpu.pipeline_mode<synchronous>, transform_indices = @transform_3, window_bounds = array<i64: 968, 1152>}, {pipeline_mode = #tpu.pipeline_mode<synchronous>, transform_indices = @transform_4, window_bounds = array<i64: 1, 288>}, {pipeline_mode = #tpu.pipeline_mode<synchronous>, transform_indices = @transform_5, window_bounds = array<i64: 288, 128>}, {pipeline_mode = #tpu.pipeline_mode<synchronous>, transform_indices = @transform_6, window_bounds = array<i64: 1, 128>}, {pipeline_mode = #tpu.pipeline_mode<synchronous>, transform_indices = @transform_7, window_bounds = array<i64: 128, 10>}, {pipeline_mode = #tpu.pipeline_mode<synchronous>, transform_indices = @transform_8, window_bounds = array<i64: 1, 10>}, {transform_indices = @transform_9, window_bounds = array<i64: 8, 10>}]} {
    %c0 = arith.constant 0 : index
    %c0_0 = arith.constant 0 : index
    %0 = vector.load %arg1[%c0, %c0_0] : memref<8x784xf32, #tpu.memory_space<vmem>>, vector<8x784xf32>
    %c0_1 = arith.constant 0 : index
    %c0_2 = arith.constant 0 : index
    %1 = vector.load %arg2[%c0_1, %c0_2] : memref<224x352xf32, #tpu.memory_space<vmem>>, vector<224x352xf32>
    %c0_3 = arith.constant 0 : index
    %c0_4 = arith.constant 0 : index
    %2 = vector.load %arg4[%c0_3, %c0_4] : memref<968x1152xf32, #tpu.memory_space<vmem>>, vector<968x1152xf32>
    %3 = vector.extract_strided_slice %0 {offsets = [0, 0], sizes = [8, 224], strides = [1, 1]} : vector<8x784xf32> to vector<8x224xf32>
    %4 = vector.extract_strided_slice %0 {offsets = [0, 112], sizes = [8, 224], strides = [1, 1]} : vector<8x784xf32> to vector<8x224xf32>
    %5 = vector.extract_strided_slice %0 {offsets = [0, 224], sizes = [8, 224], strides = [1, 1]} : vector<8x784xf32> to vector<8x224xf32>
    %6 = vector.extract_strided_slice %0 {offsets = [0, 336], sizes = [8, 224], strides = [1, 1]} : vector<8x784xf32> to vector<8x224xf32>
    %7 = vector.extract_strided_slice %0 {offsets = [0, 448], sizes = [8, 224], strides = [1, 1]} : vector<8x784xf32> to vector<8x224xf32>
    %8 = vector.extract_strided_slice %0 {offsets = [0, 560], sizes = [8, 224], strides = [1, 1]} : vector<8x784xf32> to vector<8x224xf32>
    %9 = tpu.concatenate %3, %4, %5, %6, %7, %8 in 0 : vector<8x224xf32>, vector<8x224xf32>, vector<8x224xf32>, vector<8x224xf32>, vector<8x224xf32>, vector<8x224xf32> -> vector<48x224xf32>
    %cst = arith.constant dense<0.000000e+00> : vector<48x352xf32>
    %10 = tpu.matmul %9, %1, %cst {dimension_numbers = #tpu.dot_dimension_numbers<[1], [0], [0], [1], [0, 0, 1, 1], [], []>} : vector<48x224xf32>, vector<224x352xf32>, vector<48x352xf32> -> vector<48x352xf32>
    %11 = vector.extract_strided_slice %10 {offsets = [0, 0], sizes = [48, 176], strides = [1, 1]} : vector<48x352xf32> to vector<48x176xf32>
    %12 = vector.extract_strided_slice %10 {offsets = [0, 176], sizes = [48, 176], strides = [1, 1]} : vector<48x352xf32> to vector<48x176xf32>
    %13 = arith.maximumf %11, %12 : vector<48x176xf32>
    %14 = vector.extract_strided_slice %13 {offsets = [0, 0], sizes = [48, 88], strides = [1, 1]} : vector<48x176xf32> to vector<48x88xf32>
    %15 = vector.extract_strided_slice %13 {offsets = [0, 88], sizes = [48, 88], strides = [1, 1]} : vector<48x176xf32> to vector<48x88xf32>
    %16 = arith.maximumf %14, %15 : vector<48x88xf32>
    %c0_5 = arith.constant 0 : index
    %c0_6 = arith.constant 0 : index
    %17 = vector.load %arg3[%c0_5, %c0_6] : memref<1x88xf32, #tpu.memory_space<vmem>>, vector<1x88xf32>
    %18 = vector.broadcast %17 : vector<1x88xf32> to vector<48x88xf32>
    %19 = arith.addf %16, %18 : vector<48x88xf32>
    %cst_7 = arith.constant 0.000000e+00 : f32
    %20 = vector.broadcast %cst_7 : f32 to vector<48x88xf32>
    %21 = arith.maximumf %19, %20 : vector<48x88xf32>
    %22 = vector.extract_strided_slice %21 {offsets = [0, 0], sizes = [8, 88], strides = [1, 1]} : vector<48x88xf32> to vector<8x88xf32>
    %23 = vector.extract_strided_slice %21 {offsets = [8, 0], sizes = [8, 88], strides = [1, 1]} : vector<48x88xf32> to vector<8x88xf32>
    %24 = vector.extract_strided_slice %21 {offsets = [16, 0], sizes = [8, 88], strides = [1, 1]} : vector<48x88xf32> to vector<8x88xf32>
    %25 = vector.extract_strided_slice %21 {offsets = [24, 0], sizes = [8, 88], strides = [1, 1]} : vector<48x88xf32> to vector<8x88xf32>
    %26 = vector.extract_strided_slice %21 {offsets = [32, 0], sizes = [8, 88], strides = [1, 1]} : vector<48x88xf32> to vector<8x88xf32>
    %27 = vector.extract_strided_slice %21 {offsets = [40, 0], sizes = [8, 88], strides = [1, 1]} : vector<48x88xf32> to vector<8x88xf32>
    %28 = vector.extract_strided_slice %0 {offsets = [0, 56], sizes = [8, 224], strides = [1, 1]} : vector<8x784xf32> to vector<8x224xf32>
    %29 = vector.extract_strided_slice %0 {offsets = [0, 168], sizes = [8, 224], strides = [1, 1]} : vector<8x784xf32> to vector<8x224xf32>
    %30 = vector.extract_strided_slice %0 {offsets = [0, 280], sizes = [8, 224], strides = [1, 1]} : vector<8x784xf32> to vector<8x224xf32>
    %31 = vector.extract_strided_slice %0 {offsets = [0, 392], sizes = [8, 224], strides = [1, 1]} : vector<8x784xf32> to vector<8x224xf32>
    %32 = vector.extract_strided_slice %0 {offsets = [0, 504], sizes = [8, 224], strides = [1, 1]} : vector<8x784xf32> to vector<8x224xf32>
    %33 = tpu.concatenate %28, %29, %30, %31, %32 in 0 : vector<8x224xf32>, vector<8x224xf32>, vector<8x224xf32>, vector<8x224xf32>, vector<8x224xf32> -> vector<40x224xf32>
    %cst_8 = arith.constant dense<0.000000e+00> : vector<40x352xf32>
    %34 = tpu.matmul %33, %1, %cst_8 {dimension_numbers = #tpu.dot_dimension_numbers<[1], [0], [0], [1], [0, 0, 1, 1], [], []>} : vector<40x224xf32>, vector<224x352xf32>, vector<40x352xf32> -> vector<40x352xf32>
    %35 = vector.extract_strided_slice %34 {offsets = [0, 0], sizes = [40, 176], strides = [1, 1]} : vector<40x352xf32> to vector<40x176xf32>
    %36 = vector.extract_strided_slice %34 {offsets = [0, 176], sizes = [40, 176], strides = [1, 1]} : vector<40x352xf32> to vector<40x176xf32>
    %37 = arith.maximumf %35, %36 : vector<40x176xf32>
    %38 = vector.extract_strided_slice %37 {offsets = [0, 0], sizes = [40, 88], strides = [1, 1]} : vector<40x176xf32> to vector<40x88xf32>
    %39 = vector.extract_strided_slice %37 {offsets = [0, 88], sizes = [40, 88], strides = [1, 1]} : vector<40x176xf32> to vector<40x88xf32>
    %40 = arith.maximumf %38, %39 : vector<40x88xf32>
    %c0_9 = arith.constant 0 : index
    %c0_10 = arith.constant 0 : index
    %41 = vector.load %arg3[%c0_9, %c0_10] : memref<1x88xf32, #tpu.memory_space<vmem>>, vector<1x88xf32>
    %42 = vector.broadcast %41 : vector<1x88xf32> to vector<40x88xf32>
    %43 = arith.addf %40, %42 : vector<40x88xf32>
    %cst_11 = arith.constant 0.000000e+00 : f32
    %44 = vector.broadcast %cst_11 : f32 to vector<40x88xf32>
    %45 = arith.maximumf %43, %44 : vector<40x88xf32>
    %46 = vector.extract_strided_slice %45 {offsets = [0, 0], sizes = [8, 88], strides = [1, 1]} : vector<40x88xf32> to vector<8x88xf32>
    %47 = vector.extract_strided_slice %45 {offsets = [8, 0], sizes = [8, 88], strides = [1, 1]} : vector<40x88xf32> to vector<8x88xf32>
    %48 = vector.extract_strided_slice %45 {offsets = [16, 0], sizes = [8, 88], strides = [1, 1]} : vector<40x88xf32> to vector<8x88xf32>
    %49 = vector.extract_strided_slice %45 {offsets = [24, 0], sizes = [8, 88], strides = [1, 1]} : vector<40x88xf32> to vector<8x88xf32>
    %50 = vector.extract_strided_slice %45 {offsets = [32, 0], sizes = [8, 88], strides = [1, 1]} : vector<40x88xf32> to vector<8x88xf32>
    %51 = tpu.concatenate %22, %46, %23, %47, %24, %48, %25, %49, %26, %50, %27 in 1 : vector<8x88xf32>, vector<8x88xf32>, vector<8x88xf32>, vector<8x88xf32>, vector<8x88xf32>, vector<8x88xf32>, vector<8x88xf32>, vector<8x88xf32>, vector<8x88xf32>, vector<8x88xf32>, vector<8x88xf32> -> vector<8x968xf32>
    %cst_12 = arith.constant dense<0.000000e+00> : vector<8x1152xf32>
    %52 = tpu.matmul %51, %2, %cst_12 {dimension_numbers = #tpu.dot_dimension_numbers<[1], [0], [0], [1], [0, 0, 1, 1], [], []>} : vector<8x968xf32>, vector<968x1152xf32>, vector<8x1152xf32> -> vector<8x1152xf32>
    %53 = vector.extract_strided_slice %52 {offsets = [0, 0], sizes = [8, 576], strides = [1, 1]} : vector<8x1152xf32> to vector<8x576xf32>
    %54 = vector.extract_strided_slice %52 {offsets = [0, 576], sizes = [8, 576], strides = [1, 1]} : vector<8x1152xf32> to vector<8x576xf32>
    %55 = arith.maximumf %53, %54 : vector<8x576xf32>
    %56 = vector.extract_strided_slice %55 {offsets = [0, 0], sizes = [8, 288], strides = [1, 1]} : vector<8x576xf32> to vector<8x288xf32>
    %57 = vector.extract_strided_slice %55 {offsets = [0, 288], sizes = [8, 288], strides = [1, 1]} : vector<8x576xf32> to vector<8x288xf32>
    %58 = arith.maximumf %56, %57 : vector<8x288xf32>
    %c0_13 = arith.constant 0 : index
    %c0_14 = arith.constant 0 : index
    %59 = vector.load %arg5[%c0_13, %c0_14] : memref<1x288xf32, #tpu.memory_space<vmem>>, vector<1x288xf32>
    %60 = vector.broadcast %59 : vector<1x288xf32> to vector<8x288xf32>
    %61 = arith.addf %58, %60 : vector<8x288xf32>
    %cst_15 = arith.constant 0.000000e+00 : f32
    %62 = vector.broadcast %cst_15 : f32 to vector<8x288xf32>
    %63 = arith.maximumf %61, %62 : vector<8x288xf32>
    %c0_16 = arith.constant 0 : index
    %c0_17 = arith.constant 0 : index
    %64 = vector.load %arg6[%c0_16, %c0_17] : memref<288x128xf32, #tpu.memory_space<vmem>>, vector<288x128xf32>
    %cst_18 = arith.constant dense<0.000000e+00> : vector<8x128xf32>
    %65 = tpu.matmul %63, %64, %cst_18 {dimension_numbers = #tpu.dot_dimension_numbers<[1], [0], [0], [1], [0, 0, 1, 1], [], []>} : vector<8x288xf32>, vector<288x128xf32>, vector<8x128xf32> -> vector<8x128xf32>
    %c0_19 = arith.constant 0 : index
    %c0_20 = arith.constant 0 : index
    %66 = vector.load %arg7[%c0_19, %c0_20] : memref<1x128xf32, #tpu.memory_space<vmem>>, vector<1x128xf32>
    %67 = vector.broadcast %66 : vector<1x128xf32> to vector<8x128xf32>
    %68 = arith.addf %65, %67 : vector<8x128xf32>
    %cst_21 = arith.constant 0.000000e+00 : f32
    %69 = vector.broadcast %cst_21 : f32 to vector<8x128xf32>
    %70 = arith.maximumf %68, %69 : vector<8x128xf32>
    %c0_22 = arith.constant 0 : index
    %c0_23 = arith.constant 0 : index
    %71 = vector.load %arg8[%c0_22, %c0_23] : memref<128x10xf32, #tpu.memory_space<vmem>>, vector<128x10xf32>
    %cst_24 = arith.constant dense<0.000000e+00> : vector<8x10xf32>
    %72 = tpu.matmul %70, %71, %cst_24 {dimension_numbers = #tpu.dot_dimension_numbers<[1], [0], [0], [1], [0, 0, 1, 1], [], []>} : vector<8x128xf32>, vector<128x10xf32>, vector<8x10xf32> -> vector<8x10xf32>
    %c0_25 = arith.constant 0 : index
    %c0_26 = arith.constant 0 : index
    %73 = vector.load %arg9[%c0_25, %c0_26] : memref<1x10xf32, #tpu.memory_space<vmem>>, vector<1x10xf32>
    %74 = vector.broadcast %73 : vector<1x10xf32> to vector<8x10xf32>
    %75 = arith.addf %72, %74 : vector<8x10xf32>
    %cst_27 = arith.constant 0.000000e+00 : f32
    %76 = vector.broadcast %cst_27 : f32 to vector<8x10xf32>
    %77 = arith.maximumf %75, %76 : vector<8x10xf32>
    %cst_28 = arith.constant dense<0xFF800000> : vector<8xf32>
    %78 = vector.multi_reduction <maximumf>, %77, %cst_28 [1] : vector<8x10xf32> to vector<8xf32>
    %79 = vector.shape_cast %78 : vector<8xf32> to vector<8x1xf32>
    %80 = vector.broadcast %79 : vector<8x1xf32> to vector<8x10xf32>
    %81 = arith.subf %77, %80 : vector<8x10xf32>
    %82 = math.exp %81 : vector<8x10xf32>
    %cst_29 = arith.constant dense<0.000000e+00> : vector<8xf32>
    %83 = vector.multi_reduction <add>, %82, %cst_29 [1] : vector<8x10xf32> to vector<8xf32>
    %84 = vector.shape_cast %83 : vector<8xf32> to vector<8x1xf32>
    %85 = math.log %84 : vector<8x1xf32>
    %86 = vector.broadcast %85 : vector<8x1xf32> to vector<8x10xf32>
    %87 = arith.subf %81, %86 : vector<8x10xf32>
    %c0_30 = arith.constant 0 : index
    %c0_31 = arith.constant 0 : index
    %88 = vector.load %arg10[%c0_30, %c0_31] : memref<8x10xf32, #tpu.memory_space<vmem>>, vector<8x10xf32>
    tpu.vector_store %arg10[%c0_30, %c0_31], %87 {strides = array<i32>} : memref<8x10xf32, #tpu.memory_space<vmem>>, vector<8x10xf32>,
    return
  }
  func.func @transform_0(%arg0: i32) -> (i32, i32) {
    %c0_i32 = arith.constant 0 : i32
    %c0_i32_0 = arith.constant 0 : i32
    return %arg0, %c0_i32 : i32, i32
  }
  func.func @transform_1(%arg0: i32) -> (i32, i32) {
    %c0_i32 = arith.constant 0 : i32
    %c0_i32_0 = arith.constant 0 : i32
    %c0_i32_1 = arith.constant 0 : i32
    return %c0_i32, %c0_i32_0 : i32, i32
  }
  func.func @transform_2(%arg0: i32) -> (i32, i32) {
    %c0_i32 = arith.constant 0 : i32
    %c0_i32_0 = arith.constant 0 : i32
    %c0_i32_1 = arith.constant 0 : i32
    return %c0_i32, %c0_i32_0 : i32, i32
  }
  func.func @transform_3(%arg0: i32) -> (i32, i32) {
    %c0_i32 = arith.constant 0 : i32
    %c0_i32_0 = arith.constant 0 : i32
    %c0_i32_1 = arith.constant 0 : i32
    return %c0_i32, %c0_i32_0 : i32, i32
  }
  func.func @transform_4(%arg0: i32) -> (i32, i32) {
    %c0_i32 = arith.constant 0 : i32
    %c0_i32_0 = arith.constant 0 : i32
    %c0_i32_1 = arith.constant 0 : i32
    return %c0_i32, %c0_i32_0 : i32, i32
  }
  func.func @transform_5(%arg0: i32) -> (i32, i32) {
    %c0_i32 = arith.constant 0 : i32
    %c0_i32_0 = arith.constant 0 : i32
    %c0_i32_1 = arith.constant 0 : i32
    return %c0_i32, %c0_i32_0 : i32, i32
  }
  func.func @transform_6(%arg0: i32) -> (i32, i32) {
    %c0_i32 = arith.constant 0 : i32
    %c0_i32_0 = arith.constant 0 : i32
    %c0_i32_1 = arith.constant 0 : i32
    return %c0_i32, %c0_i32_0 : i32, i32
  }
  func.func @transform_7(%arg0: i32) -> (i32, i32) {
    %c0_i32 = arith.constant 0 : i32
    %c0_i32_0 = arith.constant 0 : i32
    %c0_i32_1 = arith.constant 0 : i32
    return %c0_i32, %c0_i32_0 : i32, i32
  }
  func.func @transform_8(%arg0: i32) -> (i32, i32) {
    %c0_i32 = arith.constant 0 : i32
    %c0_i32_0 = arith.constant 0 : i32
    %c0_i32_1 = arith.constant 0 : i32
    return %c0_i32, %c0_i32_0 : i32, i32
  }
  func.func @transform_9(%arg0: i32) -> (i32, i32) {
    %c0_i32 = arith.constant 0 : i32
    %c0_i32_0 = arith.constant 0 : i32
    return %arg0, %c0_i32 : i32, i32
  }
}

</mosaic_0001>

<llo_original>
// kernel: cnn_net_forward.1
$region0: #{cnn_net_forward.1}
  #allocation0 [shape = 'u32[]', space=smem, size = 0x4, offset = 0x4, fixed_abs, tag = 'smem constant byte address 0x4 - core index']
  #allocation1 [shape = 'u32[144,128]{1,0:T(1,128)}', space=vmem, size = 0x12000, scoped, tag = 'internal scratch']
  %s0 = inlined_call_operand.vmem [shape: f32[8,784], index: 0, kind: input, shape index: {}]
  %s1 = inlined_call_operand.hbm [shape: f32[224,352], index: 1, kind: input, shape index: {}]
  %s2 = inlined_call_operand.hbm [shape: f32[1,88], index: 2, kind: input, shape index: {}]
  %s3 = inlined_call_operand.hbm [shape: f32[968,1152], index: 3, kind: input, shape index: {}]
  %s4 = inlined_call_operand.hbm [shape: f32[1,288], index: 4, kind: input, shape index: {}]
  %s5 = inlined_call_operand.hbm [shape: f32[288,128], index: 5, kind: input, shape index: {}]
  %s6 = inlined_call_operand.hbm [shape: f32[1,128], index: 6, kind: input, shape index: {}]
  %s7 = inlined_call_operand.vmem [shape: f32[128,10], index: 7, kind: input, shape index: {}]
  %s8 = inlined_call_operand.hbm [shape: f32[1,10], index: 8, kind: input, shape index: {}]
  %s9 = inlined_call_operand.vmem [shape: f32[8,10], index: 9, kind: output, shape index: {}]
  %s10 = sld [smem:[#allocation0]]
  $region74: #{cnn_net_forward.1} parent=0
    _
  %s12 = ssub.s32 1, %s10
  %s13 = scalar_select 0, %s12, %s10
  $region1: #{cnn_net_forward.1} parent=0
    #allocation2 [shape = 'u8[344064]{0}', space=vmem, size = 0x54000, scoped, tag = 'input window, operand 1, single buffered']
    #allocation3 [shape = 's32[1]{0}', space=sflag, size = 0x4, scoped, tag = 'scoped memory for cnn_net_forward.1']
    #allocation4 [shape = 'u8[512]{0}', space=vmem, size = 0x400, scoped, tag = 'input window, operand 2, single buffered']
    #allocation5 [shape = 's32[1]{0}', space=sflag, size = 0x4, scoped, tag = 'scoped memory for cnn_net_forward.1']
    #allocation6 [shape = 'u8[4460544]{0}', space=vmem, size = 0x441000, scoped, tag = 'input window, operand 3, single buffered']
    #allocation7 [shape = 'u8[1536]{0}', space=vmem, size = 0x800, scoped, tag = 'input window, operand 4, single buffered']
    #allocation8 [shape = 's32[1]{0}', space=sflag, size = 0x4, scoped, tag = 'scoped memory for cnn_net_forward.1']
    #allocation9 [shape = 'u8[147456]{0}', space=vmem, size = 0x24000, scoped, tag = 'input window, operand 5, single buffered']
    #allocation10 [shape = 'u8[512]{0}', space=vmem, size = 0x400, scoped, tag = 'input window, operand 6, single buffered']
    #allocation11 [shape = 's32[1]{0}', space=sflag, size = 0x4, scoped, tag = 'scoped memory for cnn_net_forward.1']
    #allocation12 [shape = 'u8[512]{0}', space=vmem, size = 0x400, scoped, tag = 'input window, operand 8, single buffered']
    %14 = vsyncpa [#allocation3], 0
    %15 = vsyncpa [#allocation5], 0
    %16 = vsyncpa [#allocation8], 0
    %17 = vsyncpa [#allocation11], 0
    // Predicated region
    $region2: #{cnn_net_forward.1} parent=1 // pred_check
      _
    $region3: #{cnn_net_forward.1} parent=1 // pred_check_branch
      %19 = sbr.rel (0) target = $region5
    $region4: #{cnn_net_forward.1} parent=1 // pred_region
      _
    $region5: #{cnn_net_forward.1} parent=1 // pred_fallthru
      _
    // Predicated region
    $region6: #{cnn_net_forward.1} parent=1 // pred_check
      _
    $region7: #{cnn_net_forward.1} parent=1 // pred_check_branch
      %21 = sbr.rel (0) target = $region9
    $region8: #{cnn_net_forward.1} parent=1 // pred_region
      %s23 = ssub.s32 10752, 10752
      %24 = vsyncadd [#allocation3], %s23
      %s25 = sshll.u32 [#allocation2], 4
      %s26 = int_to_ptr.vmem [resolvable:$true] %s25
      %31 = dma.hbm_to_vmem [thread:$0]  %s1, 10752, %s26, [#allocation3], 384, 384, 24
    $region9: #{cnn_net_forward.1} parent=1 // pred_fallthru
      _
    // Predicated region
    $region10: #{cnn_net_forward.1} parent=1 // pred_check
      _
    $region11: #{cnn_net_forward.1} parent=1 // pred_check_branch
      %33 = sbr.rel (0) target = $region13
    $region12: #{cnn_net_forward.1} parent=1 // pred_region
      %s35 = ssub.s32 16, 16
      %36 = vsyncadd [#allocation5], %s35
      %s38 = sshll.u32 [#allocation4], 4
      %s39 = int_to_ptr.vmem [resolvable:$true] %s38
      %41 = dma.hbm_to_vmem [thread:$0]  %s2, 16, %s39, [#allocation5]
    $region13: #{cnn_net_forward.1} parent=1 // pred_fallthru
      _
    // Predicated region
    $region14: #{cnn_net_forward.1} parent=1 // pred_check
      _
    $region15: #{cnn_net_forward.1} parent=1 // pred_check_branch
      %43 = sbr.rel (0) target = $region17
    $region16: #{cnn_net_forward.1} parent=1 // pred_region
      %s45 = ssub.s32 139392, 139392
      %46 = vsyncadd [#allocation5], %s45
      %s47 = sshll.u32 [#allocation6], 4
      %s48 = int_to_ptr.vmem [resolvable:$true] %s47
      %53 = dma.hbm_to_vmem [thread:$0]  %s3, 139392, %s48, [#allocation5], 1152, 1152, 72
    $region17: #{cnn_net_forward.1} parent=1 // pred_fallthru
      _
    // Predicated region
    $region18: #{cnn_net_forward.1} parent=1 // pred_check
      _
    $region19: #{cnn_net_forward.1} parent=1 // pred_check_branch
      %55 = sbr.rel (0) target = $region21
    $region20: #{cnn_net_forward.1} parent=1 // pred_region
      %s57 = ssub.s32 48, 48
      %58 = vsyncadd [#allocation8], %s57
      %s60 = sshll.u32 [#allocation7], 4
      %s61 = int_to_ptr.vmem [resolvable:$true] %s60
      %63 = dma.hbm_to_vmem [thread:$0]  %s4, 48, %s61, [#allocation8]
    $region21: #{cnn_net_forward.1} parent=1 // pred_fallthru
      _
    // Predicated region
    $region22: #{cnn_net_forward.1} parent=1 // pred_check
      _
    $region23: #{cnn_net_forward.1} parent=1 // pred_check_branch
      %65 = sbr.rel (0) target = $region25
    $region24: #{cnn_net_forward.1} parent=1 // pred_region
      %s67 = ssub.s32 4608, 4608
      %68 = vsyncadd [#allocation8], %s67
      %s69 = sshll.u32 [#allocation9], 4
      %s70 = int_to_ptr.vmem [resolvable:$true] %s69
      %75 = dma.hbm_to_vmem [thread:$0]  %s5, 4608, %s70, [#allocation8], 128, 128, 8
    $region25: #{cnn_net_forward.1} parent=1 // pred_fallthru
      _
    // Predicated region
    $region26: #{cnn_net_forward.1} parent=1 // pred_check
      _
    $region27: #{cnn_net_forward.1} parent=1 // pred_check_branch
      %77 = sbr.rel (0) target = $region29
    $region28: #{cnn_net_forward.1} parent=1 // pred_region
      %s79 = ssub.s32 16, 16
      %80 = vsyncadd [#allocation11], %s79
      %s82 = sshll.u32 [#allocation10], 4
      %s83 = int_to_ptr.vmem [resolvable:$true] %s82
      %85 = dma.hbm_to_vmem [thread:$0]  %s6, 16, %s83, [#allocation11]
    $region29: #{cnn_net_forward.1} parent=1 // pred_fallthru
      _
    // Predicated region
    $region30: #{cnn_net_forward.1} parent=1 // pred_check
      _
    $region31: #{cnn_net_forward.1} parent=1 // pred_check_branch
      %87 = sbr.rel (0) target = $region33
    $region32: #{cnn_net_forward.1} parent=1 // pred_region
      _
    $region33: #{cnn_net_forward.1} parent=1 // pred_fallthru
      _
    // Predicated region
    $region34: #{cnn_net_forward.1} parent=1 // pred_check
      _
    $region35: #{cnn_net_forward.1} parent=1 // pred_check_branch
      %89 = sbr.rel (0) target = $region37
    $region36: #{cnn_net_forward.1} parent=1 // pred_region
      %s91 = ssub.s32 16, 16
      %92 = vsyncadd [#allocation11], %s91
      %s94 = sshll.u32 [#allocation12], 4
      %s95 = int_to_ptr.vmem [resolvable:$true] %s94
      %97 = dma.hbm_to_vmem [thread:$0]  %s8, 16, %s95, [#allocation11]
    $region37: #{cnn_net_forward.1} parent=1 // pred_fallthru
      _
    // Predicated region
    $region38: #{cnn_net_forward.1} parent=1 // pred_check
      _
    $region39: #{cnn_net_forward.1} parent=1 // pred_check_branch
      %99 = sbr.rel (0) target = $region41
    $region40: #{cnn_net_forward.1} parent=1 // pred_region
      %100 = dma.done [#allocation3], 10752
    $region41: #{cnn_net_forward.1} parent=1 // pred_fallthru
      _
    // Predicated region
    $region42: #{cnn_net_forward.1} parent=1 // pred_check
      _
    $region43: #{cnn_net_forward.1} parent=1 // pred_check_branch
      %102 = sbr.rel (0) target = $region45
    $region44: #{cnn_net_forward.1} parent=1 // pred_region
      %103 = dma.done [#allocation5], 16
    $region45: #{cnn_net_forward.1} parent=1 // pred_fallthru
      _
    // Predicated region
    $region46: #{cnn_net_forward.1} parent=1 // pred_check
      _
    $region47: #{cnn_net_forward.1} parent=1 // pred_check_branch
      %105 = sbr.rel (0) target = $region49
    $region48: #{cnn_net_forward.1} parent=1 // pred_region
      %106 = dma.done [#allocation5], 139392
    $region49: #{cnn_net_forward.1} parent=1 // pred_fallthru
      _
    // Predicated region
    $region50: #{cnn_net_forward.1} parent=1 // pred_check
      _
    $region51: #{cnn_net_forward.1} parent=1 // pred_check_branch
      %108 = sbr.rel (0) target = $region53
    $region52: #{cnn_net_forward.1} parent=1 // pred_region
      %109 = dma.done [#allocation8], 48
    $region53: #{cnn_net_forward.1} parent=1 // pred_fallthru
      _
    // Predicated region
    $region54: #{cnn_net_forward.1} parent=1 // pred_check
      _
    $region55: #{cnn_net_forward.1} parent=1 // pred_check_branch
      %111 = sbr.rel (0) target = $region57
    $region56: #{cnn_net_forward.1} parent=1 // pred_region
      %112 = dma.done [#allocation8], 4608
    $region57: #{cnn_net_forward.1} parent=1 // pred_fallthru
      _
    // Predicated region
    $region58: #{cnn_net_forward.1} parent=1 // pred_check
      _
    $region59: #{cnn_net_forward.1} parent=1 // pred_check_branch
      %114 = sbr.rel (0) target = $region61
    $region60: #{cnn_net_forward.1} parent=1 // pred_region
      %115 = dma.done [#allocation11], 16
    $region61: #{cnn_net_forward.1} parent=1 // pred_fallthru
      _
    // Predicated region
    $region62: #{cnn_net_forward.1} parent=1 // pred_check
      _
    $region63: #{cnn_net_forward.1} parent=1 // pred_check_branch
      %117 = sbr.rel (0) target = $region65
    $region64: #{cnn_net_forward.1} parent=1 // pred_region
      %118 = dma.done [#allocation11], 16
    $region65: #{cnn_net_forward.1} parent=1 // pred_fallthru
      _
    %v119 = vld [vmem:[%s0] sm:$0xff]
    %v120 = vld [vmem:[%s0 + $0x8] sm:$0xff]
    %v121 = vld [vmem:[%s0 + $0x10] sm:$0xff]
    %v122 = vld [vmem:[%s0 + $0x18] sm:$0xff]
    %v123 = vld [vmem:[%s0 + $0x20] sm:$0xff]
    %v124 = vld [vmem:[%s0 + $0x28] sm:$0xff]
    %v125 = vld [vmem:[%s0 + $0x30] sm:$0xff]
    %v126 = vld [vmem:[#allocation2] sm:$0xff]
    %v127 = vld [vmem:[#allocation2 + $0x8] sm:$0xff]
    %v128 = vld [vmem:[#allocation2 + $0x10] sm:$0xff]
    %v129 = vld [vmem:[#allocation2 + $0x18] sm:$0xff]
    %v130 = vld [vmem:[#allocation2 + $0x20] sm:$0xff]
    %v131 = vld [vmem:[#allocation2 + $0x28] sm:$0xff]
    %v132 = vld [vmem:[#allocation2 + $0x30] sm:$0xff]
    %v133 = vld [vmem:[#allocation2 + $0x38] sm:$0xff]
    %v134 = vld [vmem:[#allocation2 + $0x40] sm:$0xff]
    %v135 = vld [vmem:[#allocation2 + $0x48] sm:$0xff]
    %v136 = vld [vmem:[#allocation2 + $0x50] sm:$0xff]
    %v137 = vld [vmem:[#allocation2 + $0x58] sm:$0xff]
    %v138 = vld [vmem:[#allocation2 + $0x60] sm:$0xff]
    %v139 = vld [vmem:[#allocation2 + $0x68] sm:$0xff]
    %v140 = vld [vmem:[#allocation2 + $0x70] sm:$0xff]
    %v141 = vld [vmem:[#allocation2 + $0x78] sm:$0xff]
    %v142 = vld [vmem:[#allocation2 + $0x80] sm:$0xff]
    %v143 = vld [vmem:[#allocation2 + $0x88] sm:$0xff]
    %v144 = vld [vmem:[#allocation2 + $0x90] sm:$0xff]
    %v145 = vld [vmem:[#allocation2 + $0x98] sm:$0xff]
    %v146 = vld [vmem:[#allocation2 + $0xa0] sm:$0xff]
    %v147 = vld [vmem:[#allocation2 + $0xa8] sm:$0xff]
    %v148 = vld [vmem:[#allocation2 + $0xb0] sm:$0xff]
    %v149 = vld [vmem:[#allocation2 + $0xb8] sm:$0xff]
    %v150 = vld [vmem:[#allocation2 + $0xc0] sm:$0xff]
    %v151 = vld [vmem:[#allocation2 + $0xc8] sm:$0xff]
    %v152 = vld [vmem:[#allocation2 + $0xd0] sm:$0xff]
    %v153 = vld [vmem:[#allocation2 + $0xd8] sm:$0xff]
    %v154 = vld [vmem:[#allocation2 + $0xe0] sm:$0xff]
    %v155 = vld [vmem:[#allocation2 + $0xe8] sm:$0xff]
    %v156 = vld [vmem:[#allocation2 + $0xf0] sm:$0xff]
    %v157 = vld [vmem:[#allocation2 + $0xf8] sm:$0xff]
    %v158 = vld [vmem:[#allocation2 + $0x100] sm:$0xff]
    %v159 = vld [vmem:[#allocation2 + $0x108] sm:$0xff]
    %v160 = vld [vmem:[#allocation2 + $0x110] sm:$0xff]
    %v161 = vld [vmem:[#allocation2 + $0x118] sm:$0xff]
    %v162 = vld [vmem:[#allocation2 + $0x120] sm:$0xff]
    %v163 = vld [vmem:[#allocation2 + $0x128] sm:$0xff]
    %v164 = vld [vmem:[#allocation2 + $0x130] sm:$0xff]
    %v165 = vld [vmem:[#allocation2 + $0x138] sm:$0xff]
    %v166 = vld [vmem:[#allocation2 + $0x140] sm:$0xff]
    %v167 = vld [vmem:[#allocation2 + $0x148] sm:$0xff]
    %v168 = vld [vmem:[#allocation2 + $0x150] sm:$0xff]
    %v169 = vld [vmem:[#allocation2 + $0x158] sm:$0xff]
    %v170 = vld [vmem:[#allocation2 + $0x160] sm:$0xff]
    %v171 = vld [vmem:[#allocation2 + $0x168] sm:$0xff]
    %v172 = vld [vmem:[#allocation2 + $0x170] sm:$0xff]
    %v173 = vld [vmem:[#allocation2 + $0x178] sm:$0xff]
    %v174 = vld [vmem:[#allocation2 + $0x180] sm:$0xff]
    %v175 = vld [vmem:[#allocation2 + $0x188] sm:$0xff]
    %v176 = vld [vmem:[#allocation2 + $0x190] sm:$0xff]
    %v177 = vld [vmem:[#allocation2 + $0x198] sm:$0xff]
    %v178 = vld [vmem:[#allocation2 + $0x1a0] sm:$0xff]
    %v179 = vld [vmem:[#allocation2 + $0x1a8] sm:$0xff]
    %v180 = vld [vmem:[#allocation2 + $0x1b0] sm:$0xff]
    %v181 = vld [vmem:[#allocation2 + $0x1b8] sm:$0xff]
    %v182 = vld [vmem:[#allocation2 + $0x1c0] sm:$0xff]
    %v183 = vld [vmem:[#allocation2 + $0x1c8] sm:$0xff]
    %v184 = vld [vmem:[#allocation2 + $0x1d0] sm:$0xff]
    %v185 = vld [vmem:[#allocation2 + $0x1d8] sm:$0xff]
    %v186 = vld [vmem:[#allocation2 + $0x1e0] sm:$0xff]
    %v187 = vld [vmem:[#allocation2 + $0x1e8] sm:$0xff]
    %v188 = vld [vmem:[#allocation2 + $0x1f0] sm:$0xff]
    %v189 = vld [vmem:[#allocation2 + $0x1f8] sm:$0xff]
    %v190 = vld [vmem:[#allocation2 + $0x200] sm:$0xff]
    %v191 = vld [vmem:[#allocation2 + $0x208] sm:$0xff]
    %v192 = vld [vmem:[#allocation2 + $0x210] sm:$0xff]
    %v193 = vld [vmem:[#allocation2 + $0x218] sm:$0xff]
    %v194 = vld [vmem:[#allocation2 + $0x220] sm:$0xff]
    %v195 = vld [vmem:[#allocation2 + $0x228] sm:$0xff]
    %v196 = vld [vmem:[#allocation2 + $0x230] sm:$0xff]
    %v197 = vld [vmem:[#allocation2 + $0x238] sm:$0xff]
    %v198 = vld [vmem:[#allocation2 + $0x240] sm:$0xff]
    %v199 = vld [vmem:[#allocation2 + $0x248] sm:$0xff]
    %v200 = vld [vmem:[#allocation2 + $0x250] sm:$0xff]
    %v201 = vld [vmem:[#allocation2 + $0x258] sm:$0xff]
    %v202 = vld [vmem:[#allocation2 + $0x260] sm:$0xff]
    %v203 = vld [vmem:[#allocation2 + $0x268] sm:$0xff]
    %v204 = vld [vmem:[#allocation2 + $0x270] sm:$0xff]
    %v205 = vld [vmem:[#allocation2 + $0x278] sm:$0xff]
    %v206 = vld [vmem:[#allocation2 + $0x280] sm:$0xff]
    %v207 = vld [vmem:[#allocation2 + $0x288] sm:$0xff]
    %v208 = vld [vmem:[#allocation2 + $0x290] sm:$0xff]
    %v209 = vld [vmem:[#allocation2 + $0x298] sm:$0xff]
    %v210 = vld [vmem:[#allocation6] sm:$0xff]
    %v211 = vld [vmem:[#allocation6 + $0x8] sm:$0xff]
    %v212 = vld [vmem:[#allocation6 + $0x10] sm:$0xff]
    %v213 = vld [vmem:[#allocation6 + $0x18] sm:$0xff]
    %v214 = vld [vmem:[#allocation6 + $0x20] sm:$0xff]
    %v215 = vld [vmem:[#allocation6 + $0x28] sm:$0xff]
    %v216 = vld [vmem:[#allocation6 + $0x30] sm:$0xff]
    %v217 = vld [vmem:[#allocation6 + $0x38] sm:$0xff]
    %v218 = vld [vmem:[#allocation6 + $0x40] sm:$0xff]
    %v219 = vld [vmem:[#allocation6 + $0x48] sm:$0xff]
    %v220 = vld [vmem:[#allocation6 + $0x50] sm:$0xff]
    %v221 = vld [vmem:[#allocation6 + $0x58] sm:$0xff]
    %v222 = vld [vmem:[#allocation6 + $0x60] sm:$0xff]
    %v223 = vld [vmem:[#allocation6 + $0x68] sm:$0xff]
    %v224 = vld [vmem:[#allocation6 + $0x70] sm:$0xff]
    %v225 = vld [vmem:[#allocation6 + $0x78] sm:$0xff]
    %v226 = vld [vmem:[#allocation6 + $0x80] sm:$0xff]
    %v227 = vld [vmem:[#allocation6 + $0x88] sm:$0xff]
    %v228 = vld [vmem:[#allocation6 + $0x90] sm:$0xff]
    %v229 = vld [vmem:[#allocation6 + $0x98] sm:$0xff]
    %v230 = vld [vmem:[#allocation6 + $0xa0] sm:$0xff]
    %v231 = vld [vmem:[#allocation6 + $0xa8] sm:$0xff]
    %v232 = vld [vmem:[#allocation6 + $0xb0] sm:$0xff]
    %v233 = vld [vmem:[#allocation6 + $0xb8] sm:$0xff]
    %v234 = vld [vmem:[#allocation6 + $0xc0] sm:$0xff]
    %v235 = vld [vmem:[#allocation6 + $0xc8] sm:$0xff]
    %v236 = vld [vmem:[#allocation6 + $0xd0] sm:$0xff]
    %v237 = vld [vmem:[#allocation6 + $0xd8] sm:$0xff]
    %v238 = vld [vmem:[#allocation6 + $0xe0] sm:$0xff]
    %v239 = vld [vmem:[#allocation6 + $0xe8] sm:$0xff]
    %v240 = vld [vmem:[#allocation6 + $0xf0] sm:$0xff]
    %v241 = vld [vmem:[#allocation6 + $0xf8] sm:$0xff]
    %v242 = vld [vmem:[#allocation6 + $0x100] sm:$0xff]
    %v243 = vld [vmem:[#allocation6 + $0x108] sm:$0xff]
    %v244 = vld [vmem:[#allocation6 + $0x110] sm:$0xff]
    %v245 = vld [vmem:[#allocation6 + $0x118] sm:$0xff]
    %v246 = vld [vmem:[#allocation6 + $0x120] sm:$0xff]
    %v247 = vld [vmem:[#allocation6 + $0x128] sm:$0xff]
    %v248 = vld [vmem:[#allocation6 + $0x130] sm:$0xff]
    %v249 = vld [vmem:[#allocation6 + $0x138] sm:$0xff]
    %v250 = vld [vmem:[#allocation6 + $0x140] sm:$0xff]
    %v251 = vld [vmem:[#allocation6 + $0x148] sm:$0xff]
    %v252 = vld [vmem:[#allocation6 + $0x150] sm:$0xff]
    %v253 = vld [vmem:[#allocation6 + $0x158] sm:$0xff]
    %v254 = vld [vmem:[#allocation6 + $0x160] sm:$0xff]
    %v255 = vld [vmem:[#allocation6 + $0x168] sm:$0xff]
    %v256 = vld [vmem:[#allocation6 + $0x170] sm:$0xff]
    %v257 = vld [vmem:[#allocation6 + $0x178] sm:$0xff]
    %v258 = vld [vmem:[#allocation6 + $0x180] sm:$0xff]
    %v259 = vld [vmem:[#allocation6 + $0x188] sm:$0xff]
    %v260 = vld [vmem:[#allocation6 + $0x190] sm:$0xff]
    %v261 = vld [vmem:[#allocation6 + $0x198] sm:$0xff]
    %v262 = vld [vmem:[#allocation6 + $0x1a0] sm:$0xff]
    %v263 = vld [vmem:[#allocation6 + $0x1a8] sm:$0xff]
    %v264 = vld [vmem:[#allocation6 + $0x1b0] sm:$0xff]
    %v265 = vld [vmem:[#allocation6 + $0x1b8] sm:$0xff]
    %v266 = vld [vmem:[#allocation6 + $0x1c0] sm:$0xff]
    %v267 = vld [vmem:[#allocation6 + $0x1c8] sm:$0xff]
    %v268 = vld [vmem:[#allocation6 + $0x1d0] sm:$0xff]
    %v269 = vld [vmem:[#allocation6 + $0x1d8] sm:$0xff]
    %v270 = vld [vmem:[#allocation6 + $0x1e0] sm:$0xff]
    %v271 = vld [vmem:[#allocation6 + $0x1e8] sm:$0xff]
    %v272 = vld [vmem:[#allocation6 + $0x1f0] sm:$0xff]
    %v273 = vld [vmem:[#allocation6 + $0x1f8] sm:$0xff]
    %v274 = vld [vmem:[#allocation6 + $0x200] sm:$0xff]
    %v275 = vld [vmem:[#allocation6 + $0x208] sm:$0xff]
    %v276 = vld [vmem:[#allocation6 + $0x210] sm:$0xff]
    %v277 = vld [vmem:[#allocation6 + $0x218] sm:$0xff]
    %v278 = vld [vmem:[#allocation6 + $0x220] sm:$0xff]
    %v279 = vld [vmem:[#allocation6 + $0x228] sm:$0xff]
    %v280 = vld [vmem:[#allocation6 + $0x230] sm:$0xff]
    %v281 = vld [vmem:[#allocation6 + $0x238] sm:$0xff]
    %v282 = vld [vmem:[#allocation6 + $0x240] sm:$0xff]
    %v283 = vld [vmem:[#allocation6 + $0x248] sm:$0xff]
    %v284 = vld [vmem:[#allocation6 + $0x250] sm:$0xff]
    %v285 = vld [vmem:[#allocation6 + $0x258] sm:$0xff]
    %v286 = vld [vmem:[#allocation6 + $0x260] sm:$0xff]
    %v287 = vld [vmem:[#allocation6 + $0x268] sm:$0xff]
    %v288 = vld [vmem:[#allocation6 + $0x270] sm:$0xff]
    %v289 = vld [vmem:[#allocation6 + $0x278] sm:$0xff]
    %v290 = vld [vmem:[#allocation6 + $0x280] sm:$0xff]
    %v291 = vld [vmem:[#allocation6 + $0x288] sm:$0xff]
    %v292 = vld [vmem:[#allocation6 + $0x290] sm:$0xff]
    %v293 = vld [vmem:[#allocation6 + $0x298] sm:$0xff]
    %v294 = vld [vmem:[#allocation6 + $0x2a0] sm:$0xff]
    %v295 = vld [vmem:[#allocation6 + $0x2a8] sm:$0xff]
    %v296 = vld [vmem:[#allocation6 + $0x2b0] sm:$0xff]
    %v297 = vld [vmem:[#allocation6 + $0x2b8] sm:$0xff]
    %v298 = vld [vmem:[#allocation6 + $0x2c0] sm:$0xff]
    %v299 = vld [vmem:[#allocation6 + $0x2c8] sm:$0xff]
    %v300 = vld [vmem:[#allocation6 + $0x2d0] sm:$0xff]
    %v301 = vld [vmem:[#allocation6 + $0x2d8] sm:$0xff]
    %v302 = vld [vmem:[#allocation6 + $0x2e0] sm:$0xff]
    %v303 = vld [vmem:[#allocation6 + $0x2e8] sm:$0xff]
    %v304 = vld [vmem:[#allocation6 + $0x2f0] sm:$0xff]
    %v305 = vld [vmem:[#allocation6 + $0x2f8] sm:$0xff]
    %v306 = vld [vmem:[#allocation6 + $0x300] sm:$0xff]
    %v307 = vld [vmem:[#allocation6 + $0x308] sm:$0xff]
    %v308 = vld [vmem:[#allocation6 + $0x310] sm:$0xff]
    %v309 = vld [vmem:[#allocation6 + $0x318] sm:$0xff]
    %v310 = vld [vmem:[#allocation6 + $0x320] sm:$0xff]
    %v311 = vld [vmem:[#allocation6 + $0x328] sm:$0xff]
    %v312 = vld [vmem:[#allocation6 + $0x330] sm:$0xff]
    %v313 = vld [vmem:[#allocation6 + $0x338] sm:$0xff]
    %v314 = vld [vmem:[#allocation6 + $0x340] sm:$0xff]
    %v315 = vld [vmem:[#allocation6 + $0x348] sm:$0xff]
    %v316 = vld [vmem:[#allocation6 + $0x350] sm:$0xff]
    %v317 = vld [vmem:[#allocation6 + $0x358] sm:$0xff]
    %v318 = vld [vmem:[#allocation6 + $0x360] sm:$0xff]
    %v319 = vld [vmem:[#allocation6 + $0x368] sm:$0xff]
    %v320 = vld [vmem:[#allocation6 + $0x370] sm:$0xff]
    %v321 = vld [vmem:[#allocation6 + $0x378] sm:$0xff]
    %v322 = vld [vmem:[#allocation6 + $0x380] sm:$0xff]
    %v323 = vld [vmem:[#allocation6 + $0x388] sm:$0xff]
    %v324 = vld [vmem:[#allocation6 + $0x390] sm:$0xff]
    %v325 = vld [vmem:[#allocation6 + $0x398] sm:$0xff]
    %v326 = vld [vmem:[#allocation6 + $0x3a0] sm:$0xff]
    %v327 = vld [vmem:[#allocation6 + $0x3a8] sm:$0xff]
    %v328 = vld [vmem:[#allocation6 + $0x3b0] sm:$0xff]
    %v329 = vld [vmem:[#allocation6 + $0x3b8] sm:$0xff]
    %v330 = vld [vmem:[#allocation6 + $0x3c0] sm:$0xff]
    %v331 = vld [vmem:[#allocation6 + $0x3c8] sm:$0xff]
    %v332 = vld [vmem:[#allocation6 + $0x3d0] sm:$0xff]
    %v333 = vld [vmem:[#allocation6 + $0x3d8] sm:$0xff]
    %v334 = vld [vmem:[#allocation6 + $0x3e0] sm:$0xff]
    %v335 = vld [vmem:[#allocation6 + $0x3e8] sm:$0xff]
    %v336 = vld [vmem:[#allocation6 + $0x3f0] sm:$0xff]
    %v337 = vld [vmem:[#allocation6 + $0x3f8] sm:$0xff]
    %v338 = vld [vmem:[#allocation6 + $0x400] sm:$0xff]
    %v339 = vld [vmem:[#allocation6 + $0x408] sm:$0xff]
    %v340 = vld [vmem:[#allocation6 + $0x410] sm:$0xff]
    %v341 = vld [vmem:[#allocation6 + $0x418] sm:$0xff]
    %v342 = vld [vmem:[#allocation6 + $0x420] sm:$0xff]
    %v343 = vld [vmem:[#allocation6 + $0x428] sm:$0xff]
    %v344 = vld [vmem:[#allocation6 + $0x430] sm:$0xff]
    %v345 = vld [vmem:[#allocation6 + $0x438] sm:$0xff]
    %v346 = vld [vmem:[#allocation6 + $0x440] sm:$0xff]
    %v347 = vld [vmem:[#allocation6 + $0x448] sm:$0xff]
    %v348 = vld [vmem:[#allocation6 + $0x450] sm:$0xff]
    %v349 = vld [vmem:[#allocation6 + $0x458] sm:$0xff]
    %v350 = vld [vmem:[#allocation6 + $0x460] sm:$0xff]
    %v351 = vld [vmem:[#allocation6 + $0x468] sm:$0xff]
    %v352 = vld [vmem:[#allocation6 + $0x470] sm:$0xff]
    %v353 = vld [vmem:[#allocation6 + $0x478] sm:$0xff]
    %v354 = vld [vmem:[#allocation6 + $0x480] sm:$0xff]
    %v355 = vld [vmem:[#allocation6 + $0x488] sm:$0xff]
    %v356 = vld [vmem:[#allocation6 + $0x490] sm:$0xff]
    %v357 = vld [vmem:[#allocation6 + $0x498] sm:$0xff]
    %v358 = vld [vmem:[#allocation6 + $0x4a0] sm:$0xff]
    %v359 = vld [vmem:[#allocation6 + $0x4a8] sm:$0xff]
    %v360 = vld [vmem:[#allocation6 + $0x4b0] sm:$0xff]
    %v361 = vld [vmem:[#allocation6 + $0x4b8] sm:$0xff]
    %v362 = vld [vmem:[#allocation6 + $0x4c0] sm:$0xff]
    %v363 = vld [vmem:[#allocation6 + $0x4c8] sm:$0xff]
    %v364 = vld [vmem:[#allocation6 + $0x4d0] sm:$0xff]
    %v365 = vld [vmem:[#allocation6 + $0x4d8] sm:$0xff]
    %v366 = vld [vmem:[#allocation6 + $0x4e0] sm:$0xff]
    %v367 = vld [vmem:[#allocation6 + $0x4e8] sm:$0xff]
    %v368 = vld [vmem:[#allocation6 + $0x4f0] sm:$0xff]
    %v369 = vld [vmem:[#allocation6 + $0x4f8] sm:$0xff]
    %v370 = vld [vmem:[#allocation6 + $0x500] sm:$0xff]
    %v371 = vld [vmem:[#allocation6 + $0x508] sm:$0xff]
    %v372 = vld [vmem:[#allocation6 + $0x510] sm:$0xff]
    %v373 = vld [vmem:[#allocation6 + $0x518] sm:$0xff]
    %v374 = vld [vmem:[#allocation6 + $0x520] sm:$0xff]
    %v375 = vld [vmem:[#allocation6 + $0x528] sm:$0xff]
    %v376 = vld [vmem:[#allocation6 + $0x530] sm:$0xff]
    %v377 = vld [vmem:[#allocation6 + $0x538] sm:$0xff]
    %v378 = vld [vmem:[#allocation6 + $0x540] sm:$0xff]
    %v379 = vld [vmem:[#allocation6 + $0x548] sm:$0xff]
    %v380 = vld [vmem:[#allocation6 + $0x550] sm:$0xff]
    %v381 = vld [vmem:[#allocation6 + $0x558] sm:$0xff]
    %v382 = vld [vmem:[#allocation6 + $0x560] sm:$0xff]
    %v383 = vld [vmem:[#allocation6 + $0x568] sm:$0xff]
    %v384 = vld [vmem:[#allocation6 + $0x570] sm:$0xff]
    %v385 = vld [vmem:[#allocation6 + $0x578] sm:$0xff]
    %v386 = vld [vmem:[#allocation6 + $0x580] sm:$0xff]
    %v387 = vld [vmem:[#allocation6 + $0x588] sm:$0xff]
    %v388 = vld [vmem:[#allocation6 + $0x590] sm:$0xff]
    %v389 = vld [vmem:[#allocation6 + $0x598] sm:$0xff]
    %v390 = vld [vmem:[#allocation6 + $0x5a0] sm:$0xff]
    %v391 = vld [vmem:[#allocation6 + $0x5a8] sm:$0xff]
    %v392 = vld [vmem:[#allocation6 + $0x5b0] sm:$0xff]
    %v393 = vld [vmem:[#allocation6 + $0x5b8] sm:$0xff]
    %v394 = vld [vmem:[#allocation6 + $0x5c0] sm:$0xff]
    %v395 = vld [vmem:[#allocation6 + $0x5c8] sm:$0xff]
    %v396 = vld [vmem:[#allocation6 + $0x5d0] sm:$0xff]
    %v397 = vld [vmem:[#allocation6 + $0x5d8] sm:$0xff]
    %v398 = vld [vmem:[#allocation6 + $0x5e0] sm:$0xff]
    %v399 = vld [vmem:[#allocation6 + $0x5e8] sm:$0xff]
    %v400 = vld [vmem:[#allocation6 + $0x5f0] sm:$0xff]
    %v401 = vld [vmem:[#allocation6 + $0x5f8] sm:$0xff]
    %v402 = vld [vmem:[#allocation6 + $0x600] sm:$0xff]
    %v403 = vld [vmem:[#allocation6 + $0x608] sm:$0xff]
    %v404 = vld [vmem:[#allocation6 + $0x610] sm:$0xff]
    %v405 = vld [vmem:[#allocation6 + $0x618] sm:$0xff]
    %v406 = vld [vmem:[#allocation6 + $0x620] sm:$0xff]
    %v407 = vld [vmem:[#allocation6 + $0x628] sm:$0xff]
    %v408 = vld [vmem:[#allocation6 + $0x630] sm:$0xff]
    %v409 = vld [vmem:[#allocation6 + $0x638] sm:$0xff]
    %v410 = vld [vmem:[#allocation6 + $0x640] sm:$0xff]
    %v411 = vld [vmem:[#allocation6 + $0x648] sm:$0xff]
    %v412 = vld [vmem:[#allocation6 + $0x650] sm:$0xff]
    %v413 = vld [vmem:[#allocation6 + $0x658] sm:$0xff]
    %v414 = vld [vmem:[#allocation6 + $0x660] sm:$0xff]
    %v415 = vld [vmem:[#allocation6 + $0x668] sm:$0xff]
    %v416 = vld [vmem:[#allocation6 + $0x670] sm:$0xff]
    %v417 = vld [vmem:[#allocation6 + $0x678] sm:$0xff]
    %v418 = vld [vmem:[#allocation6 + $0x680] sm:$0xff]
    %v419 = vld [vmem:[#allocation6 + $0x688] sm:$0xff]
    %v420 = vld [vmem:[#allocation6 + $0x690] sm:$0xff]
    %v421 = vld [vmem:[#allocation6 + $0x698] sm:$0xff]
    %v422 = vld [vmem:[#allocation6 + $0x6a0] sm:$0xff]
    %v423 = vld [vmem:[#allocation6 + $0x6a8] sm:$0xff]
    %v424 = vld [vmem:[#allocation6 + $0x6b0] sm:$0xff]
    %v425 = vld [vmem:[#allocation6 + $0x6b8] sm:$0xff]
    %v426 = vld [vmem:[#allocation6 + $0x6c0] sm:$0xff]
    %v427 = vld [vmem:[#allocation6 + $0x6c8] sm:$0xff]
    %v428 = vld [vmem:[#allocation6 + $0x6d0] sm:$0xff]
    %v429 = vld [vmem:[#allocation6 + $0x6d8] sm:$0xff]
    %v430 = vld [vmem:[#allocation6 + $0x6e0] sm:$0xff]
    %v431 = vld [vmem:[#allocation6 + $0x6e8] sm:$0xff]
    %v432 = vld [vmem:[#allocation6 + $0x6f0] sm:$0xff]
    %v433 = vld [vmem:[#allocation6 + $0x6f8] sm:$0xff]
    %v434 = vld [vmem:[#allocation6 + $0x700] sm:$0xff]
    %v435 = vld [vmem:[#allocation6 + $0x708] sm:$0xff]
    %v436 = vld [vmem:[#allocation6 + $0x710] sm:$0xff]
    %v437 = vld [vmem:[#allocation6 + $0x718] sm:$0xff]
    %v438 = vld [vmem:[#allocation6 + $0x720] sm:$0xff]
    %v439 = vld [vmem:[#allocation6 + $0x728] sm:$0xff]
    %v440 = vld [vmem:[#allocation6 + $0x730] sm:$0xff]
    %v441 = vld [vmem:[#allocation6 + $0x738] sm:$0xff]
    %v442 = vld [vmem:[#allocation6 + $0x740] sm:$0xff]
    %v443 = vld [vmem:[#allocation6 + $0x748] sm:$0xff]
    %v444 = vld [vmem:[#allocation6 + $0x750] sm:$0xff]
    %v445 = vld [vmem:[#allocation6 + $0x758] sm:$0xff]
    %v446 = vld [vmem:[#allocation6 + $0x760] sm:$0xff]
    %v447 = vld [vmem:[#allocation6 + $0x768] sm:$0xff]
    %v448 = vld [vmem:[#allocation6 + $0x770] sm:$0xff]
    %v449 = vld [vmem:[#allocation6 + $0x778] sm:$0xff]
    %v450 = vld [vmem:[#allocation6 + $0x780] sm:$0xff]
    %v451 = vld [vmem:[#allocation6 + $0x788] sm:$0xff]
    %v452 = vld [vmem:[#allocation6 + $0x790] sm:$0xff]
    %v453 = vld [vmem:[#allocation6 + $0x798] sm:$0xff]
    %v454 = vld [vmem:[#allocation6 + $0x7a0] sm:$0xff]
    %v455 = vld [vmem:[#allocation6 + $0x7a8] sm:$0xff]
    %v456 = vld [vmem:[#allocation6 + $0x7b0] sm:$0xff]
    %v457 = vld [vmem:[#allocation6 + $0x7b8] sm:$0xff]
    %v458 = vld [vmem:[#allocation6 + $0x7c0] sm:$0xff]
    %v459 = vld [vmem:[#allocation6 + $0x7c8] sm:$0xff]
    %v460 = vld [vmem:[#allocation6 + $0x7d0] sm:$0xff]
    %v461 = vld [vmem:[#allocation6 + $0x7d8] sm:$0xff]
    %v462 = vld [vmem:[#allocation6 + $0x7e0] sm:$0xff]
    %v463 = vld [vmem:[#allocation6 + $0x7e8] sm:$0xff]
    %v464 = vld [vmem:[#allocation6 + $0x7f0] sm:$0xff]
    %v465 = vld [vmem:[#allocation6 + $0x7f8] sm:$0xff]
    %v466 = vld [vmem:[#allocation6 + $0x800] sm:$0xff]
    %v467 = vld [vmem:[#allocation6 + $0x808] sm:$0xff]
    %v468 = vld [vmem:[#allocation6 + $0x810] sm:$0xff]
    %v469 = vld [vmem:[#allocation6 + $0x818] sm:$0xff]
    %v470 = vld [vmem:[#allocation6 + $0x820] sm:$0xff]
    %v471 = vld [vmem:[#allocation6 + $0x828] sm:$0xff]
    %v472 = vld [vmem:[#allocation6 + $0x830] sm:$0xff]
    %v473 = vld [vmem:[#allocation6 + $0x838] sm:$0xff]
    %v474 = vld [vmem:[#allocation6 + $0x840] sm:$0xff]
    %v475 = vld [vmem:[#allocation6 + $0x848] sm:$0xff]
    %v476 = vld [vmem:[#allocation6 + $0x850] sm:$0xff]
    %v477 = vld [vmem:[#allocation6 + $0x858] sm:$0xff]
    %v478 = vld [vmem:[#allocation6 + $0x860] sm:$0xff]
    %v479 = vld [vmem:[#allocation6 + $0x868] sm:$0xff]
    %v480 = vld [vmem:[#allocation6 + $0x870] sm:$0xff]
    %v481 = vld [vmem:[#allocation6 + $0x878] sm:$0xff]
    %v482 = vld [vmem:[#allocation6 + $0x880] sm:$0xff]
    %v483 = vld [vmem:[#allocation6 + $0x888] sm:$0xff]
    %v484 = vld [vmem:[#allocation6 + $0x890] sm:$0xff]
    %v485 = vld [vmem:[#allocation6 + $0x898] sm:$0xff]
    %v486 = vld [vmem:[#allocation6 + $0x8a0] sm:$0xff]
    %v487 = vld [vmem:[#allocation6 + $0x8a8] sm:$0xff]
    %v488 = vld [vmem:[#allocation6 + $0x8b0] sm:$0xff]
    %v489 = vld [vmem:[#allocation6 + $0x8b8] sm:$0xff]
    %v490 = vld [vmem:[#allocation6 + $0x8c0] sm:$0xff]
    %v491 = vld [vmem:[#allocation6 + $0x8c8] sm:$0xff]
    %v492 = vld [vmem:[#allocation6 + $0x8d0] sm:$0xff]
    %v493 = vld [vmem:[#allocation6 + $0x8d8] sm:$0xff]
    %v494 = vld [vmem:[#allocation6 + $0x8e0] sm:$0xff]
    %v495 = vld [vmem:[#allocation6 + $0x8e8] sm:$0xff]
    %v496 = vld [vmem:[#allocation6 + $0x8f0] sm:$0xff]
    %v497 = vld [vmem:[#allocation6 + $0x8f8] sm:$0xff]
    %v498 = vld [vmem:[#allocation6 + $0x900] sm:$0xff]
    %v499 = vld [vmem:[#allocation6 + $0x908] sm:$0xff]
    %v500 = vld [vmem:[#allocation6 + $0x910] sm:$0xff]
    %v501 = vld [vmem:[#allocation6 + $0x918] sm:$0xff]
    %v502 = vld [vmem:[#allocation6 + $0x920] sm:$0xff]
    %v503 = vld [vmem:[#allocation6 + $0x928] sm:$0xff]
    %v504 = vld [vmem:[#allocation6 + $0x930] sm:$0xff]
    %v505 = vld [vmem:[#allocation6 + $0x938] sm:$0xff]
    %v506 = vld [vmem:[#allocation6 + $0x940] sm:$0xff]
    %v507 = vld [vmem:[#allocation6 + $0x948] sm:$0xff]
    %v508 = vld [vmem:[#allocation6 + $0x950] sm:$0xff]
    %v509 = vld [vmem:[#allocation6 + $0x958] sm:$0xff]
    %v510 = vld [vmem:[#allocation6 + $0x960] sm:$0xff]
    %v511 = vld [vmem:[#allocation6 + $0x968] sm:$0xff]
    %v512 = vld [vmem:[#allocation6 + $0x970] sm:$0xff]
    %v513 = vld [vmem:[#allocation6 + $0x978] sm:$0xff]
    %v514 = vld [vmem:[#allocation6 + $0x980] sm:$0xff]
    %v515 = vld [vmem:[#allocation6 + $0x988] sm:$0xff]
    %v516 = vld [vmem:[#allocation6 + $0x990] sm:$0xff]
    %v517 = vld [vmem:[#allocation6 + $0x998] sm:$0xff]
    %v518 = vld [vmem:[#allocation6 + $0x9a0] sm:$0xff]
    %v519 = vld [vmem:[#allocation6 + $0x9a8] sm:$0xff]
    %v520 = vld [vmem:[#allocation6 + $0x9b0] sm:$0xff]
    %v521 = vld [vmem:[#allocation6 + $0x9b8] sm:$0xff]
    %v522 = vld [vmem:[#allocation6 + $0x9c0] sm:$0xff]
    %v523 = vld [vmem:[#allocation6 + $0x9c8] sm:$0xff]
    %v524 = vld [vmem:[#allocation6 + $0x9d0] sm:$0xff]
    %v525 = vld [vmem:[#allocation6 + $0x9d8] sm:$0xff]
    %v526 = vld [vmem:[#allocation6 + $0x9e0] sm:$0xff]
    %v527 = vld [vmem:[#allocation6 + $0x9e8] sm:$0xff]
    %v528 = vld [vmem:[#allocation6 + $0x9f0] sm:$0xff]
    %v529 = vld [vmem:[#allocation6 + $0x9f8] sm:$0xff]
    %v530 = vld [vmem:[#allocation6 + $0xa00] sm:$0xff]
    %v531 = vld [vmem:[#allocation6 + $0xa08] sm:$0xff]
    %v532 = vld [vmem:[#allocation6 + $0xa10] sm:$0xff]
    %v533 = vld [vmem:[#allocation6 + $0xa18] sm:$0xff]
    %v534 = vld [vmem:[#allocation6 + $0xa20] sm:$0xff]
    %v535 = vld [vmem:[#allocation6 + $0xa28] sm:$0xff]
    %v536 = vld [vmem:[#allocation6 + $0xa30] sm:$0xff]
    %v537 = vld [vmem:[#allocation6 + $0xa38] sm:$0xff]
    %v538 = vld [vmem:[#allocation6 + $0xa40] sm:$0xff]
    %v539 = vld [vmem:[#allocation6 + $0xa48] sm:$0xff]
    %v540 = vld [vmem:[#allocation6 + $0xa50] sm:$0xff]
    %v541 = vld [vmem:[#allocation6 + $0xa58] sm:$0xff]
    %v542 = vld [vmem:[#allocation6 + $0xa60] sm:$0xff]
    %v543 = vld [vmem:[#allocation6 + $0xa68] sm:$0xff]
    %v544 = vld [vmem:[#allocation6 + $0xa70] sm:$0xff]
    %v545 = vld [vmem:[#allocation6 + $0xa78] sm:$0xff]
    %v546 = vld [vmem:[#allocation6 + $0xa80] sm:$0xff]
    %v547 = vld [vmem:[#allocation6 + $0xa88] sm:$0xff]
    %v548 = vld [vmem:[#allocation6 + $0xa90] sm:$0xff]
    %v549 = vld [vmem:[#allocation6 + $0xa98] sm:$0xff]
    %v550 = vld [vmem:[#allocation6 + $0xaa0] sm:$0xff]
    %v551 = vld [vmem:[#allocation6 + $0xaa8] sm:$0xff]
    %v552 = vld [vmem:[#allocation6 + $0xab0] sm:$0xff]
    %v553 = vld [vmem:[#allocation6 + $0xab8] sm:$0xff]
    %v554 = vld [vmem:[#allocation6 + $0xac0] sm:$0xff]
    %v555 = vld [vmem:[#allocation6 + $0xac8] sm:$0xff]
    %v556 = vld [vmem:[#allocation6 + $0xad0] sm:$0xff]
    %v557 = vld [vmem:[#allocation6 + $0xad8] sm:$0xff]
    %v558 = vld [vmem:[#allocation6 + $0xae0] sm:$0xff]
    %v559 = vld [vmem:[#allocation6 + $0xae8] sm:$0xff]
    %v560 = vld [vmem:[#allocation6 + $0xaf0] sm:$0xff]
    %v561 = vld [vmem:[#allocation6 + $0xaf8] sm:$0xff]
    %v562 = vld [vmem:[#allocation6 + $0xb00] sm:$0xff]
    %v563 = vld [vmem:[#allocation6 + $0xb08] sm:$0xff]
    %v564 = vld [vmem:[#allocation6 + $0xb10] sm:$0xff]
    %v565 = vld [vmem:[#allocation6 + $0xb18] sm:$0xff]
    %v566 = vld [vmem:[#allocation6 + $0xb20] sm:$0xff]
    %v567 = vld [vmem:[#allocation6 + $0xb28] sm:$0xff]
    %v568 = vld [vmem:[#allocation6 + $0xb30] sm:$0xff]
    %v569 = vld [vmem:[#allocation6 + $0xb38] sm:$0xff]
    %v570 = vld [vmem:[#allocation6 + $0xb40] sm:$0xff]
    %v571 = vld [vmem:[#allocation6 + $0xb48] sm:$0xff]
    %v572 = vld [vmem:[#allocation6 + $0xb50] sm:$0xff]
    %v573 = vld [vmem:[#allocation6 + $0xb58] sm:$0xff]
    %v574 = vld [vmem:[#allocation6 + $0xb60] sm:$0xff]
    %v575 = vld [vmem:[#allocation6 + $0xb68] sm:$0xff]
    %v576 = vld [vmem:[#allocation6 + $0xb70] sm:$0xff]
    %v577 = vld [vmem:[#allocation6 + $0xb78] sm:$0xff]
    %v578 = vld [vmem:[#allocation6 + $0xb80] sm:$0xff]
    %v579 = vld [vmem:[#allocation6 + $0xb88] sm:$0xff]
    %v580 = vld [vmem:[#allocation6 + $0xb90] sm:$0xff]
    %v581 = vld [vmem:[#allocation6 + $0xb98] sm:$0xff]
    %v582 = vld [vmem:[#allocation6 + $0xba0] sm:$0xff]
    %v583 = vld [vmem:[#allocation6 + $0xba8] sm:$0xff]
    %v584 = vld [vmem:[#allocation6 + $0xbb0] sm:$0xff]
    %v585 = vld [vmem:[#allocation6 + $0xbb8] sm:$0xff]
    %v586 = vld [vmem:[#allocation6 + $0xbc0] sm:$0xff]
    %v587 = vld [vmem:[#allocation6 + $0xbc8] sm:$0xff]
    %v588 = vld [vmem:[#allocation6 + $0xbd0] sm:$0xff]
    %v589 = vld [vmem:[#allocation6 + $0xbd8] sm:$0xff]
    %v590 = vld [vmem:[#allocation6 + $0xbe0] sm:$0xff]
    %v591 = vld [vmem:[#allocation6 + $0xbe8] sm:$0xff]
    %v592 = vld [vmem:[#allocation6 + $0xbf0] sm:$0xff]
    %v593 = vld [vmem:[#allocation6 + $0xbf8] sm:$0xff]
    %v594 = vld [vmem:[#allocation6 + $0xc00] sm:$0xff]
    %v595 = vld [vmem:[#allocation6 + $0xc08] sm:$0xff]
    %v596 = vld [vmem:[#allocation6 + $0xc10] sm:$0xff]
    %v597 = vld [vmem:[#allocation6 + $0xc18] sm:$0xff]
    %v598 = vld [vmem:[#allocation6 + $0xc20] sm:$0xff]
    %v599 = vld [vmem:[#allocation6 + $0xc28] sm:$0xff]
    %v600 = vld [vmem:[#allocation6 + $0xc30] sm:$0xff]
    %v601 = vld [vmem:[#allocation6 + $0xc38] sm:$0xff]
    %v602 = vld [vmem:[#allocation6 + $0xc40] sm:$0xff]
    %v603 = vld [vmem:[#allocation6 + $0xc48] sm:$0xff]
    %v604 = vld [vmem:[#allocation6 + $0xc50] sm:$0xff]
    %v605 = vld [vmem:[#allocation6 + $0xc58] sm:$0xff]
    %v606 = vld [vmem:[#allocation6 + $0xc60] sm:$0xff]
    %v607 = vld [vmem:[#allocation6 + $0xc68] sm:$0xff]
    %v608 = vld [vmem:[#allocation6 + $0xc70] sm:$0xff]
    %v609 = vld [vmem:[#allocation6 + $0xc78] sm:$0xff]
    %v610 = vld [vmem:[#allocation6 + $0xc80] sm:$0xff]
    %v611 = vld [vmem:[#allocation6 + $0xc88] sm:$0xff]
    %v612 = vld [vmem:[#allocation6 + $0xc90] sm:$0xff]
    %v613 = vld [vmem:[#allocation6 + $0xc98] sm:$0xff]
    %v614 = vld [vmem:[#allocation6 + $0xca0] sm:$0xff]
    %v615 = vld [vmem:[#allocation6 + $0xca8] sm:$0xff]
    %v616 = vld [vmem:[#allocation6 + $0xcb0] sm:$0xff]
    %v617 = vld [vmem:[#allocation6 + $0xcb8] sm:$0xff]
    %v618 = vld [vmem:[#allocation6 + $0xcc0] sm:$0xff]
    %v619 = vld [vmem:[#allocation6 + $0xcc8] sm:$0xff]
    %v620 = vld [vmem:[#allocation6 + $0xcd0] sm:$0xff]
    %v621 = vld [vmem:[#allocation6 + $0xcd8] sm:$0xff]
    %v622 = vld [vmem:[#allocation6 + $0xce0] sm:$0xff]
    %v623 = vld [vmem:[#allocation6 + $0xce8] sm:$0xff]
    %v624 = vld [vmem:[#allocation6 + $0xcf0] sm:$0xff]
    %v625 = vld [vmem:[#allocation6 + $0xcf8] sm:$0xff]
    %v626 = vld [vmem:[#allocation6 + $0xd00] sm:$0xff]
    %v627 = vld [vmem:[#allocation6 + $0xd08] sm:$0xff]
    %v628 = vld [vmem:[#allocation6 + $0xd10] sm:$0xff]
    %v629 = vld [vmem:[#allocation6 + $0xd18] sm:$0xff]
    %v630 = vld [vmem:[#allocation6 + $0xd20] sm:$0xff]
    %v631 = vld [vmem:[#allocation6 + $0xd28] sm:$0xff]
    %v632 = vld [vmem:[#allocation6 + $0xd30] sm:$0xff]
    %v633 = vld [vmem:[#allocation6 + $0xd38] sm:$0xff]
    %v634 = vld [vmem:[#allocation6 + $0xd40] sm:$0xff]
    %v635 = vld [vmem:[#allocation6 + $0xd48] sm:$0xff]
    %v636 = vld [vmem:[#allocation6 + $0xd50] sm:$0xff]
    %v637 = vld [vmem:[#allocation6 + $0xd58] sm:$0xff]
    %v638 = vld [vmem:[#allocation6 + $0xd60] sm:$0xff]
    %v639 = vld [vmem:[#allocation6 + $0xd68] sm:$0xff]
    %v640 = vld [vmem:[#allocation6 + $0xd70] sm:$0xff]
    %v641 = vld [vmem:[#allocation6 + $0xd78] sm:$0xff]
    %v642 = vld [vmem:[#allocation6 + $0xd80] sm:$0xff]
    %v643 = vld [vmem:[#allocation6 + $0xd88] sm:$0xff]
    %v644 = vld [vmem:[#allocation6 + $0xd90] sm:$0xff]
    %v645 = vld [vmem:[#allocation6 + $0xd98] sm:$0xff]
    %v646 = vld [vmem:[#allocation6 + $0xda0] sm:$0xff]
    %v647 = vld [vmem:[#allocation6 + $0xda8] sm:$0xff]
    %v648 = vld [vmem:[#allocation6 + $0xdb0] sm:$0xff]
    %v649 = vld [vmem:[#allocation6 + $0xdb8] sm:$0xff]
    %v650 = vld [vmem:[#allocation6 + $0xdc0] sm:$0xff]
    %v651 = vld [vmem:[#allocation6 + $0xdc8] sm:$0xff]
    %v652 = vld [vmem:[#allocation6 + $0xdd0] sm:$0xff]
    %v653 = vld [vmem:[#allocation6 + $0xdd8] sm:$0xff]
    %v654 = vld [vmem:[#allocation6 + $0xde0] sm:$0xff]
    %v655 = vld [vmem:[#allocation6 + $0xde8] sm:$0xff]
    %v656 = vld [vmem:[#allocation6 + $0xdf0] sm:$0xff]
    %v657 = vld [vmem:[#allocation6 + $0xdf8] sm:$0xff]
    %v658 = vld [vmem:[#allocation6 + $0xe00] sm:$0xff]
    %v659 = vld [vmem:[#allocation6 + $0xe08] sm:$0xff]
    %v660 = vld [vmem:[#allocation6 + $0xe10] sm:$0xff]
    %v661 = vld [vmem:[#allocation6 + $0xe18] sm:$0xff]
    %v662 = vld [vmem:[#allocation6 + $0xe20] sm:$0xff]
    %v663 = vld [vmem:[#allocation6 + $0xe28] sm:$0xff]
    %v664 = vld [vmem:[#allocation6 + $0xe30] sm:$0xff]
    %v665 = vld [vmem:[#allocation6 + $0xe38] sm:$0xff]
    %v666 = vld [vmem:[#allocation6 + $0xe40] sm:$0xff]
    %v667 = vld [vmem:[#allocation6 + $0xe48] sm:$0xff]
    %v668 = vld [vmem:[#allocation6 + $0xe50] sm:$0xff]
    %v669 = vld [vmem:[#allocation6 + $0xe58] sm:$0xff]
    %v670 = vld [vmem:[#allocation6 + $0xe60] sm:$0xff]
    %v671 = vld [vmem:[#allocation6 + $0xe68] sm:$0xff]
    %v672 = vld [vmem:[#allocation6 + $0xe70] sm:$0xff]
    %v673 = vld [vmem:[#allocation6 + $0xe78] sm:$0xff]
    %v674 = vld [vmem:[#allocation6 + $0xe80] sm:$0xff]
    %v675 = vld [vmem:[#allocation6 + $0xe88] sm:$0xff]
    %v676 = vld [vmem:[#allocation6 + $0xe90] sm:$0xff]
    %v677 = vld [vmem:[#allocation6 + $0xe98] sm:$0xff]
    %v678 = vld [vmem:[#allocation6 + $0xea0] sm:$0xff]
    %v679 = vld [vmem:[#allocation6 + $0xea8] sm:$0xff]
    %v680 = vld [vmem:[#allocation6 + $0xeb0] sm:$0xff]
    %v681 = vld [vmem:[#allocation6 + $0xeb8] sm:$0xff]
    %v682 = vld [vmem:[#allocation6 + $0xec0] sm:$0xff]
    %v683 = vld [vmem:[#allocation6 + $0xec8] sm:$0xff]
    %v684 = vld [vmem:[#allocation6 + $0xed0] sm:$0xff]
    %v685 = vld [vmem:[#allocation6 + $0xed8] sm:$0xff]
    %v686 = vld [vmem:[#allocation6 + $0xee0] sm:$0xff]
    %v687 = vld [vmem:[#allocation6 + $0xee8] sm:$0xff]
    %v688 = vld [vmem:[#allocation6 + $0xef0] sm:$0xff]
    %v689 = vld [vmem:[#allocation6 + $0xef8] sm:$0xff]
    %v690 = vld [vmem:[#allocation6 + $0xf00] sm:$0xff]
    %v691 = vld [vmem:[#allocation6 + $0xf08] sm:$0xff]
    %v692 = vld [vmem:[#allocation6 + $0xf10] sm:$0xff]
    %v693 = vld [vmem:[#allocation6 + $0xf18] sm:$0xff]
    %v694 = vld [vmem:[#allocation6 + $0xf20] sm:$0xff]
    %v695 = vld [vmem:[#allocation6 + $0xf28] sm:$0xff]
    %v696 = vld [vmem:[#allocation6 + $0xf30] sm:$0xff]
    %v697 = vld [vmem:[#allocation6 + $0xf38] sm:$0xff]
    %v698 = vld [vmem:[#allocation6 + $0xf40] sm:$0xff]
    %v699 = vld [vmem:[#allocation6 + $0xf48] sm:$0xff]
    %v700 = vld [vmem:[#allocation6 + $0xf50] sm:$0xff]
    %v701 = vld [vmem:[#allocation6 + $0xf58] sm:$0xff]
    %v702 = vld [vmem:[#allocation6 + $0xf60] sm:$0xff]
    %v703 = vld [vmem:[#allocation6 + $0xf68] sm:$0xff]
    %v704 = vld [vmem:[#allocation6 + $0xf70] sm:$0xff]
    %v705 = vld [vmem:[#allocation6 + $0xf78] sm:$0xff]
    %v706 = vld [vmem:[#allocation6 + $0xf80] sm:$0xff]
    %v707 = vld [vmem:[#allocation6 + $0xf88] sm:$0xff]
    %v708 = vld [vmem:[#allocation6 + $0xf90] sm:$0xff]
    %v709 = vld [vmem:[#allocation6 + $0xf98] sm:$0xff]
    %v710 = vld [vmem:[#allocation6 + $0xfa0] sm:$0xff]
    %v711 = vld [vmem:[#allocation6 + $0xfa8] sm:$0xff]
    %v712 = vld [vmem:[#allocation6 + $0xfb0] sm:$0xff]
    %v713 = vld [vmem:[#allocation6 + $0xfb8] sm:$0xff]
    %v714 = vld [vmem:[#allocation6 + $0xfc0] sm:$0xff]
    %v715 = vld [vmem:[#allocation6 + $0xfc8] sm:$0xff]
    %v716 = vld [vmem:[#allocation6 + $0xfd0] sm:$0xff]
    %v717 = vld [vmem:[#allocation6 + $0xfd8] sm:$0xff]
    %v718 = vld [vmem:[#allocation6 + $0xfe0] sm:$0xff]
    %v719 = vld [vmem:[#allocation6 + $0xfe8] sm:$0xff]
    %v720 = vld [vmem:[#allocation6 + $0xff0] sm:$0xff]
    %v721 = vld [vmem:[#allocation6 + $0xff8] sm:$0xff]
    %v722 = vld [vmem:[#allocation6 + $0x1000] sm:$0xff]
    %v723 = vld [vmem:[#allocation6 + $0x1008] sm:$0xff]
    %v724 = vld [vmem:[#allocation6 + $0x1010] sm:$0xff]
    %v725 = vld [vmem:[#allocation6 + $0x1018] sm:$0xff]
    %v726 = vld [vmem:[#allocation6 + $0x1020] sm:$0xff]
    %v727 = vld [vmem:[#allocation6 + $0x1028] sm:$0xff]
    %v728 = vld [vmem:[#allocation6 + $0x1030] sm:$0xff]
    %v729 = vld [vmem:[#allocation6 + $0x1038] sm:$0xff]
    %v730 = vld [vmem:[#allocation6 + $0x1040] sm:$0xff]
    %v731 = vld [vmem:[#allocation6 + $0x1048] sm:$0xff]
    %v732 = vld [vmem:[#allocation6 + $0x1050] sm:$0xff]
    %v733 = vld [vmem:[#allocation6 + $0x1058] sm:$0xff]
    %v734 = vld [vmem:[#allocation6 + $0x1060] sm:$0xff]
    %v735 = vld [vmem:[#allocation6 + $0x1068] sm:$0xff]
    %v736 = vld [vmem:[#allocation6 + $0x1070] sm:$0xff]
    %v737 = vld [vmem:[#allocation6 + $0x1078] sm:$0xff]
    %v738 = vld [vmem:[#allocation6 + $0x1080] sm:$0xff]
    %v739 = vld [vmem:[#allocation6 + $0x1088] sm:$0xff]
    %v740 = vld [vmem:[#allocation6 + $0x1090] sm:$0xff]
    %v741 = vld [vmem:[#allocation6 + $0x1098] sm:$0xff]
    %v742 = vld [vmem:[#allocation6 + $0x10a0] sm:$0xff]
    %v743 = vld [vmem:[#allocation6 + $0x10a8] sm:$0xff]
    %v744 = vld [vmem:[#allocation6 + $0x10b0] sm:$0xff]
    %v745 = vld [vmem:[#allocation6 + $0x10b8] sm:$0xff]
    %v746 = vld [vmem:[#allocation6 + $0x10c0] sm:$0xff]
    %v747 = vld [vmem:[#allocation6 + $0x10c8] sm:$0xff]
    %v748 = vld [vmem:[#allocation6 + $0x10d0] sm:$0xff]
    %v749 = vld [vmem:[#allocation6 + $0x10d8] sm:$0xff]
    %v750 = vld [vmem:[#allocation6 + $0x10e0] sm:$0xff]
    %v751 = vld [vmem:[#allocation6 + $0x10e8] sm:$0xff]
    %v752 = vld [vmem:[#allocation6 + $0x10f0] sm:$0xff]
    %v753 = vld [vmem:[#allocation6 + $0x10f8] sm:$0xff]
    %v754 = vld [vmem:[#allocation6 + $0x1100] sm:$0xff]
    %v755 = vld [vmem:[#allocation6 + $0x1108] sm:$0xff]
    %v756 = vld [vmem:[#allocation6 + $0x1110] sm:$0xff]
    %v757 = vld [vmem:[#allocation6 + $0x1118] sm:$0xff]
    %v758 = vld [vmem:[#allocation6 + $0x1120] sm:$0xff]
    %v759 = vld [vmem:[#allocation6 + $0x1128] sm:$0xff]
    %v760 = vld [vmem:[#allocation6 + $0x1130] sm:$0xff]
    %v761 = vld [vmem:[#allocation6 + $0x1138] sm:$0xff]
    %v762 = vld [vmem:[#allocation6 + $0x1140] sm:$0xff]
    %v763 = vld [vmem:[#allocation6 + $0x1148] sm:$0xff]
    %v764 = vld [vmem:[#allocation6 + $0x1150] sm:$0xff]
    %v765 = vld [vmem:[#allocation6 + $0x1158] sm:$0xff]
    %v766 = vld [vmem:[#allocation6 + $0x1160] sm:$0xff]
    %v767 = vld [vmem:[#allocation6 + $0x1168] sm:$0xff]
    %v768 = vld [vmem:[#allocation6 + $0x1170] sm:$0xff]
    %v769 = vld [vmem:[#allocation6 + $0x1178] sm:$0xff]
    %v770 = vld [vmem:[#allocation6 + $0x1180] sm:$0xff]
    %v771 = vld [vmem:[#allocation6 + $0x1188] sm:$0xff]
    %v772 = vld [vmem:[#allocation6 + $0x1190] sm:$0xff]
    %v773 = vld [vmem:[#allocation6 + $0x1198] sm:$0xff]
    %v774 = vld [vmem:[#allocation6 + $0x11a0] sm:$0xff]
    %v775 = vld [vmem:[#allocation6 + $0x11a8] sm:$0xff]
    %v776 = vld [vmem:[#allocation6 + $0x11b0] sm:$0xff]
    %v777 = vld [vmem:[#allocation6 + $0x11b8] sm:$0xff]
    %v778 = vld [vmem:[#allocation6 + $0x11c0] sm:$0xff]
    %v779 = vld [vmem:[#allocation6 + $0x11c8] sm:$0xff]
    %v780 = vld [vmem:[#allocation6 + $0x11d0] sm:$0xff]
    %v781 = vld [vmem:[#allocation6 + $0x11d8] sm:$0xff]
    %v782 = vld [vmem:[#allocation6 + $0x11e0] sm:$0xff]
    %v783 = vld [vmem:[#allocation6 + $0x11e8] sm:$0xff]
    %v784 = vld [vmem:[#allocation6 + $0x11f0] sm:$0xff]
    %v785 = vld [vmem:[#allocation6 + $0x11f8] sm:$0xff]
    %v786 = vld [vmem:[#allocation6 + $0x1200] sm:$0xff]
    %v787 = vld [vmem:[#allocation6 + $0x1208] sm:$0xff]
    %v788 = vld [vmem:[#allocation6 + $0x1210] sm:$0xff]
    %v789 = vld [vmem:[#allocation6 + $0x1218] sm:$0xff]
    %v790 = vld [vmem:[#allocation6 + $0x1220] sm:$0xff]
    %v791 = vld [vmem:[#allocation6 + $0x1228] sm:$0xff]
    %v792 = vld [vmem:[#allocation6 + $0x1230] sm:$0xff]
    %v793 = vld [vmem:[#allocation6 + $0x1238] sm:$0xff]
    %v794 = vld [vmem:[#allocation6 + $0x1240] sm:$0xff]
    %v795 = vld [vmem:[#allocation6 + $0x1248] sm:$0xff]
    %v796 = vld [vmem:[#allocation6 + $0x1250] sm:$0xff]
    %v797 = vld [vmem:[#allocation6 + $0x1258] sm:$0xff]
    %v798 = vld [vmem:[#allocation6 + $0x1260] sm:$0xff]
    %v799 = vld [vmem:[#allocation6 + $0x1268] sm:$0xff]
    %v800 = vld [vmem:[#allocation6 + $0x1270] sm:$0xff]
    %v801 = vld [vmem:[#allocation6 + $0x1278] sm:$0xff]
    %v802 = vld [vmem:[#allocation6 + $0x1280] sm:$0xff]
    %v803 = vld [vmem:[#allocation6 + $0x1288] sm:$0xff]
    %v804 = vld [vmem:[#allocation6 + $0x1290] sm:$0xff]
    %v805 = vld [vmem:[#allocation6 + $0x1298] sm:$0xff]
    %v806 = vld [vmem:[#allocation6 + $0x12a0] sm:$0xff]
    %v807 = vld [vmem:[#allocation6 + $0x12a8] sm:$0xff]
    %v808 = vld [vmem:[#allocation6 + $0x12b0] sm:$0xff]
    %v809 = vld [vmem:[#allocation6 + $0x12b8] sm:$0xff]
    %v810 = vld [vmem:[#allocation6 + $0x12c0] sm:$0xff]
    %v811 = vld [vmem:[#allocation6 + $0x12c8] sm:$0xff]
    %v812 = vld [vmem:[#allocation6 + $0x12d0] sm:$0xff]
    %v813 = vld [vmem:[#allocation6 + $0x12d8] sm:$0xff]
    %v814 = vld [vmem:[#allocation6 + $0x12e0] sm:$0xff]
    %v815 = vld [vmem:[#allocation6 + $0x12e8] sm:$0xff]
    %v816 = vld [vmem:[#allocation6 + $0x12f0] sm:$0xff]
    %v817 = vld [vmem:[#allocation6 + $0x12f8] sm:$0xff]
    %v818 = vld [vmem:[#allocation6 + $0x1300] sm:$0xff]
    %v819 = vld [vmem:[#allocation6 + $0x1308] sm:$0xff]
    %v820 = vld [vmem:[#allocation6 + $0x1310] sm:$0xff]
    %v821 = vld [vmem:[#allocation6 + $0x1318] sm:$0xff]
    %v822 = vld [vmem:[#allocation6 + $0x1320] sm:$0xff]
    %v823 = vld [vmem:[#allocation6 + $0x1328] sm:$0xff]
    %v824 = vld [vmem:[#allocation6 + $0x1330] sm:$0xff]
    %v825 = vld [vmem:[#allocation6 + $0x1338] sm:$0xff]
    %v826 = vld [vmem:[#allocation6 + $0x1340] sm:$0xff]
    %v827 = vld [vmem:[#allocation6 + $0x1348] sm:$0xff]
    %v828 = vld [vmem:[#allocation6 + $0x1350] sm:$0xff]
    %v829 = vld [vmem:[#allocation6 + $0x1358] sm:$0xff]
    %v830 = vld [vmem:[#allocation6 + $0x1360] sm:$0xff]
    %v831 = vld [vmem:[#allocation6 + $0x1368] sm:$0xff]
    %v832 = vld [vmem:[#allocation6 + $0x1370] sm:$0xff]
    %v833 = vld [vmem:[#allocation6 + $0x1378] sm:$0xff]
    %v834 = vld [vmem:[#allocation6 + $0x1380] sm:$0xff]
    %v835 = vld [vmem:[#allocation6 + $0x1388] sm:$0xff]
    %v836 = vld [vmem:[#allocation6 + $0x1390] sm:$0xff]
    %v837 = vld [vmem:[#allocation6 + $0x1398] sm:$0xff]
    %v838 = vld [vmem:[#allocation6 + $0x13a0] sm:$0xff]
    %v839 = vld [vmem:[#allocation6 + $0x13a8] sm:$0xff]
    %v840 = vld [vmem:[#allocation6 + $0x13b0] sm:$0xff]
    %v841 = vld [vmem:[#allocation6 + $0x13b8] sm:$0xff]
    %v842 = vld [vmem:[#allocation6 + $0x13c0] sm:$0xff]
    %v843 = vld [vmem:[#allocation6 + $0x13c8] sm:$0xff]
    %v844 = vld [vmem:[#allocation6 + $0x13d0] sm:$0xff]
    %v845 = vld [vmem:[#allocation6 + $0x13d8] sm:$0xff]
    %v846 = vld [vmem:[#allocation6 + $0x13e0] sm:$0xff]
    %v847 = vld [vmem:[#allocation6 + $0x13e8] sm:$0xff]
    %v848 = vld [vmem:[#allocation6 + $0x13f0] sm:$0xff]
    %v849 = vld [vmem:[#allocation6 + $0x13f8] sm:$0xff]
    %v850 = vld [vmem:[#allocation6 + $0x1400] sm:$0xff]
    %v851 = vld [vmem:[#allocation6 + $0x1408] sm:$0xff]
    %v852 = vld [vmem:[#allocation6 + $0x1410] sm:$0xff]
    %v853 = vld [vmem:[#allocation6 + $0x1418] sm:$0xff]
    %v854 = vld [vmem:[#allocation6 + $0x1420] sm:$0xff]
    %v855 = vld [vmem:[#allocation6 + $0x1428] sm:$0xff]
    %v856 = vld [vmem:[#allocation6 + $0x1430] sm:$0xff]
    %v857 = vld [vmem:[#allocation6 + $0x1438] sm:$0xff]
    %v858 = vld [vmem:[#allocation6 + $0x1440] sm:$0xff]
    %v859 = vld [vmem:[#allocation6 + $0x1448] sm:$0xff]
    %v860 = vld [vmem:[#allocation6 + $0x1450] sm:$0xff]
    %v861 = vld [vmem:[#allocation6 + $0x1458] sm:$0xff]
    %v862 = vld [vmem:[#allocation6 + $0x1460] sm:$0xff]
    %v863 = vld [vmem:[#allocation6 + $0x1468] sm:$0xff]
    %v864 = vld [vmem:[#allocation6 + $0x1470] sm:$0xff]
    %v865 = vld [vmem:[#allocation6 + $0x1478] sm:$0xff]
    %v866 = vld [vmem:[#allocation6 + $0x1480] sm:$0xff]
    %v867 = vld [vmem:[#allocation6 + $0x1488] sm:$0xff]
    %v868 = vld [vmem:[#allocation6 + $0x1490] sm:$0xff]
    %v869 = vld [vmem:[#allocation6 + $0x1498] sm:$0xff]
    %v870 = vld [vmem:[#allocation6 + $0x14a0] sm:$0xff]
    %v871 = vld [vmem:[#allocation6 + $0x14a8] sm:$0xff]
    %v872 = vld [vmem:[#allocation6 + $0x14b0] sm:$0xff]
    %v873 = vld [vmem:[#allocation6 + $0x14b8] sm:$0xff]
    %v874 = vld [vmem:[#allocation6 + $0x14c0] sm:$0xff]
    %v875 = vld [vmem:[#allocation6 + $0x14c8] sm:$0xff]
    %v876 = vld [vmem:[#allocation6 + $0x14d0] sm:$0xff]
    %v877 = vld [vmem:[#allocation6 + $0x14d8] sm:$0xff]
    %v878 = vld [vmem:[#allocation6 + $0x14e0] sm:$0xff]
    %v879 = vld [vmem:[#allocation6 + $0x14e8] sm:$0xff]
    %v880 = vld [vmem:[#allocation6 + $0x14f0] sm:$0xff]
    %v881 = vld [vmem:[#allocation6 + $0x14f8] sm:$0xff]
    %v882 = vld [vmem:[#allocation6 + $0x1500] sm:$0xff]
    %v883 = vld [vmem:[#allocation6 + $0x1508] sm:$0xff]
    %v884 = vld [vmem:[#allocation6 + $0x1510] sm:$0xff]
    %v885 = vld [vmem:[#allocation6 + $0x1518] sm:$0xff]
    %v886 = vld [vmem:[#allocation6 + $0x1520] sm:$0xff]
    %v887 = vld [vmem:[#allocation6 + $0x1528] sm:$0xff]
    %v888 = vld [vmem:[#allocation6 + $0x1530] sm:$0xff]
    %v889 = vld [vmem:[#allocation6 + $0x1538] sm:$0xff]
    %v890 = vld [vmem:[#allocation6 + $0x1540] sm:$0xff]
    %v891 = vld [vmem:[#allocation6 + $0x1548] sm:$0xff]
    %v892 = vld [vmem:[#allocation6 + $0x1550] sm:$0xff]
    %v893 = vld [vmem:[#allocation6 + $0x1558] sm:$0xff]
    %v894 = vld [vmem:[#allocation6 + $0x1560] sm:$0xff]
    %v895 = vld [vmem:[#allocation6 + $0x1568] sm:$0xff]
    %v896 = vld [vmem:[#allocation6 + $0x1570] sm:$0xff]
    %v897 = vld [vmem:[#allocation6 + $0x1578] sm:$0xff]
    %v898 = vld [vmem:[#allocation6 + $0x1580] sm:$0xff]
    %v899 = vld [vmem:[#allocation6 + $0x1588] sm:$0xff]
    %v900 = vld [vmem:[#allocation6 + $0x1590] sm:$0xff]
    %v901 = vld [vmem:[#allocation6 + $0x1598] sm:$0xff]
    %v902 = vld [vmem:[#allocation6 + $0x15a0] sm:$0xff]
    %v903 = vld [vmem:[#allocation6 + $0x15a8] sm:$0xff]
    %v904 = vld [vmem:[#allocation6 + $0x15b0] sm:$0xff]
    %v905 = vld [vmem:[#allocation6 + $0x15b8] sm:$0xff]
    %v906 = vld [vmem:[#allocation6 + $0x15c0] sm:$0xff]
    %v907 = vld [vmem:[#allocation6 + $0x15c8] sm:$0xff]
    %v908 = vld [vmem:[#allocation6 + $0x15d0] sm:$0xff]
    %v909 = vld [vmem:[#allocation6 + $0x15d8] sm:$0xff]
    %v910 = vld [vmem:[#allocation6 + $0x15e0] sm:$0xff]
    %v911 = vld [vmem:[#allocation6 + $0x15e8] sm:$0xff]
    %v912 = vld [vmem:[#allocation6 + $0x15f0] sm:$0xff]
    %v913 = vld [vmem:[#allocation6 + $0x15f8] sm:$0xff]
    %v914 = vld [vmem:[#allocation6 + $0x1600] sm:$0xff]
    %v915 = vld [vmem:[#allocation6 + $0x1608] sm:$0xff]
    %v916 = vld [vmem:[#allocation6 + $0x1610] sm:$0xff]
    %v917 = vld [vmem:[#allocation6 + $0x1618] sm:$0xff]
    %v918 = vld [vmem:[#allocation6 + $0x1620] sm:$0xff]
    %v919 = vld [vmem:[#allocation6 + $0x1628] sm:$0xff]
    %v920 = vld [vmem:[#allocation6 + $0x1630] sm:$0xff]
    %v921 = vld [vmem:[#allocation6 + $0x1638] sm:$0xff]
    %v922 = vld [vmem:[#allocation6 + $0x1640] sm:$0xff]
    %v923 = vld [vmem:[#allocation6 + $0x1648] sm:$0xff]
    %v924 = vld [vmem:[#allocation6 + $0x1650] sm:$0xff]
    %v925 = vld [vmem:[#allocation6 + $0x1658] sm:$0xff]
    %v926 = vld [vmem:[#allocation6 + $0x1660] sm:$0xff]
    %v927 = vld [vmem:[#allocation6 + $0x1668] sm:$0xff]
    %v928 = vld [vmem:[#allocation6 + $0x1670] sm:$0xff]
    %v929 = vld [vmem:[#allocation6 + $0x1678] sm:$0xff]
    %v930 = vld [vmem:[#allocation6 + $0x1680] sm:$0xff]
    %v931 = vld [vmem:[#allocation6 + $0x1688] sm:$0xff]
    %v932 = vld [vmem:[#allocation6 + $0x1690] sm:$0xff]
    %v933 = vld [vmem:[#allocation6 + $0x1698] sm:$0xff]
    %v934 = vld [vmem:[#allocation6 + $0x16a0] sm:$0xff]
    %v935 = vld [vmem:[#allocation6 + $0x16a8] sm:$0xff]
    %v936 = vld [vmem:[#allocation6 + $0x16b0] sm:$0xff]
    %v937 = vld [vmem:[#allocation6 + $0x16b8] sm:$0xff]
    %v938 = vld [vmem:[#allocation6 + $0x16c0] sm:$0xff]
    %v939 = vld [vmem:[#allocation6 + $0x16c8] sm:$0xff]
    %v940 = vld [vmem:[#allocation6 + $0x16d0] sm:$0xff]
    %v941 = vld [vmem:[#allocation6 + $0x16d8] sm:$0xff]
    %v942 = vld [vmem:[#allocation6 + $0x16e0] sm:$0xff]
    %v943 = vld [vmem:[#allocation6 + $0x16e8] sm:$0xff]
    %v944 = vld [vmem:[#allocation6 + $0x16f0] sm:$0xff]
    %v945 = vld [vmem:[#allocation6 + $0x16f8] sm:$0xff]
    %v946 = vld [vmem:[#allocation6 + $0x1700] sm:$0xff]
    %v947 = vld [vmem:[#allocation6 + $0x1708] sm:$0xff]
    %v948 = vld [vmem:[#allocation6 + $0x1710] sm:$0xff]
    %v949 = vld [vmem:[#allocation6 + $0x1718] sm:$0xff]
    %v950 = vld [vmem:[#allocation6 + $0x1720] sm:$0xff]
    %v951 = vld [vmem:[#allocation6 + $0x1728] sm:$0xff]
    %v952 = vld [vmem:[#allocation6 + $0x1730] sm:$0xff]
    %v953 = vld [vmem:[#allocation6 + $0x1738] sm:$0xff]
    %v954 = vld [vmem:[#allocation6 + $0x1740] sm:$0xff]
    %v955 = vld [vmem:[#allocation6 + $0x1748] sm:$0xff]
    %v956 = vld [vmem:[#allocation6 + $0x1750] sm:$0xff]
    %v957 = vld [vmem:[#allocation6 + $0x1758] sm:$0xff]
    %v958 = vld [vmem:[#allocation6 + $0x1760] sm:$0xff]
    %v959 = vld [vmem:[#allocation6 + $0x1768] sm:$0xff]
    %v960 = vld [vmem:[#allocation6 + $0x1770] sm:$0xff]
    %v961 = vld [vmem:[#allocation6 + $0x1778] sm:$0xff]
    %v962 = vld [vmem:[#allocation6 + $0x1780] sm:$0xff]
    %v963 = vld [vmem:[#allocation6 + $0x1788] sm:$0xff]
    %v964 = vld [vmem:[#allocation6 + $0x1790] sm:$0xff]
    %v965 = vld [vmem:[#allocation6 + $0x1798] sm:$0xff]
    %v966 = vld [vmem:[#allocation6 + $0x17a0] sm:$0xff]
    %v967 = vld [vmem:[#allocation6 + $0x17a8] sm:$0xff]
    %v968 = vld [vmem:[#allocation6 + $0x17b0] sm:$0xff]
    %v969 = vld [vmem:[#allocation6 + $0x17b8] sm:$0xff]
    %v970 = vld [vmem:[#allocation6 + $0x17c0] sm:$0xff]
    %v971 = vld [vmem:[#allocation6 + $0x17c8] sm:$0xff]
    %v972 = vld [vmem:[#allocation6 + $0x17d0] sm:$0xff]
    %v973 = vld [vmem:[#allocation6 + $0x17d8] sm:$0xff]
    %v974 = vld [vmem:[#allocation6 + $0x17e0] sm:$0xff]
    %v975 = vld [vmem:[#allocation6 + $0x17e8] sm:$0xff]
    %v976 = vld [vmem:[#allocation6 + $0x17f0] sm:$0xff]
    %v977 = vld [vmem:[#allocation6 + $0x17f8] sm:$0xff]
    %v978 = vld [vmem:[#allocation6 + $0x1800] sm:$0xff]
    %v979 = vld [vmem:[#allocation6 + $0x1808] sm:$0xff]
    %v980 = vld [vmem:[#allocation6 + $0x1810] sm:$0xff]
    %v981 = vld [vmem:[#allocation6 + $0x1818] sm:$0xff]
    %v982 = vld [vmem:[#allocation6 + $0x1820] sm:$0xff]
    %v983 = vld [vmem:[#allocation6 + $0x1828] sm:$0xff]
    %v984 = vld [vmem:[#allocation6 + $0x1830] sm:$0xff]
    %v985 = vld [vmem:[#allocation6 + $0x1838] sm:$0xff]
    %v986 = vld [vmem:[#allocation6 + $0x1840] sm:$0xff]
    %v987 = vld [vmem:[#allocation6 + $0x1848] sm:$0xff]
    %v988 = vld [vmem:[#allocation6 + $0x1850] sm:$0xff]
    %v989 = vld [vmem:[#allocation6 + $0x1858] sm:$0xff]
    %v990 = vld [vmem:[#allocation6 + $0x1860] sm:$0xff]
    %v991 = vld [vmem:[#allocation6 + $0x1868] sm:$0xff]
    %v992 = vld [vmem:[#allocation6 + $0x1870] sm:$0xff]
    %v993 = vld [vmem:[#allocation6 + $0x1878] sm:$0xff]
    %v994 = vld [vmem:[#allocation6 + $0x1880] sm:$0xff]
    %v995 = vld [vmem:[#allocation6 + $0x1888] sm:$0xff]
    %v996 = vld [vmem:[#allocation6 + $0x1890] sm:$0xff]
    %v997 = vld [vmem:[#allocation6 + $0x1898] sm:$0xff]
    %v998 = vld [vmem:[#allocation6 + $0x18a0] sm:$0xff]
    %v999 = vld [vmem:[#allocation6 + $0x18a8] sm:$0xff]
    %v1000 = vld [vmem:[#allocation6 + $0x18b0] sm:$0xff]
    %v1001 = vld [vmem:[#allocation6 + $0x18b8] sm:$0xff]
    %v1002 = vld [vmem:[#allocation6 + $0x18c0] sm:$0xff]
    %v1003 = vld [vmem:[#allocation6 + $0x18c8] sm:$0xff]
    %v1004 = vld [vmem:[#allocation6 + $0x18d0] sm:$0xff]
    %v1005 = vld [vmem:[#allocation6 + $0x18d8] sm:$0xff]
    %v1006 = vld [vmem:[#allocation6 + $0x18e0] sm:$0xff]
    %v1007 = vld [vmem:[#allocation6 + $0x18e8] sm:$0xff]
    %v1008 = vld [vmem:[#allocation6 + $0x18f0] sm:$0xff]
    %v1009 = vld [vmem:[#allocation6 + $0x18f8] sm:$0xff]
    %v1010 = vld [vmem:[#allocation6 + $0x1900] sm:$0xff]
    %v1011 = vld [vmem:[#allocation6 + $0x1908] sm:$0xff]
    %v1012 = vld [vmem:[#allocation6 + $0x1910] sm:$0xff]
    %v1013 = vld [vmem:[#allocation6 + $0x1918] sm:$0xff]
    %v1014 = vld [vmem:[#allocation6 + $0x1920] sm:$0xff]
    %v1015 = vld [vmem:[#allocation6 + $0x1928] sm:$0xff]
    %v1016 = vld [vmem:[#allocation6 + $0x1930] sm:$0xff]
    %v1017 = vld [vmem:[#allocation6 + $0x1938] sm:$0xff]
    %v1018 = vld [vmem:[#allocation6 + $0x1940] sm:$0xff]
    %v1019 = vld [vmem:[#allocation6 + $0x1948] sm:$0xff]
    %v1020 = vld [vmem:[#allocation6 + $0x1950] sm:$0xff]
    %v1021 = vld [vmem:[#allocation6 + $0x1958] sm:$0xff]
    %v1022 = vld [vmem:[#allocation6 + $0x1960] sm:$0xff]
    %v1023 = vld [vmem:[#allocation6 + $0x1968] sm:$0xff]
    %v1024 = vld [vmem:[#allocation6 + $0x1970] sm:$0xff]
    %v1025 = vld [vmem:[#allocation6 + $0x1978] sm:$0xff]
    %v1026 = vld [vmem:[#allocation6 + $0x1980] sm:$0xff]
    %v1027 = vld [vmem:[#allocation6 + $0x1988] sm:$0xff]
    %v1028 = vld [vmem:[#allocation6 + $0x1990] sm:$0xff]
    %v1029 = vld [vmem:[#allocation6 + $0x1998] sm:$0xff]
    %v1030 = vld [vmem:[#allocation6 + $0x19a0] sm:$0xff]
    %v1031 = vld [vmem:[#allocation6 + $0x19a8] sm:$0xff]
    %v1032 = vld [vmem:[#allocation6 + $0x19b0] sm:$0xff]
    %v1033 = vld [vmem:[#allocation6 + $0x19b8] sm:$0xff]
    %v1034 = vld [vmem:[#allocation6 + $0x19c0] sm:$0xff]
    %v1035 = vld [vmem:[#allocation6 + $0x19c8] sm:$0xff]
    %v1036 = vld [vmem:[#allocation6 + $0x19d0] sm:$0xff]
    %v1037 = vld [vmem:[#allocation6 + $0x19d8] sm:$0xff]
    %v1038 = vld [vmem:[#allocation6 + $0x19e0] sm:$0xff]
    %v1039 = vld [vmem:[#allocation6 + $0x19e8] sm:$0xff]
    %v1040 = vld [vmem:[#allocation6 + $0x19f0] sm:$0xff]
    %v1041 = vld [vmem:[#allocation6 + $0x19f8] sm:$0xff]
    %v1042 = vld [vmem:[#allocation6 + $0x1a00] sm:$0xff]
    %v1043 = vld [vmem:[#allocation6 + $0x1a08] sm:$0xff]
    %v1044 = vld [vmem:[#allocation6 + $0x1a10] sm:$0xff]
    %v1045 = vld [vmem:[#allocation6 + $0x1a18] sm:$0xff]
    %v1046 = vld [vmem:[#allocation6 + $0x1a20] sm:$0xff]
    %v1047 = vld [vmem:[#allocation6 + $0x1a28] sm:$0xff]
    %v1048 = vld [vmem:[#allocation6 + $0x1a30] sm:$0xff]
    %v1049 = vld [vmem:[#allocation6 + $0x1a38] sm:$0xff]
    %v1050 = vld [vmem:[#allocation6 + $0x1a40] sm:$0xff]
    %v1051 = vld [vmem:[#allocation6 + $0x1a48] sm:$0xff]
    %v1052 = vld [vmem:[#allocation6 + $0x1a50] sm:$0xff]
    %v1053 = vld [vmem:[#allocation6 + $0x1a58] sm:$0xff]
    %v1054 = vld [vmem:[#allocation6 + $0x1a60] sm:$0xff]
    %v1055 = vld [vmem:[#allocation6 + $0x1a68] sm:$0xff]
    %v1056 = vld [vmem:[#allocation6 + $0x1a70] sm:$0xff]
    %v1057 = vld [vmem:[#allocation6 + $0x1a78] sm:$0xff]
    %v1058 = vld [vmem:[#allocation6 + $0x1a80] sm:$0xff]
    %v1059 = vld [vmem:[#allocation6 + $0x1a88] sm:$0xff]
    %v1060 = vld [vmem:[#allocation6 + $0x1a90] sm:$0xff]
    %v1061 = vld [vmem:[#allocation6 + $0x1a98] sm:$0xff]
    %v1062 = vld [vmem:[#allocation6 + $0x1aa0] sm:$0xff]
    %v1063 = vld [vmem:[#allocation6 + $0x1aa8] sm:$0xff]
    %v1064 = vld [vmem:[#allocation6 + $0x1ab0] sm:$0xff]
    %v1065 = vld [vmem:[#allocation6 + $0x1ab8] sm:$0xff]
    %v1066 = vld [vmem:[#allocation6 + $0x1ac0] sm:$0xff]
    %v1067 = vld [vmem:[#allocation6 + $0x1ac8] sm:$0xff]
    %v1068 = vld [vmem:[#allocation6 + $0x1ad0] sm:$0xff]
    %v1069 = vld [vmem:[#allocation6 + $0x1ad8] sm:$0xff]
    %v1070 = vld [vmem:[#allocation6 + $0x1ae0] sm:$0xff]
    %v1071 = vld [vmem:[#allocation6 + $0x1ae8] sm:$0xff]
    %v1072 = vld [vmem:[#allocation6 + $0x1af0] sm:$0xff]
    %v1073 = vld [vmem:[#allocation6 + $0x1af8] sm:$0xff]
    %v1074 = vld [vmem:[#allocation6 + $0x1b00] sm:$0xff]
    %v1075 = vld [vmem:[#allocation6 + $0x1b08] sm:$0xff]
    %v1076 = vld [vmem:[#allocation6 + $0x1b10] sm:$0xff]
    %v1077 = vld [vmem:[#allocation6 + $0x1b18] sm:$0xff]
    %v1078 = vld [vmem:[#allocation6 + $0x1b20] sm:$0xff]
    %v1079 = vld [vmem:[#allocation6 + $0x1b28] sm:$0xff]
    %v1080 = vld [vmem:[#allocation6 + $0x1b30] sm:$0xff]
    %v1081 = vld [vmem:[#allocation6 + $0x1b38] sm:$0xff]
    %v1082 = vld [vmem:[#allocation6 + $0x1b40] sm:$0xff]
    %v1083 = vld [vmem:[#allocation6 + $0x1b48] sm:$0xff]
    %v1084 = vld [vmem:[#allocation6 + $0x1b50] sm:$0xff]
    %v1085 = vld [vmem:[#allocation6 + $0x1b58] sm:$0xff]
    %v1086 = vld [vmem:[#allocation6 + $0x1b60] sm:$0xff]
    %v1087 = vld [vmem:[#allocation6 + $0x1b68] sm:$0xff]
    %v1088 = vld [vmem:[#allocation6 + $0x1b70] sm:$0xff]
    %v1089 = vld [vmem:[#allocation6 + $0x1b78] sm:$0xff]
    %v1090 = vld [vmem:[#allocation6 + $0x1b80] sm:$0xff]
    %v1091 = vld [vmem:[#allocation6 + $0x1b88] sm:$0xff]
    %v1092 = vld [vmem:[#allocation6 + $0x1b90] sm:$0xff]
    %v1093 = vld [vmem:[#allocation6 + $0x1b98] sm:$0xff]
    %v1094 = vld [vmem:[#allocation6 + $0x1ba0] sm:$0xff]
    %v1095 = vld [vmem:[#allocation6 + $0x1ba8] sm:$0xff]
    %v1096 = vld [vmem:[#allocation6 + $0x1bb0] sm:$0xff]
    %v1097 = vld [vmem:[#allocation6 + $0x1bb8] sm:$0xff]
    %v1098 = vld [vmem:[#allocation6 + $0x1bc0] sm:$0xff]
    %v1099 = vld [vmem:[#allocation6 + $0x1bc8] sm:$0xff]
    %v1100 = vld [vmem:[#allocation6 + $0x1bd0] sm:$0xff]
    %v1101 = vld [vmem:[#allocation6 + $0x1bd8] sm:$0xff]
    %v1102 = vld [vmem:[#allocation6 + $0x1be0] sm:$0xff]
    %v1103 = vld [vmem:[#allocation6 + $0x1be8] sm:$0xff]
    %v1104 = vld [vmem:[#allocation6 + $0x1bf0] sm:$0xff]
    %v1105 = vld [vmem:[#allocation6 + $0x1bf8] sm:$0xff]
    %v1106 = vld [vmem:[#allocation6 + $0x1c00] sm:$0xff]
    %v1107 = vld [vmem:[#allocation6 + $0x1c08] sm:$0xff]
    %v1108 = vld [vmem:[#allocation6 + $0x1c10] sm:$0xff]
    %v1109 = vld [vmem:[#allocation6 + $0x1c18] sm:$0xff]
    %v1110 = vld [vmem:[#allocation6 + $0x1c20] sm:$0xff]
    %v1111 = vld [vmem:[#allocation6 + $0x1c28] sm:$0xff]
    %v1112 = vld [vmem:[#allocation6 + $0x1c30] sm:$0xff]
    %v1113 = vld [vmem:[#allocation6 + $0x1c38] sm:$0xff]
    %v1114 = vld [vmem:[#allocation6 + $0x1c40] sm:$0xff]
    %v1115 = vld [vmem:[#allocation6 + $0x1c48] sm:$0xff]
    %v1116 = vld [vmem:[#allocation6 + $0x1c50] sm:$0xff]
    %v1117 = vld [vmem:[#allocation6 + $0x1c58] sm:$0xff]
    %v1118 = vld [vmem:[#allocation6 + $0x1c60] sm:$0xff]
    %v1119 = vld [vmem:[#allocation6 + $0x1c68] sm:$0xff]
    %v1120 = vld [vmem:[#allocation6 + $0x1c70] sm:$0xff]
    %v1121 = vld [vmem:[#allocation6 + $0x1c78] sm:$0xff]
    %v1122 = vld [vmem:[#allocation6 + $0x1c80] sm:$0xff]
    %v1123 = vld [vmem:[#allocation6 + $0x1c88] sm:$0xff]
    %v1124 = vld [vmem:[#allocation6 + $0x1c90] sm:$0xff]
    %v1125 = vld [vmem:[#allocation6 + $0x1c98] sm:$0xff]
    %v1126 = vld [vmem:[#allocation6 + $0x1ca0] sm:$0xff]
    %v1127 = vld [vmem:[#allocation6 + $0x1ca8] sm:$0xff]
    %v1128 = vld [vmem:[#allocation6 + $0x1cb0] sm:$0xff]
    %v1129 = vld [vmem:[#allocation6 + $0x1cb8] sm:$0xff]
    %v1130 = vld [vmem:[#allocation6 + $0x1cc0] sm:$0xff]
    %v1131 = vld [vmem:[#allocation6 + $0x1cc8] sm:$0xff]
    %v1132 = vld [vmem:[#allocation6 + $0x1cd0] sm:$0xff]
    %v1133 = vld [vmem:[#allocation6 + $0x1cd8] sm:$0xff]
    %v1134 = vld [vmem:[#allocation6 + $0x1ce0] sm:$0xff]
    %v1135 = vld [vmem:[#allocation6 + $0x1ce8] sm:$0xff]
    %v1136 = vld [vmem:[#allocation6 + $0x1cf0] sm:$0xff]
    %v1137 = vld [vmem:[#allocation6 + $0x1cf8] sm:$0xff]
    %v1138 = vld [vmem:[#allocation6 + $0x1d00] sm:$0xff]
    %v1139 = vld [vmem:[#allocation6 + $0x1d08] sm:$0xff]
    %v1140 = vld [vmem:[#allocation6 + $0x1d10] sm:$0xff]
    %v1141 = vld [vmem:[#allocation6 + $0x1d18] sm:$0xff]
    %v1142 = vld [vmem:[#allocation6 + $0x1d20] sm:$0xff]
    %v1143 = vld [vmem:[#allocation6 + $0x1d28] sm:$0xff]
    %v1144 = vld [vmem:[#allocation6 + $0x1d30] sm:$0xff]
    %v1145 = vld [vmem:[#allocation6 + $0x1d38] sm:$0xff]
    %v1146 = vld [vmem:[#allocation6 + $0x1d40] sm:$0xff]
    %v1147 = vld [vmem:[#allocation6 + $0x1d48] sm:$0xff]
    %v1148 = vld [vmem:[#allocation6 + $0x1d50] sm:$0xff]
    %v1149 = vld [vmem:[#allocation6 + $0x1d58] sm:$0xff]
    %v1150 = vld [vmem:[#allocation6 + $0x1d60] sm:$0xff]
    %v1151 = vld [vmem:[#allocation6 + $0x1d68] sm:$0xff]
    %v1152 = vld [vmem:[#allocation6 + $0x1d70] sm:$0xff]
    %v1153 = vld [vmem:[#allocation6 + $0x1d78] sm:$0xff]
    %v1154 = vld [vmem:[#allocation6 + $0x1d80] sm:$0xff]
    %v1155 = vld [vmem:[#allocation6 + $0x1d88] sm:$0xff]
    %v1156 = vld [vmem:[#allocation6 + $0x1d90] sm:$0xff]
    %v1157 = vld [vmem:[#allocation6 + $0x1d98] sm:$0xff]
    %v1158 = vld [vmem:[#allocation6 + $0x1da0] sm:$0xff]
    %v1159 = vld [vmem:[#allocation6 + $0x1da8] sm:$0xff]
    %v1160 = vld [vmem:[#allocation6 + $0x1db0] sm:$0xff]
    %v1161 = vld [vmem:[#allocation6 + $0x1db8] sm:$0xff]
    %v1162 = vld [vmem:[#allocation6 + $0x1dc0] sm:$0xff]
    %v1163 = vld [vmem:[#allocation6 + $0x1dc8] sm:$0xff]
    %v1164 = vld [vmem:[#allocation6 + $0x1dd0] sm:$0xff]
    %v1165 = vld [vmem:[#allocation6 + $0x1dd8] sm:$0xff]
    %v1166 = vld [vmem:[#allocation6 + $0x1de0] sm:$0xff]
    %v1167 = vld [vmem:[#allocation6 + $0x1de8] sm:$0xff]
    %v1168 = vld [vmem:[#allocation6 + $0x1df0] sm:$0xff]
    %v1169 = vld [vmem:[#allocation6 + $0x1df8] sm:$0xff]
    %v1170 = vld [vmem:[#allocation6 + $0x1e00] sm:$0xff]
    %v1171 = vld [vmem:[#allocation6 + $0x1e08] sm:$0xff]
    %v1172 = vld [vmem:[#allocation6 + $0x1e10] sm:$0xff]
    %v1173 = vld [vmem:[#allocation6 + $0x1e18] sm:$0xff]
    %v1174 = vld [vmem:[#allocation6 + $0x1e20] sm:$0xff]
    %v1175 = vld [vmem:[#allocation6 + $0x1e28] sm:$0xff]
    %v1176 = vld [vmem:[#allocation6 + $0x1e30] sm:$0xff]
    %v1177 = vld [vmem:[#allocation6 + $0x1e38] sm:$0xff]
    %v1178 = vld [vmem:[#allocation6 + $0x1e40] sm:$0xff]
    %v1179 = vld [vmem:[#allocation6 + $0x1e48] sm:$0xff]
    %v1180 = vld [vmem:[#allocation6 + $0x1e50] sm:$0xff]
    %v1181 = vld [vmem:[#allocation6 + $0x1e58] sm:$0xff]
    %v1182 = vld [vmem:[#allocation6 + $0x1e60] sm:$0xff]
    %v1183 = vld [vmem:[#allocation6 + $0x1e68] sm:$0xff]
    %v1184 = vld [vmem:[#allocation6 + $0x1e70] sm:$0xff]
    %v1185 = vld [vmem:[#allocation6 + $0x1e78] sm:$0xff]
    %v1186 = vld [vmem:[#allocation6 + $0x1e80] sm:$0xff]
    %v1187 = vld [vmem:[#allocation6 + $0x1e88] sm:$0xff]
    %v1188 = vld [vmem:[#allocation6 + $0x1e90] sm:$0xff]
    %v1189 = vld [vmem:[#allocation6 + $0x1e98] sm:$0xff]
    %v1190 = vld [vmem:[#allocation6 + $0x1ea0] sm:$0xff]
    %v1191 = vld [vmem:[#allocation6 + $0x1ea8] sm:$0xff]
    %v1192 = vld [vmem:[#allocation6 + $0x1eb0] sm:$0xff]
    %v1193 = vld [vmem:[#allocation6 + $0x1eb8] sm:$0xff]
    %v1194 = vld [vmem:[#allocation6 + $0x1ec0] sm:$0xff]
    %v1195 = vld [vmem:[#allocation6 + $0x1ec8] sm:$0xff]
    %v1196 = vld [vmem:[#allocation6 + $0x1ed0] sm:$0xff]
    %v1197 = vld [vmem:[#allocation6 + $0x1ed8] sm:$0xff]
    %v1198 = vld [vmem:[#allocation6 + $0x1ee0] sm:$0xff]
    %v1199 = vld [vmem:[#allocation6 + $0x1ee8] sm:$0xff]
    %v1200 = vld [vmem:[#allocation6 + $0x1ef0] sm:$0xff]
    %v1201 = vld [vmem:[#allocation6 + $0x1ef8] sm:$0xff]
    %v1202 = vld [vmem:[#allocation6 + $0x1f00] sm:$0xff]
    %v1203 = vld [vmem:[#allocation6 + $0x1f08] sm:$0xff]
    %v1204 = vld [vmem:[#allocation6 + $0x1f10] sm:$0xff]
    %v1205 = vld [vmem:[#allocation6 + $0x1f18] sm:$0xff]
    %v1206 = vld [vmem:[#allocation6 + $0x1f20] sm:$0xff]
    %v1207 = vld [vmem:[#allocation6 + $0x1f28] sm:$0xff]
    %v1208 = vld [vmem:[#allocation6 + $0x1f30] sm:$0xff]
    %v1209 = vld [vmem:[#allocation6 + $0x1f38] sm:$0xff]
    %v1210 = vld [vmem:[#allocation6 + $0x1f40] sm:$0xff]
    %v1211 = vld [vmem:[#allocation6 + $0x1f48] sm:$0xff]
    %v1212 = vld [vmem:[#allocation6 + $0x1f50] sm:$0xff]
    %v1213 = vld [vmem:[#allocation6 + $0x1f58] sm:$0xff]
    %v1214 = vld [vmem:[#allocation6 + $0x1f60] sm:$0xff]
    %v1215 = vld [vmem:[#allocation6 + $0x1f68] sm:$0xff]
    %v1216 = vld [vmem:[#allocation6 + $0x1f70] sm:$0xff]
    %v1217 = vld [vmem:[#allocation6 + $0x1f78] sm:$0xff]
    %v1218 = vld [vmem:[#allocation6 + $0x1f80] sm:$0xff]
    %v1219 = vld [vmem:[#allocation6 + $0x1f88] sm:$0xff]
    %v1220 = vld [vmem:[#allocation6 + $0x1f90] sm:$0xff]
    %v1221 = vld [vmem:[#allocation6 + $0x1f98] sm:$0xff]
    %v1222 = vld [vmem:[#allocation6 + $0x1fa0] sm:$0xff]
    %v1223 = vld [vmem:[#allocation6 + $0x1fa8] sm:$0xff]
    %v1224 = vld [vmem:[#allocation6 + $0x1fb0] sm:$0xff]
    %v1225 = vld [vmem:[#allocation6 + $0x1fb8] sm:$0xff]
    %v1226 = vld [vmem:[#allocation6 + $0x1fc0] sm:$0xff]
    %v1227 = vld [vmem:[#allocation6 + $0x1fc8] sm:$0xff]
    %v1228 = vld [vmem:[#allocation6 + $0x1fd0] sm:$0xff]
    %v1229 = vld [vmem:[#allocation6 + $0x1fd8] sm:$0xff]
    %v1230 = vld [vmem:[#allocation6 + $0x1fe0] sm:$0xff]
    %v1231 = vld [vmem:[#allocation6 + $0x1fe8] sm:$0xff]
    %v1232 = vld [vmem:[#allocation6 + $0x1ff0] sm:$0xff]
    %v1233 = vld [vmem:[#allocation6 + $0x1ff8] sm:$0xff]
    %v1234 = vld [vmem:[#allocation6 + $0x2000] sm:$0xff]
    %v1235 = vld [vmem:[#allocation6 + $0x2008] sm:$0xff]
    %v1236 = vld [vmem:[#allocation6 + $0x2010] sm:$0xff]
    %v1237 = vld [vmem:[#allocation6 + $0x2018] sm:$0xff]
    %v1238 = vld [vmem:[#allocation6 + $0x2020] sm:$0xff]
    %v1239 = vld [vmem:[#allocation6 + $0x2028] sm:$0xff]
    %v1240 = vld [vmem:[#allocation6 + $0x2030] sm:$0xff]
    %v1241 = vld [vmem:[#allocation6 + $0x2038] sm:$0xff]
    %v1242 = vld [vmem:[#allocation6 + $0x2040] sm:$0xff]
    %v1243 = vld [vmem:[#allocation6 + $0x2048] sm:$0xff]
    %v1244 = vld [vmem:[#allocation6 + $0x2050] sm:$0xff]
    %v1245 = vld [vmem:[#allocation6 + $0x2058] sm:$0xff]
    %v1246 = vld [vmem:[#allocation6 + $0x2060] sm:$0xff]
    %v1247 = vld [vmem:[#allocation6 + $0x2068] sm:$0xff]
    %v1248 = vld [vmem:[#allocation6 + $0x2070] sm:$0xff]
    %v1249 = vld [vmem:[#allocation6 + $0x2078] sm:$0xff]
    %v1250 = vld [vmem:[#allocation6 + $0x2080] sm:$0xff]
    %v1251 = vld [vmem:[#allocation6 + $0x2088] sm:$0xff]
    %v1252 = vld [vmem:[#allocation6 + $0x2090] sm:$0xff]
    %v1253 = vld [vmem:[#allocation6 + $0x2098] sm:$0xff]
    %v1254 = vld [vmem:[#allocation6 + $0x20a0] sm:$0xff]
    %v1255 = vld [vmem:[#allocation6 + $0x20a8] sm:$0xff]
    %v1256 = vld [vmem:[#allocation6 + $0x20b0] sm:$0xff]
    %v1257 = vld [vmem:[#allocation6 + $0x20b8] sm:$0xff]
    %v1258 = vld [vmem:[#allocation6 + $0x20c0] sm:$0xff]
    %v1259 = vld [vmem:[#allocation6 + $0x20c8] sm:$0xff]
    %v1260 = vld [vmem:[#allocation6 + $0x20d0] sm:$0xff]
    %v1261 = vld [vmem:[#allocation6 + $0x20d8] sm:$0xff]
    %v1262 = vld [vmem:[#allocation6 + $0x20e0] sm:$0xff]
    %v1263 = vld [vmem:[#allocation6 + $0x20e8] sm:$0xff]
    %v1264 = vld [vmem:[#allocation6 + $0x20f0] sm:$0xff]
    %v1265 = vld [vmem:[#allocation6 + $0x20f8] sm:$0xff]
    %v1266 = vld [vmem:[#allocation6 + $0x2100] sm:$0xff]
    %v1267 = vld [vmem:[#allocation6 + $0x2108] sm:$0xff]
    %v1268 = vld [vmem:[#allocation6 + $0x2110] sm:$0xff]
    %v1269 = vld [vmem:[#allocation6 + $0x2118] sm:$0xff]
    %v1270 = vld [vmem:[#allocation6 + $0x2120] sm:$0xff]
    %v1271 = vld [vmem:[#allocation6 + $0x2128] sm:$0xff]
    %v1272 = vld [vmem:[#allocation6 + $0x2130] sm:$0xff]
    %v1273 = vld [vmem:[#allocation6 + $0x2138] sm:$0xff]
    %v1274 = vld [vmem:[#allocation6 + $0x2140] sm:$0xff]
    %v1275 = vld [vmem:[#allocation6 + $0x2148] sm:$0xff]
    %v1276 = vld [vmem:[#allocation6 + $0x2150] sm:$0xff]
    %v1277 = vld [vmem:[#allocation6 + $0x2158] sm:$0xff]
    %v1278 = vld [vmem:[#allocation6 + $0x2160] sm:$0xff]
    %v1279 = vld [vmem:[#allocation6 + $0x2168] sm:$0xff]
    %v1280 = vld [vmem:[#allocation6 + $0x2170] sm:$0xff]
    %v1281 = vld [vmem:[#allocation6 + $0x2178] sm:$0xff]
    %v1282 = vld [vmem:[#allocation6 + $0x2180] sm:$0xff]
    %v1283 = vld [vmem:[#allocation6 + $0x2188] sm:$0xff]
    %v1284 = vld [vmem:[#allocation6 + $0x2190] sm:$0xff]
    %v1285 = vld [vmem:[#allocation6 + $0x2198] sm:$0xff]
    %v1286 = vld [vmem:[#allocation6 + $0x21a0] sm:$0xff]
    %v1287 = vld [vmem:[#allocation6 + $0x21a8] sm:$0xff]
    %v1288 = vld [vmem:[#allocation6 + $0x21b0] sm:$0xff]
    %v1289 = vld [vmem:[#allocation6 + $0x21b8] sm:$0xff]
    %v1290 = vld [vmem:[#allocation6 + $0x21c0] sm:$0xff]
    %v1291 = vld [vmem:[#allocation6 + $0x21c8] sm:$0xff]
    %v1292 = vld [vmem:[#allocation6 + $0x21d0] sm:$0xff]
    %v1293 = vld [vmem:[#allocation6 + $0x21d8] sm:$0xff]
    %v1294 = vld [vmem:[#allocation6 + $0x21e0] sm:$0xff]
    %v1295 = vld [vmem:[#allocation6 + $0x21e8] sm:$0xff]
    %v1296 = vld [vmem:[#allocation6 + $0x21f0] sm:$0xff]
    %v1297 = vld [vmem:[#allocation6 + $0x21f8] sm:$0xff]
    %v1298 = vld [vmem:[#allocation6 + $0x2200] sm:$0xff]
    %1302 = vrot.lane.b32.xlu0 %v119, 16
    %v1303 = vpop.permute.xlu0 %1302
    %1304 = vrot.lane.b32.xlu0 %v120, 16
    %v1305 = vpop.permute.xlu0 %1304
    %1306 = vrot.lane.b32.xlu0 %v121, 16
    %v1307 = vpop.permute.xlu0 %1306
    %vm1308 = vcmask 130048
    %v1309 = vsel %vm1308, %v1303, %v1305
    %v1310 = vsel %vm1308, %v1305, %v1307
    %1313 = vrot.lane.b32.xlu0 %v120, 32
    %v1314 = vpop.permute.xlu0 %1313
    %1315 = vrot.lane.b32.xlu0 %v121, 32
    %v1316 = vpop.permute.xlu0 %1315
    %1317 = vrot.lane.b32.xlu0 %v122, 32
    %v1318 = vpop.permute.xlu0 %1317
    %vm1319 = vcmask 261120
    %v1320 = vsel %vm1319, %v1314, %v1316
    %v1321 = vsel %vm1319, %v1316, %v1318
    %1324 = vrot.lane.b32.xlu0 %v121, 48
    %v1325 = vpop.permute.xlu0 %1324
    %1326 = vrot.lane.b32.xlu0 %v122, 48
    %v1327 = vpop.permute.xlu0 %1326
    %1328 = vrot.lane.b32.xlu0 %v123, 48
    %v1329 = vpop.permute.xlu0 %1328
    %vm1330 = vcmask 392192
    %v1331 = vsel %vm1330, %v1325, %v1327
    %v1332 = vsel %vm1330, %v1327, %v1329
    %1335 = vrot.lane.b32.xlu0 %v122, 64
    %v1336 = vpop.permute.xlu0 %1335
    %1337 = vrot.lane.b32.xlu0 %v123, 64
    %v1338 = vpop.permute.xlu0 %1337
    %1339 = vrot.lane.b32.xlu0 %v124, 64
    %v1340 = vpop.permute.xlu0 %1339
    %vm1341 = vcmask 523264
    %v1342 = vsel %vm1341, %v1336, %v1338
    %v1343 = vsel %vm1341, %v1338, %v1340
    %1346 = vrot.lane.b32.xlu0 %v123, 80
    %v1347 = vpop.permute.xlu0 %1346
    %1348 = vrot.lane.b32.xlu0 %v124, 80
    %v1349 = vpop.permute.xlu0 %1348
    %1350 = vrot.lane.b32.xlu0 %v125, 80
    %v1351 = vpop.permute.xlu0 %1350
    %vm1352 = vcmask 654336
    %v1353 = vsel %vm1352, %v1347, %v1349
    %v1354 = vsel %vm1352, %v1349, %v1351
    %vm1356 = vcmask 785408
    %v1357 = vsel %vm1356, %v120, 0
    %v1359 = vsel %vm1356, %v1310, 0
    %v1361 = vsel %vm1356, %v1321, 0
    %v1363 = vsel %vm1356, %v1332, 0
    %v1365 = vsel %vm1356, %v1343, 0
    %v1367 = vsel %vm1356, %v1354, 0
    %1369 = vmatprep.subr.mxu0 %v127
    %1370 = vmatpush1.msra.mxu0 %v126
    %1371 = vmatprep.subr.mxu0 %v130
    %1372 = vmatpush1.msra.mxu0 %v129
    %1373 = vmatprep.subr.mxu0 %v133
    %1374 = vmatpush1.msra.mxu0 %v132
    %1375 = vmatprep.subr.mxu0 %v136
    %1376 = vmatpush1.msra.mxu0 %v135
    %1377 = vmatprep.subr.mxu0 %v139
    %1378 = vmatpush1.msra.mxu0 %v138
    %1379 = vmatprep.subr.mxu0 %v142
    %1380 = vmatpush1.msra.mxu0 %v141
    %1381 = vmatprep.subr.mxu0 %v145
    %1382 = vmatpush1.msra.mxu0 %v144
    %1383 = vmatprep.subr.mxu0 %v148
    %1384 = vmatpush1.msra.mxu0 %v147
    %1385 = vmatprep.subr.mxu0 %v151
    %1386 = vmatpush1.msra.mxu0 %v150
    %1387 = vmatprep.subr.mxu0 %v154
    %1388 = vmatpush1.msra.mxu0 %v153
    %1389 = vmatprep.subr.mxu0 %v157
    %1390 = vmatpush1.msra.mxu0 %v156
    %1391 = vmatprep.subr.mxu0 %v160
    %1392 = vmatpush1.msra.mxu0 %v159
    %1393 = vmatprep.subr.mxu0 %v163
    %1394 = vmatpush1.msra.mxu0 %v162
    %1395 = vmatprep.subr.mxu0 %v166
    %1396 = vmatpush1.msra.mxu0 %v165
    %1397 = vmatprep.subr.mxu0 %v169
    %1398 = vmatpush1.msra.mxu0 %v168
    %1399 = vmatprep.subr.mxu0 %v172
    %1400 = vmatpush1.msra.mxu0 %v171
    %1401 = vmatprep.subr.mxu0 %v175
    %1402 = vmatpush1.msra.mxu0 %v174
    %1403 = vmatprep.subr.mxu0 %v178
    %1404 = vmatpush1.msra.mxu0 %v177
    %1405 = vmatprep.subr.mxu0 %v181
    %1406 = vmatpush1.msra.mxu0 %v180
    %1407 = vmatprep.subr.mxu0 %v184
    %1408 = vmatpush1.msra.mxu0 %v183
    %1409 = vmatprep.subr.mxu0 %v187
    %1410 = vmatpush1.msra.mxu0 %v186
    %1411 = vmatprep.subr.mxu0 %v190
    %1412 = vmatpush1.msra.mxu0 %v189
    %1413 = vmatprep.subr.mxu0 %v193
    %1414 = vmatpush1.msra.mxu0 %v192
    %1415 = vmatprep.subr.mxu0 %v196
    %1416 = vmatpush1.msra.mxu0 %v195
    %1417 = vmatprep.subr.mxu0 %v199
    %1418 = vmatpush1.msra.mxu0 %v198
    %1419 = vmatprep.subr.mxu0 %v202
    %1420 = vmatpush1.msra.mxu0 %v201
    %1421 = vmatprep.subr.mxu0 %v205
    %1422 = vmatpush1.msra.mxu0 %v204
    %1423 = vmatprep.subr.mxu0 %v208
    %1424 = vmatpush1.msra.mxu0 %v207
    %1425 = vmatprep.subr.mxu0 0.0
    %1426 = vmatpush1.msra.mxu0 0.0
    %1427 = vmatprep.subr.mxu0 0.0
    %1428 = vmatpush1.msra.mxu0 0.0
    %1429 = vmatprep.subr.mxu0 0.0
    %1430 = vmatpush1.msra.mxu0 0.0
    %1431 = vmatprep.subr.mxu0 0.0
    %1432 = vmatpush1.msra.mxu0 0.0
    %1433 = vmatprep.mubr.f32.mxu0 %v1357
    %1434 = vmatmul.mubr.f32.gmra.mrb[0].mxu0 %v119
    %v1435 = vpop.f32.mrb[0].mxu0
    %v1436 = vadd.f32 0.0, %v1435
    %v1437 = vpop.f32.mrb[0].mxu0
    %v1438 = vadd.f32 0.0, %v1437
    %1439 = vmatprep.mubr.f32.mxu0 %v1359
    %1440 = vmatmul.mubr.f32.gmra.mrb[0].mxu0 %v1309
    %v1441 = vpop.f32.mrb[0].mxu0
    %v1442 = vadd.f32 0.0, %v1441
    %v1443 = vpop.f32.mrb[0].mxu0
    %v1444 = vadd.f32 0.0, %v1443
    %1445 = vmatprep.mubr.f32.mxu0 %v1361
    %1446 = vmatmul.mubr.f32.gmra.mrb[0].mxu0 %v1320
    %v1447 = vpop.f32.mrb[0].mxu0
    %v1448 = vadd.f32 0.0, %v1447
    %v1449 = vpop.f32.mrb[0].mxu0
    %v1450 = vadd.f32 0.0, %v1449
    %1451 = vmatprep.mubr.f32.mxu0 %v1363
    %1452 = vmatmul.mubr.f32.gmra.mrb[0].mxu0 %v1331
    %v1453 = vpop.f32.mrb[0].mxu0
    %v1454 = vadd.f32 0.0, %v1453
    %v1455 = vpop.f32.mrb[0].mxu0
    %v1456 = vadd.f32 0.0, %v1455
    %1457 = vmatprep.mubr.f32.mxu0 %v1365
    %1458 = vmatmul.mubr.f32.gmra.mrb[0].mxu0 %v1342
    %v1459 = vpop.f32.mrb[0].mxu0
    %v1460 = vadd.f32 0.0, %v1459
    %v1461 = vpop.f32.mrb[0].mxu0
    %v1462 = vadd.f32 0.0, %v1461
    %1463 = vmatprep.mubr.f32.mxu0 %v1367
    %1464 = vmatmul.mubr.f32.gmra.mrb[0].mxu0 %v1353
    %v1465 = vpop.f32.mrb[0].mxu0
    %v1466 = vadd.f32 0.0, %v1465
    %v1467 = vpop.f32.mrb[0].mxu0
    %v1468 = vadd.f32 0.0, %v1467
    %1469 = vdwg.mxu0
    %1470 = vmatprep.subr.mxu0 0.0
    %1471 = vmatpush1.msra.mxu0 %v128
    %1472 = vmatprep.subr.mxu0 0.0
    %1473 = vmatpush1.msra.mxu0 %v131
    %1474 = vmatprep.subr.mxu0 0.0
    %1475 = vmatpush1.msra.mxu0 %v134
    %1476 = vmatprep.subr.mxu0 0.0
    %1477 = vmatpush1.msra.mxu0 %v137
    %1478 = vmatprep.subr.mxu0 0.0
    %1479 = vmatpush1.msra.mxu0 %v140
    %1480 = vmatprep.subr.mxu0 0.0
    %1481 = vmatpush1.msra.mxu0 %v143
    %1482 = vmatprep.subr.mxu0 0.0
    %1483 = vmatpush1.msra.mxu0 %v146
    %1484 = vmatprep.subr.mxu0 0.0
    %1485 = vmatpush1.msra.mxu0 %v149
    %1486 = vmatprep.subr.mxu0 0.0
    %1487 = vmatpush1.msra.mxu0 %v152
    %1488 = vmatprep.subr.mxu0 0.0
    %1489 = vmatpush1.msra.mxu0 %v155
    %1490 = vmatprep.subr.mxu0 0.0
    %1491 = vmatpush1.msra.mxu0 %v158
    %1492 = vmatprep.subr.mxu0 0.0
    %1493 = vmatpush1.msra.mxu0 %v161
    %1494 = vmatprep.subr.mxu0 0.0
    %1495 = vmatpush1.msra.mxu0 %v164
    %1496 = vmatprep.subr.mxu0 0.0
    %1497 = vmatpush1.msra.mxu0 %v167
    %1498 = vmatprep.subr.mxu0 0.0
    %1499 = vmatpush1.msra.mxu0 %v170
    %1500 = vmatprep.subr.mxu0 0.0
    %1501 = vmatpush1.msra.mxu0 %v173
    %1502 = vmatprep.subr.mxu0 0.0
    %1503 = vmatpush1.msra.mxu0 %v176
    %1504 = vmatprep.subr.mxu0 0.0
    %1505 = vmatpush1.msra.mxu0 %v179
    %1506 = vmatprep.subr.mxu0 0.0
    %1507 = vmatpush1.msra.mxu0 %v182
    %1508 = vmatprep.subr.mxu0 0.0
    %1509 = vmatpush1.msra.mxu0 %v185
    %1510 = vmatprep.subr.mxu0 0.0
    %1511 = vmatpush1.msra.mxu0 %v188
    %1512 = vmatprep.subr.mxu0 0.0
    %1513 = vmatpush1.msra.mxu0 %v191
    %1514 = vmatprep.subr.mxu0 0.0
    %1515 = vmatpush1.msra.mxu0 %v194
    %1516 = vmatprep.subr.mxu0 0.0
    %1517 = vmatpush1.msra.mxu0 %v197
    %1518 = vmatprep.subr.mxu0 0.0
    %1519 = vmatpush1.msra.mxu0 %v200
    %1520 = vmatprep.subr.mxu0 0.0
    %1521 = vmatpush1.msra.mxu0 %v203
    %1522 = vmatprep.subr.mxu0 0.0
    %1523 = vmatpush1.msra.mxu0 %v206
    %1524 = vmatprep.subr.mxu0 0.0
    %1525 = vmatpush1.msra.mxu0 %v209
    %1526 = vmatprep.subr.mxu0 0.0
    %1527 = vmatpush1.msra.mxu0 0.0
    %1528 = vmatprep.subr.mxu0 0.0
    %1529 = vmatpush1.msra.mxu0 0.0
    %1530 = vmatprep.subr.mxu0 0.0
    %1531 = vmatpush1.msra.mxu0 0.0
    %1532 = vmatprep.subr.mxu0 0.0
    %1533 = vmatpush1.msra.mxu0 0.0
    %1534 = vmatprep.mubr.f32.mxu0 %v1357
    %1535 = vmatmul.mubr.f32.gmra.mrb[0].mxu0 %v119
    %v1536 = vpop.f32.mrb[0].mxu0
    %v1537 = vadd.f32 0.0, %v1536
    %v1538 = vpop.f32.mrb[0].mxu0
    %1539 = vmatprep.mubr.f32.mxu0 %v1359
    %1540 = vmatmul.mubr.f32.gmra.mrb[0].mxu0 %v1309
    %v1541 = vpop.f32.mrb[0].mxu0
    %v1542 = vadd.f32 0.0, %v1541
    %v1543 = vpop.f32.mrb[0].mxu0
    %1544 = vmatprep.mubr.f32.mxu0 %v1361
    %1545 = vmatmul.mubr.f32.gmra.mrb[0].mxu0 %v1320
    %v1546 = vpop.f32.mrb[0].mxu0
    %v1547 = vadd.f32 0.0, %v1546
    %v1548 = vpop.f32.mrb[0].mxu0
    %1549 = vmatprep.mubr.f32.mxu0 %v1363
    %1550 = vmatmul.mubr.f32.gmra.mrb[0].mxu0 %v1331
    %v1551 = vpop.f32.mrb[0].mxu0
    %v1552 = vadd.f32 0.0, %v1551
    %v1553 = vpop.f32.mrb[0].mxu0
    %1554 = vmatprep.mubr.f32.mxu0 %v1365
    %1555 = vmatmul.mubr.f32.gmra.mrb[0].mxu0 %v1342
    %v1556 = vpop.f32.mrb[0].mxu0
    %v1557 = vadd.f32 0.0, %v1556
    %v1558 = vpop.f32.mrb[0].mxu0
    %1559 = vmatprep.mubr.f32.mxu0 %v1367
    %1560 = vmatmul.mubr.f32.gmra.mrb[0].mxu0 %v1353
    %v1561 = vpop.f32.mrb[0].mxu0
    %v1562 = vadd.f32 0.0, %v1561
    %v1563 = vpop.f32.mrb[0].mxu0
    %1564 = vdwg.mxu0
    %1577 = vrot.lane.b32.xlu0 %v1438, 80
    %v1578 = vpop.permute.xlu0 %1577
    %1579 = vrot.lane.b32.xlu0 %v1537, 80
    %v1580 = vpop.permute.xlu0 %1579
    %1581 = vrot.lane.b32.xlu0 %v1444, 80
    %v1582 = vpop.permute.xlu0 %1581
    %1583 = vrot.lane.b32.xlu0 %v1542, 80
    %v1584 = vpop.permute.xlu0 %1583
    %1585 = vrot.lane.b32.xlu0 %v1450, 80
    %v1586 = vpop.permute.xlu0 %1585
    %1587 = vrot.lane.b32.xlu0 %v1547, 80
    %v1588 = vpop.permute.xlu0 %1587
    %1589 = vrot.lane.b32.xlu0 %v1456, 80
    %v1590 = vpop.permute.xlu0 %1589
    %1591 = vrot.lane.b32.xlu0 %v1552, 80
    %v1592 = vpop.permute.xlu0 %1591
    %1593 = vrot.lane.b32.xlu0 %v1462, 80
    %v1594 = vpop.permute.xlu0 %1593
    %1595 = vrot.lane.b32.xlu0 %v1557, 80
    %v1596 = vpop.permute.xlu0 %1595
    %1597 = vrot.lane.b32.xlu0 %v1468, 80
    %v1598 = vpop.permute.xlu0 %1597
    %1599 = vrot.lane.b32.xlu0 %v1562, 80
    %v1600 = vpop.permute.xlu0 %1599
    %v1601 = vsel %vm1352, %v1578, %v1580
    %v1602 = vsel %vm1352, %v1582, %v1584
    %v1603 = vsel %vm1352, %v1586, %v1588
    %v1604 = vsel %vm1352, %v1590, %v1592
    %v1605 = vsel %vm1352, %v1594, %v1596
    %v1606 = vsel %vm1352, %v1598, %v1600
    %v1619 = vmax.f32 %v1436, %v1601
    %v1620 = vmax.f32 %v1438, %v1580
    %v1621 = vmax.f32 %v1442, %v1602
    %v1622 = vmax.f32 %v1444, %v1584
    %v1623 = vmax.f32 %v1448, %v1603
    %v1624 = vmax.f32 %v1450, %v1588
    %v1625 = vmax.f32 %v1454, %v1604
    %v1626 = vmax.f32 %v1456, %v1592
    %v1627 = vmax.f32 %v1460, %v1605
    %v1628 = vmax.f32 %v1462, %v1596
    %v1629 = vmax.f32 %v1466, %v1606
    %v1630 = vmax.f32 %v1468, %v1600
    %1643 = vrot.lane.b32.xlu0 %v1619, 40
    %v1644 = vpop.permute.xlu0 %1643
    %1645 = vrot.lane.b32.xlu0 %v1620, 40
    %v1646 = vpop.permute.xlu0 %1645
    %1647 = vrot.lane.b32.xlu0 %v1621, 40
    %v1648 = vpop.permute.xlu0 %1647
    %1649 = vrot.lane.b32.xlu0 %v1622, 40
    %v1650 = vpop.permute.xlu0 %1649
    %1651 = vrot.lane.b32.xlu0 %v1623, 40
    %v1652 = vpop.permute.xlu0 %1651
    %1653 = vrot.lane.b32.xlu0 %v1624, 40
    %v1654 = vpop.permute.xlu0 %1653
    %1655 = vrot.lane.b32.xlu0 %v1625, 40
    %v1656 = vpop.permute.xlu0 %1655
    %1657 = vrot.lane.b32.xlu0 %v1626, 40
    %v1658 = vpop.permute.xlu0 %1657
    %1659 = vrot.lane.b32.xlu0 %v1627, 40
    %v1660 = vpop.permute.xlu0 %1659
    %1661 = vrot.lane.b32.xlu0 %v1628, 40
    %v1662 = vpop.permute.xlu0 %1661
    %1663 = vrot.lane.b32.xlu0 %v1629, 40
    %v1664 = vpop.permute.xlu0 %1663
    %1665 = vrot.lane.b32.xlu0 %v1630, 40
    %v1666 = vpop.permute.xlu0 %1665
    %vm1667 = vcmask 326656
    %v1668 = vsel %vm1667, %v1644, %v1646
    %v1669 = vsel %vm1667, %v1648, %v1650
    %v1670 = vsel %vm1667, %v1652, %v1654
    %v1671 = vsel %vm1667, %v1656, %v1658
    %v1672 = vsel %vm1667, %v1660, %v1662
    %v1673 = vsel %vm1667, %v1664, %v1666
    %v1680 = vmax.f32 %v1619, %v1668
    %v1681 = vmax.f32 %v1621, %v1669
    %v1682 = vmax.f32 %v1623, %v1670
    %v1683 = vmax.f32 %v1625, %v1671
    %v1684 = vmax.f32 %v1627, %v1672
    %v1685 = vmax.f32 %v1629, %v1673
    %v1686 = vld [vmem:[#allocation4] sm:$0x1]
    %v1688 = vlaneseq
    %v1689 = vshrl.u32 %v1688, 7
    %v1690 = vsub.s32 0, %v1689
    %v1691 = vrot.slane %v1686, %v1690
    %v1693 = vadd.f32 %v1680, %v1691
    %v1694 = vadd.f32 %v1681, %v1691
    %v1695 = vadd.f32 %v1682, %v1691
    %v1696 = vadd.f32 %v1683, %v1691
    %v1697 = vadd.f32 %v1684, %v1691
    %v1698 = vadd.f32 %v1685, %v1691
    %v1699 = vmax.f32 %v1693, 0.0
    %v1700 = vmax.f32 %v1694, 0.0
    %v1701 = vmax.f32 %v1695, 0.0
    %v1702 = vmax.f32 %v1696, 0.0
    %v1703 = vmax.f32 %v1697, 0.0
    %v1704 = vmax.f32 %v1698, 0.0
    %1705 = vrot.lane.b32.xlu0 %v122, 16
    %v1706 = vpop.permute.xlu0 %1705
    %v1707 = vsel %vm1308, %v1307, %v1706
    %1708 = vrot.lane.b32.xlu0 %v119, 72
    %v1709 = vpop.permute.xlu0 %1708
    %1710 = vrot.lane.b32.xlu0 %v120, 72
    %v1711 = vpop.permute.xlu0 %1710
    %1712 = vrot.lane.b32.xlu0 %v121, 72
    %v1713 = vpop.permute.xlu0 %1712
    %1714 = vrot.lane.b32.xlu0 %v1305, 72
    %v1715 = vpop.permute.xlu0 %1714
    %1716 = vrot.lane.b32.xlu0 %v1310, 72
    %v1717 = vpop.permute.xlu0 %1716
    %1718 = vrot.lane.b32.xlu0 %v1707, 72
    %v1719 = vpop.permute.xlu0 %1718
    %1720 = vrot.lane.b32.xlu0 %v1316, 72
    %v1721 = vpop.permute.xlu0 %1720
    %1722 = vrot.lane.b32.xlu0 %v1321, 72
    %v1723 = vpop.permute.xlu0 %1722
    %1724 = vrot.lane.b32.xlu0 %v1318, 72
    %v1725 = vpop.permute.xlu0 %1724
    %1726 = vrot.lane.b32.xlu0 %v1327, 72
    %v1727 = vpop.permute.xlu0 %1726
    %1728 = vrot.lane.b32.xlu0 %v1332, 72
    %v1729 = vpop.permute.xlu0 %1728
    %1730 = vrot.lane.b32.xlu0 %v1329, 72
    %v1731 = vpop.permute.xlu0 %1730
    %1732 = vrot.lane.b32.xlu0 %v1342, 72
    %v1733 = vpop.permute.xlu0 %1732
    %1734 = vrot.lane.b32.xlu0 %v1343, 72
    %v1735 = vpop.permute.xlu0 %1734
    %1736 = vrot.lane.b32.xlu0 %v1340, 72
    %v1737 = vpop.permute.xlu0 %1736
    %vm1738 = vcmask 588800
    %v1739 = vsel %vm1738, %v1709, %v1711
    %v1740 = vsel %vm1738, %v1711, %v1713
    %v1741 = vsel %vm1738, %v1715, %v1717
    %v1742 = vsel %vm1738, %v1717, %v1719
    %v1743 = vsel %vm1738, %v1721, %v1723
    %v1744 = vsel %vm1738, %v1723, %v1725
    %v1745 = vsel %vm1738, %v1727, %v1729
    %v1746 = vsel %vm1738, %v1729, %v1731
    %v1747 = vsel %vm1738, %v1733, %v1735
    %v1748 = vsel %vm1738, %v1735, %v1737
    %v1754 = vsel %vm1356, %v1740, 0
    %v1756 = vsel %vm1356, %v1742, 0
    %v1758 = vsel %vm1356, %v1744, 0
    %v1760 = vsel %vm1356, %v1746, 0
    %v1762 = vsel %vm1356, %v1748, 0
    %1764 = vmatprep.subr.mxu0 %v127
    %1765 = vmatpush1.msra.mxu0 %v126
    %1766 = vmatprep.subr.mxu0 %v130
    %1767 = vmatpush1.msra.mxu0 %v129
    %1768 = vmatprep.subr.mxu0 %v133
    %1769 = vmatpush1.msra.mxu0 %v132
    %1770 = vmatprep.subr.mxu0 %v136
    %1771 = vmatpush1.msra.mxu0 %v135
    %1772 = vmatprep.subr.mxu0 %v139
    %1773 = vmatpush1.msra.mxu0 %v138
    %1774 = vmatprep.subr.mxu0 %v142
    %1775 = vmatpush1.msra.mxu0 %v141
    %1776 = vmatprep.subr.mxu0 %v145
    %1777 = vmatpush1.msra.mxu0 %v144
    %1778 = vmatprep.subr.mxu0 %v148
    %1779 = vmatpush1.msra.mxu0 %v147
    %1780 = vmatprep.subr.mxu0 %v151
    %1781 = vmatpush1.msra.mxu0 %v150
    %1782 = vmatprep.subr.mxu0 %v154
    %1783 = vmatpush1.msra.mxu0 %v153
    %1784 = vmatprep.subr.mxu0 %v157
    %1785 = vmatpush1.msra.mxu0 %v156
    %1786 = vmatprep.subr.mxu0 %v160
    %1787 = vmatpush1.msra.mxu0 %v159
    %1788 = vmatprep.subr.mxu0 %v163
    %1789 = vmatpush1.msra.mxu0 %v162
    %1790 = vmatprep.subr.mxu0 %v166
    %1791 = vmatpush1.msra.mxu0 %v165
    %1792 = vmatprep.subr.mxu0 %v169
    %1793 = vmatpush1.msra.mxu0 %v168
    %1794 = vmatprep.subr.mxu0 %v172
    %1795 = vmatpush1.msra.mxu0 %v171
    %1796 = vmatprep.subr.mxu0 %v175
    %1797 = vmatpush1.msra.mxu0 %v174
    %1798 = vmatprep.subr.mxu0 %v178
    %1799 = vmatpush1.msra.mxu0 %v177
    %1800 = vmatprep.subr.mxu0 %v181
    %1801 = vmatpush1.msra.mxu0 %v180
    %1802 = vmatprep.subr.mxu0 %v184
    %1803 = vmatpush1.msra.mxu0 %v183
    %1804 = vmatprep.subr.mxu0 %v187
    %1805 = vmatpush1.msra.mxu0 %v186
    %1806 = vmatprep.subr.mxu0 %v190
    %1807 = vmatpush1.msra.mxu0 %v189
    %1808 = vmatprep.subr.mxu0 %v193
    %1809 = vmatpush1.msra.mxu0 %v192
    %1810 = vmatprep.subr.mxu0 %v196
    %1811 = vmatpush1.msra.mxu0 %v195
    %1812 = vmatprep.subr.mxu0 %v199
    %1813 = vmatpush1.msra.mxu0 %v198
    %1814 = vmatprep.subr.mxu0 %v202
    %1815 = vmatpush1.msra.mxu0 %v201
    %1816 = vmatprep.subr.mxu0 %v205
    %1817 = vmatpush1.msra.mxu0 %v204
    %1818 = vmatprep.subr.mxu0 %v208
    %1819 = vmatpush1.msra.mxu0 %v207
    %1820 = vmatprep.subr.mxu0 0.0
    %1821 = vmatpush1.msra.mxu0 0.0
    %1822 = vmatprep.subr.mxu0 0.0
    %1823 = vmatpush1.msra.mxu0 0.0
    %1824 = vmatprep.subr.mxu0 0.0
    %1825 = vmatpush1.msra.mxu0 0.0
    %1826 = vmatprep.subr.mxu0 0.0
    %1827 = vmatpush1.msra.mxu0 0.0
    %1828 = vmatprep.mubr.f32.mxu0 %v1754
    %1829 = vmatmul.mubr.f32.gmra.mrb[0].mxu0 %v1739
    %v1830 = vpop.f32.mrb[0].mxu0
    %v1831 = vadd.f32 0.0, %v1830
    %v1832 = vpop.f32.mrb[0].mxu0
    %v1833 = vadd.f32 0.0, %v1832
    %1834 = vmatprep.mubr.f32.mxu0 %v1756
    %1835 = vmatmul.mubr.f32.gmra.mrb[0].mxu0 %v1741
    %v1836 = vpop.f32.mrb[0].mxu0
    %v1837 = vadd.f32 0.0, %v1836
    %v1838 = vpop.f32.mrb[0].mxu0
    %v1839 = vadd.f32 0.0, %v1838
    %1840 = vmatprep.mubr.f32.mxu0 %v1758
    %1841 = vmatmul.mubr.f32.gmra.mrb[0].mxu0 %v1743
    %v1842 = vpop.f32.mrb[0].mxu0
    %v1843 = vadd.f32 0.0, %v1842
    %v1844 = vpop.f32.mrb[0].mxu0
    %v1845 = vadd.f32 0.0, %v1844
    %1846 = vmatprep.mubr.f32.mxu0 %v1760
    %1847 = vmatmul.mubr.f32.gmra.mrb[0].mxu0 %v1745
    %v1848 = vpop.f32.mrb[0].mxu0
    %v1849 = vadd.f32 0.0, %v1848
    %v1850 = vpop.f32.mrb[0].mxu0
    %v1851 = vadd.f32 0.0, %v1850
    %1852 = vmatprep.mubr.f32.mxu0 %v1762
    %1853 = vmatmul.mubr.f32.gmra.mrb[0].mxu0 %v1747
    %v1854 = vpop.f32.mrb[0].mxu0
    %v1855 = vadd.f32 0.0, %v1854
    %v1856 = vpop.f32.mrb[0].mxu0
    %v1857 = vadd.f32 0.0, %v1856
    %1858 = vdwg.mxu0
    %1859 = vmatprep.subr.mxu0 0.0
    %1860 = vmatpush1.msra.mxu0 %v128
    %1861 = vmatprep.subr.mxu0 0.0
    %1862 = vmatpush1.msra.mxu0 %v131
    %1863 = vmatprep.subr.mxu0 0.0
    %1864 = vmatpush1.msra.mxu0 %v134
    %1865 = vmatprep.subr.mxu0 0.0
    %1866 = vmatpush1.msra.mxu0 %v137
    %1867 = vmatprep.subr.mxu0 0.0
    %1868 = vmatpush1.msra.mxu0 %v140
    %1869 = vmatprep.subr.mxu0 0.0
    %1870 = vmatpush1.msra.mxu0 %v143
    %1871 = vmatprep.subr.mxu0 0.0
    %1872 = vmatpush1.msra.mxu0 %v146
    %1873 = vmatprep.subr.mxu0 0.0
    %1874 = vmatpush1.msra.mxu0 %v149
    %1875 = vmatprep.subr.mxu0 0.0
    %1876 = vmatpush1.msra.mxu0 %v152
    %1877 = vmatprep.subr.mxu0 0.0
    %1878 = vmatpush1.msra.mxu0 %v155
    %1879 = vmatprep.subr.mxu0 0.0
    %1880 = vmatpush1.msra.mxu0 %v158
    %1881 = vmatprep.subr.mxu0 0.0
    %1882 = vmatpush1.msra.mxu0 %v161
    %1883 = vmatprep.subr.mxu0 0.0
    %1884 = vmatpush1.msra.mxu0 %v164
    %1885 = vmatprep.subr.mxu0 0.0
    %1886 = vmatpush1.msra.mxu0 %v167
    %1887 = vmatprep.subr.mxu0 0.0
    %1888 = vmatpush1.msra.mxu0 %v170
    %1889 = vmatprep.subr.mxu0 0.0
    %1890 = vmatpush1.msra.mxu0 %v173
    %1891 = vmatprep.subr.mxu0 0.0
    %1892 = vmatpush1.msra.mxu0 %v176
    %1893 = vmatprep.subr.mxu0 0.0
    %1894 = vmatpush1.msra.mxu0 %v179
    %1895 = vmatprep.subr.mxu0 0.0
    %1896 = vmatpush1.msra.mxu0 %v182
    %1897 = vmatprep.subr.mxu0 0.0
    %1898 = vmatpush1.msra.mxu0 %v185
    %1899 = vmatprep.subr.mxu0 0.0
    %1900 = vmatpush1.msra.mxu0 %v188
    %1901 = vmatprep.subr.mxu0 0.0
    %1902 = vmatpush1.msra.mxu0 %v191
    %1903 = vmatprep.subr.mxu0 0.0
    %1904 = vmatpush1.msra.mxu0 %v194
    %1905 = vmatprep.subr.mxu0 0.0
    %1906 = vmatpush1.msra.mxu0 %v197
    %1907 = vmatprep.subr.mxu0 0.0
    %1908 = vmatpush1.msra.mxu0 %v200
    %1909 = vmatprep.subr.mxu0 0.0
    %1910 = vmatpush1.msra.mxu0 %v203
    %1911 = vmatprep.subr.mxu0 0.0
    %1912 = vmatpush1.msra.mxu0 %v206
    %1913 = vmatprep.subr.mxu0 0.0
    %1914 = vmatpush1.msra.mxu0 %v209
    %1915 = vmatprep.subr.mxu0 0.0
    %1916 = vmatpush1.msra.mxu0 0.0
    %1917 = vmatprep.subr.mxu0 0.0
    %1918 = vmatpush1.msra.mxu0 0.0
    %1919 = vmatprep.subr.mxu0 0.0
    %1920 = vmatpush1.msra.mxu0 0.0
    %1921 = vmatprep.subr.mxu0 0.0
    %1922 = vmatpush1.msra.mxu0 0.0
    %1923 = vmatprep.mubr.f32.mxu0 %v1754
    %1924 = vmatmul.mubr.f32.gmra.mrb[0].mxu0 %v1739
    %v1925 = vpop.f32.mrb[0].mxu0
    %v1926 = vadd.f32 0.0, %v1925
    %v1927 = vpop.f32.mrb[0].mxu0
    %1928 = vmatprep.mubr.f32.mxu0 %v1756
    %1929 = vmatmul.mubr.f32.gmra.mrb[0].mxu0 %v1741
    %v1930 = vpop.f32.mrb[0].mxu0
    %v1931 = vadd.f32 0.0, %v1930
    %v1932 = vpop.f32.mrb[0].mxu0
    %1933 = vmatprep.mubr.f32.mxu0 %v1758
    %1934 = vmatmul.mubr.f32.gmra.mrb[0].mxu0 %v1743
    %v1935 = vpop.f32.mrb[0].mxu0
    %v1936 = vadd.f32 0.0, %v1935
    %v1937 = vpop.f32.mrb[0].mxu0
    %1938 = vmatprep.mubr.f32.mxu0 %v1760
    %1939 = vmatmul.mubr.f32.gmra.mrb[0].mxu0 %v1745
    %v1940 = vpop.f32.mrb[0].mxu0
    %v1941 = vadd.f32 0.0, %v1940
    %v1942 = vpop.f32.mrb[0].mxu0
    %1943 = vmatprep.mubr.f32.mxu0 %v1762
    %1944 = vmatmul.mubr.f32.gmra.mrb[0].mxu0 %v1747
    %v1945 = vpop.f32.mrb[0].mxu0
    %v1946 = vadd.f32 0.0, %v1945
    %v1947 = vpop.f32.mrb[0].mxu0
    %1948 = vdwg.mxu0
    %1959 = vrot.lane.b32.xlu0 %v1833, 80
    %v1960 = vpop.permute.xlu0 %1959
    %1961 = vrot.lane.b32.xlu0 %v1926, 80
    %v1962 = vpop.permute.xlu0 %1961
    %1963 = vrot.lane.b32.xlu0 %v1839, 80
    %v1964 = vpop.permute.xlu0 %1963
    %1965 = vrot.lane.b32.xlu0 %v1931, 80
    %v1966 = vpop.permute.xlu0 %1965
    %1967 = vrot.lane.b32.xlu0 %v1845, 80
    %v1968 = vpop.permute.xlu0 %1967
    %1969 = vrot.lane.b32.xlu0 %v1936, 80
    %v1970 = vpop.permute.xlu0 %1969
    %1971 = vrot.lane.b32.xlu0 %v1851, 80
    %v1972 = vpop.permute.xlu0 %1971
    %1973 = vrot.lane.b32.xlu0 %v1941, 80
    %v1974 = vpop.permute.xlu0 %1973
    %1975 = vrot.lane.b32.xlu0 %v1857, 80
    %v1976 = vpop.permute.xlu0 %1975
    %1977 = vrot.lane.b32.xlu0 %v1946, 80
    %v1978 = vpop.permute.xlu0 %1977
    %v1979 = vsel %vm1352, %v1960, %v1962
    %v1980 = vsel %vm1352, %v1964, %v1966
    %v1981 = vsel %vm1352, %v1968, %v1970
    %v1982 = vsel %vm1352, %v1972, %v1974
    %v1983 = vsel %vm1352, %v1976, %v1978
    %v1994 = vmax.f32 %v1831, %v1979
    %v1995 = vmax.f32 %v1833, %v1962
    %v1996 = vmax.f32 %v1837, %v1980
    %v1997 = vmax.f32 %v1839, %v1966
    %v1998 = vmax.f32 %v1843, %v1981
    %v1999 = vmax.f32 %v1845, %v1970
    %v2000 = vmax.f32 %v1849, %v1982
    %v2001 = vmax.f32 %v1851, %v1974
    %v2002 = vmax.f32 %v1855, %v1983
    %v2003 = vmax.f32 %v1857, %v1978
    %2014 = vrot.lane.b32.xlu0 %v1994, 40
    %v2015 = vpop.permute.xlu0 %2014
    %2016 = vrot.lane.b32.xlu0 %v1995, 40
    %v2017 = vpop.permute.xlu0 %2016
    %2018 = vrot.lane.b32.xlu0 %v1996, 40
    %v2019 = vpop.permute.xlu0 %2018
    %2020 = vrot.lane.b32.xlu0 %v1997, 40
    %v2021 = vpop.permute.xlu0 %2020
    %2022 = vrot.lane.b32.xlu0 %v1998, 40
    %v2023 = vpop.permute.xlu0 %2022
    %2024 = vrot.lane.b32.xlu0 %v1999, 40
    %v2025 = vpop.permute.xlu0 %2024
    %2026 = vrot.lane.b32.xlu0 %v2000, 40
    %v2027 = vpop.permute.xlu0 %2026
    %2028 = vrot.lane.b32.xlu0 %v2001, 40
    %v2029 = vpop.permute.xlu0 %2028
    %2030 = vrot.lane.b32.xlu0 %v2002, 40
    %v2031 = vpop.permute.xlu0 %2030
    %2032 = vrot.lane.b32.xlu0 %v2003, 40
    %v2033 = vpop.permute.xlu0 %2032
    %v2034 = vsel %vm1667, %v2015, %v2017
    %v2035 = vsel %vm1667, %v2019, %v2021
    %v2036 = vsel %vm1667, %v2023, %v2025
    %v2037 = vsel %vm1667, %v2027, %v2029
    %v2038 = vsel %vm1667, %v2031, %v2033
    %v2044 = vmax.f32 %v1994, %v2034
    %v2045 = vmax.f32 %v1996, %v2035
    %v2046 = vmax.f32 %v1998, %v2036
    %v2047 = vmax.f32 %v2000, %v2037
    %v2048 = vmax.f32 %v2002, %v2038
    %v2049 = vadd.f32 %v2044, %v1691
    %v2050 = vadd.f32 %v2045, %v1691
    %v2051 = vadd.f32 %v2046, %v1691
    %v2052 = vadd.f32 %v2047, %v1691
    %v2053 = vadd.f32 %v2048, %v1691
    %v2054 = vmax.f32 %v2049, 0.0
    %v2055 = vmax.f32 %v2050, 0.0
    %v2056 = vmax.f32 %v2051, 0.0
    %v2057 = vmax.f32 %v2052, 0.0
    %v2058 = vmax.f32 %v2053, 0.0
    %2060 = vrot.lane.b32.xlu0 %v2054, 88
    %v2061 = vpop.permute.xlu0 %2060
    %2064 = vrot.lane.b32.xlu0 %v1700, 48
    %v2065 = vpop.permute.xlu0 %2064
    %2068 = vrot.lane.b32.xlu0 %v2055, 8
    %v2069 = vpop.permute.xlu0 %2068
    %2072 = vrot.lane.b32.xlu0 %v1701, 96
    %v2073 = vpop.permute.xlu0 %2072
    %2076 = vrot.lane.b32.xlu0 %v2056, 56
    %v2077 = vpop.permute.xlu0 %2076
    %2080 = vrot.lane.b32.xlu0 %v1702, 16
    %v2081 = vpop.permute.xlu0 %2080
    %2084 = vrot.lane.b32.xlu0 %v2057, 104
    %v2085 = vpop.permute.xlu0 %2084
    %2088 = vrot.lane.b32.xlu0 %v1703, 64
    %v2089 = vpop.permute.xlu0 %2088
    %2092 = vrot.lane.b32.xlu0 %v2058, 24
    %v2093 = vpop.permute.xlu0 %2092
    %2096 = vrot.lane.b32.xlu0 %v1704, 112
    %v2097 = vpop.permute.xlu0 %2096
    %vm2099 = vcmask 719872
    %v2100 = vsel %vm2099, %v1699, %v2061
    %v2101 = vsel %vm1330, %v2061, %v2065
    %vm2102 = vcmask 64512
    %v2103 = vsel %vm2102, %v2065, %v2069
    %v2104 = vsel %vm1356, %v2103, %v2073
    %vm2105 = vcmask 457728
    %v2106 = vsel %vm2105, %v2073, %v2077
    %v2107 = vsel %vm1308, %v2077, %v2081
    %vm2108 = vcmask 850944
    %v2109 = vsel %vm2108, %v2107, %v2085
    %v2110 = vsel %vm1341, %v2085, %v2089
    %vm2111 = vcmask 195584
    %v2112 = vsel %vm2111, %v2089, %v2093
    %vm2113 = vcmask 916480
    %v2114 = vsel %vm2113, %v2112, %v2097
    %v2115 = vsel %vm1738, %v2097, 0
    %2117 = vmatprep.subr.mxu0 %v211
    %2118 = vmatpush1.msra.mxu0 %v210
    %2119 = vmatprep.subr.mxu0 %v220
    %2120 = vmatpush1.msra.mxu0 %v219
    %2121 = vmatprep.subr.mxu0 %v229
    %2122 = vmatpush1.msra.mxu0 %v228
    %2123 = vmatprep.subr.mxu0 %v238
    %2124 = vmatpush1.msra.mxu0 %v237
    %2125 = vmatprep.subr.mxu0 %v247
    %2126 = vmatpush1.msra.mxu0 %v246
    %2127 = vmatprep.subr.mxu0 %v256
    %2128 = vmatpush1.msra.mxu0 %v255
    %2129 = vmatprep.subr.mxu0 %v265
    %2130 = vmatpush1.msra.mxu0 %v264
    %2131 = vmatprep.subr.mxu0 %v274
    %2132 = vmatpush1.msra.mxu0 %v273
    %2133 = vmatprep.subr.mxu0 %v283
    %2134 = vmatpush1.msra.mxu0 %v282
    %2135 = vmatprep.subr.mxu0 %v292
    %2136 = vmatpush1.msra.mxu0 %v291
    %2137 = vmatprep.subr.mxu0 %v301
    %2138 = vmatpush1.msra.mxu0 %v300
    %2139 = vmatprep.subr.mxu0 %v310
    %2140 = vmatpush1.msra.mxu0 %v309
    %2141 = vmatprep.subr.mxu0 %v319
    %2142 = vmatpush1.msra.mxu0 %v318
    %2143 = vmatprep.subr.mxu0 %v328
    %2144 = vmatpush1.msra.mxu0 %v327
    %2145 = vmatprep.subr.mxu0 %v337
    %2146 = vmatpush1.msra.mxu0 %v336
    %2147 = vmatprep.subr.mxu0 %v346
    %2148 = vmatpush1.msra.mxu0 %v345
    %2149 = vmatprep.subr.mxu0 %v355
    %2150 = vmatpush1.msra.mxu0 %v354
    %2151 = vmatprep.subr.mxu0 %v364
    %2152 = vmatpush1.msra.mxu0 %v363
    %2153 = vmatprep.subr.mxu0 %v373
    %2154 = vmatpush1.msra.mxu0 %v372
    %2155 = vmatprep.subr.mxu0 %v382
    %2156 = vmatpush1.msra.mxu0 %v381
    %2157 = vmatprep.subr.mxu0 %v391
    %2158 = vmatpush1.msra.mxu0 %v390
    %2159 = vmatprep.subr.mxu0 %v400
    %2160 = vmatpush1.msra.mxu0 %v399
    %2161 = vmatprep.subr.mxu0 %v409
    %2162 = vmatpush1.msra.mxu0 %v408
    %2163 = vmatprep.subr.mxu0 %v418
    %2164 = vmatpush1.msra.mxu0 %v417
    %2165 = vmatprep.subr.mxu0 %v427
    %2166 = vmatpush1.msra.mxu0 %v426
    %2167 = vmatprep.subr.mxu0 %v436
    %2168 = vmatpush1.msra.mxu0 %v435
    %2169 = vmatprep.subr.mxu0 %v445
    %2170 = vmatpush1.msra.mxu0 %v444
    %2171 = vmatprep.subr.mxu0 %v454
    %2172 = vmatpush1.msra.mxu0 %v453
    %2173 = vmatprep.subr.mxu0 %v463
    %2174 = vmatpush1.msra.mxu0 %v462
    %2175 = vmatprep.subr.mxu0 %v472
    %2176 = vmatpush1.msra.mxu0 %v471
    %2177 = vmatprep.subr.mxu0 %v481
    %2178 = vmatpush1.msra.mxu0 %v480
    %2179 = vmatprep.subr.mxu0 %v490
    %2180 = vmatpush1.msra.mxu0 %v489
    %2181 = vmatprep.mubr.f32.mxu0 %v2101
    %2182 = vmatmul.mubr.f32.gmra.mrb[0].mxu0 %v2100
    %v2183 = vpop.f32.mrb[0].mxu0
    %v2184 = vadd.f32 0.0, %v2183
    %v2185 = vpop.f32.mrb[0].mxu0
    %v2186 = vadd.f32 0.0, %v2185
    %2187 = vdwg.mxu0
    %2188 = vmatprep.subr.mxu0 %v499
    %2189 = vmatpush1.msra.mxu0 %v498
    %2190 = vmatprep.subr.mxu0 %v508
    %2191 = vmatpush1.msra.mxu0 %v507
    %2192 = vmatprep.subr.mxu0 %v517
    %2193 = vmatpush1.msra.mxu0 %v516
    %2194 = vmatprep.subr.mxu0 %v526
    %2195 = vmatpush1.msra.mxu0 %v525
    %2196 = vmatprep.subr.mxu0 %v535
    %2197 = vmatpush1.msra.mxu0 %v534
    %2198 = vmatprep.subr.mxu0 %v544
    %2199 = vmatpush1.msra.mxu0 %v543
    %2200 = vmatprep.subr.mxu0 %v553
    %2201 = vmatpush1.msra.mxu0 %v552
    %2202 = vmatprep.subr.mxu0 %v562
    %2203 = vmatpush1.msra.mxu0 %v561
    %2204 = vmatprep.subr.mxu0 %v571
    %2205 = vmatpush1.msra.mxu0 %v570
    %2206 = vmatprep.subr.mxu0 %v580
    %2207 = vmatpush1.msra.mxu0 %v579
    %2208 = vmatprep.subr.mxu0 %v589
    %2209 = vmatpush1.msra.mxu0 %v588
    %2210 = vmatprep.subr.mxu0 %v598
    %2211 = vmatpush1.msra.mxu0 %v597
    %2212 = vmatprep.subr.mxu0 %v607
    %2213 = vmatpush1.msra.mxu0 %v606
    %2214 = vmatprep.subr.mxu0 %v616
    %2215 = vmatpush1.msra.mxu0 %v615
    %2216 = vmatprep.subr.mxu0 %v625
    %2217 = vmatpush1.msra.mxu0 %v624
    %2218 = vmatprep.subr.mxu0 %v634
    %2219 = vmatpush1.msra.mxu0 %v633
    %2220 = vmatprep.subr.mxu0 %v643
    %2221 = vmatpush1.msra.mxu0 %v642
    %2222 = vmatprep.subr.mxu0 %v652
    %2223 = vmatpush1.msra.mxu0 %v651
    %2224 = vmatprep.subr.mxu0 %v661
    %2225 = vmatpush1.msra.mxu0 %v660
    %2226 = vmatprep.subr.mxu0 %v670
    %2227 = vmatpush1.msra.mxu0 %v669
    %2228 = vmatprep.subr.mxu0 %v679
    %2229 = vmatpush1.msra.mxu0 %v678
    %2230 = vmatprep.subr.mxu0 %v688
    %2231 = vmatpush1.msra.mxu0 %v687
    %2232 = vmatprep.subr.mxu0 %v697
    %2233 = vmatpush1.msra.mxu0 %v696
    %2234 = vmatprep.subr.mxu0 %v706
    %2235 = vmatpush1.msra.mxu0 %v705
    %2236 = vmatprep.subr.mxu0 %v715
    %2237 = vmatpush1.msra.mxu0 %v714
    %2238 = vmatprep.subr.mxu0 %v724
    %2239 = vmatpush1.msra.mxu0 %v723
    %2240 = vmatprep.subr.mxu0 %v733
    %2241 = vmatpush1.msra.mxu0 %v732
    %2242 = vmatprep.subr.mxu0 %v742
    %2243 = vmatpush1.msra.mxu0 %v741
    %2244 = vmatprep.subr.mxu0 %v751
    %2245 = vmatpush1.msra.mxu0 %v750
    %2246 = vmatprep.subr.mxu0 %v760
    %2247 = vmatpush1.msra.mxu0 %v759
    %2248 = vmatprep.subr.mxu0 %v769
    %2249 = vmatpush1.msra.mxu0 %v768
    %2250 = vmatprep.subr.mxu0 %v778
    %2251 = vmatpush1.msra.mxu0 %v777
    %2252 = vmatprep.mubr.f32.mxu0 %v2106
    %2253 = vmatmul.mubr.f32.gmra.mrb[0].mxu0 %v2104
    %v2254 = vpop.f32.mrb[0].mxu0
    %v2255 = vadd.f32 %v2184, %v2254
    %v2256 = vpop.f32.mrb[0].mxu0
    %v2257 = vadd.f32 %v2186, %v2256
    %2258 = vdwg.mxu0
    %2259 = vmatprep.subr.mxu0 %v787
    %2260 = vmatpush1.msra.mxu0 %v786
    %2261 = vmatprep.subr.mxu0 %v796
    %2262 = vmatpush1.msra.mxu0 %v795
    %2263 = vmatprep.subr.mxu0 %v805
    %2264 = vmatpush1.msra.mxu0 %v804
    %2265 = vmatprep.subr.mxu0 %v814
    %2266 = vmatpush1.msra.mxu0 %v813
    %2267 = vmatprep.subr.mxu0 %v823
    %2268 = vmatpush1.msra.mxu0 %v822
    %2269 = vmatprep.subr.mxu0 %v832
    %2270 = vmatpush1.msra.mxu0 %v831
    %2271 = vmatprep.subr.mxu0 %v841
    %2272 = vmatpush1.msra.mxu0 %v840
    %2273 = vmatprep.subr.mxu0 %v850
    %2274 = vmatpush1.msra.mxu0 %v849
    %2275 = vmatprep.subr.mxu0 %v859
    %2276 = vmatpush1.msra.mxu0 %v858
    %2277 = vmatprep.subr.mxu0 %v868
    %2278 = vmatpush1.msra.mxu0 %v867
    %2279 = vmatprep.subr.mxu0 %v877
    %2280 = vmatpush1.msra.mxu0 %v876
    %2281 = vmatprep.subr.mxu0 %v886
    %2282 = vmatpush1.msra.mxu0 %v885
    %2283 = vmatprep.subr.mxu0 %v895
    %2284 = vmatpush1.msra.mxu0 %v894
    %2285 = vmatprep.subr.mxu0 %v904
    %2286 = vmatpush1.msra.mxu0 %v903
    %2287 = vmatprep.subr.mxu0 %v913
    %2288 = vmatpush1.msra.mxu0 %v912
    %2289 = vmatprep.subr.mxu0 %v922
    %2290 = vmatpush1.msra.mxu0 %v921
    %2291 = vmatprep.subr.mxu0 %v931
    %2292 = vmatpush1.msra.mxu0 %v930
    %2293 = vmatprep.subr.mxu0 %v940
    %2294 = vmatpush1.msra.mxu0 %v939
    %2295 = vmatprep.subr.mxu0 %v949
    %2296 = vmatpush1.msra.mxu0 %v948
    %2297 = vmatprep.subr.mxu0 %v958
    %2298 = vmatpush1.msra.mxu0 %v957
    %2299 = vmatprep.subr.mxu0 %v967
    %2300 = vmatpush1.msra.mxu0 %v966
    %2301 = vmatprep.subr.mxu0 %v976
    %2302 = vmatpush1.msra.mxu0 %v975
    %2303 = vmatprep.subr.mxu0 %v985
    %2304 = vmatpush1.msra.mxu0 %v984
    %2305 = vmatprep.subr.mxu0 %v994
    %2306 = vmatpush1.msra.mxu0 %v993
    %2307 = vmatprep.subr.mxu0 %v1003
    %2308 = vmatpush1.msra.mxu0 %v1002
    %2309 = vmatprep.subr.mxu0 %v1012
    %2310 = vmatpush1.msra.mxu0 %v1011
    %2311 = vmatprep.subr.mxu0 %v1021
    %2312 = vmatpush1.msra.mxu0 %v1020
    %2313 = vmatprep.subr.mxu0 %v1030
    %2314 = vmatpush1.msra.mxu0 %v1029
    %2315 = vmatprep.subr.mxu0 %v1039
    %2316 = vmatpush1.msra.mxu0 %v1038
    %2317 = vmatprep.subr.mxu0 %v1048
    %2318 = vmatpush1.msra.mxu0 %v1047
    %2319 = vmatprep.subr.mxu0 %v1057
    %2320 = vmatpush1.msra.mxu0 %v1056
    %2321 = vmatprep.subr.mxu0 %v1066
    %2322 = vmatpush1.msra.mxu0 %v1065
    %2323 = vmatprep.mubr.f32.mxu0 %v2110
    %2324 = vmatmul.mubr.f32.gmra.mrb[0].mxu0 %v2109
    %v2325 = vpop.f32.mrb[0].mxu0
    %v2326 = vadd.f32 %v2255, %v2325
    %v2327 = vpop.f32.mrb[0].mxu0
    %v2328 = vadd.f32 %v2257, %v2327
    %2329 = vdwg.mxu0
    %2330 = vmatprep.subr.mxu0 %v1075
    %2331 = vmatpush1.msra.mxu0 %v1074
    %2332 = vmatprep.subr.mxu0 %v1084
    %2333 = vmatpush1.msra.mxu0 %v1083
    %2334 = vmatprep.subr.mxu0 %v1093
    %2335 = vmatpush1.msra.mxu0 %v1092
    %2336 = vmatprep.subr.mxu0 %v1102
    %2337 = vmatpush1.msra.mxu0 %v1101
    %2338 = vmatprep.subr.mxu0 %v1111
    %2339 = vmatpush1.msra.mxu0 %v1110
    %2340 = vmatprep.subr.mxu0 %v1120
    %2341 = vmatpush1.msra.mxu0 %v1119
    %2342 = vmatprep.subr.mxu0 %v1129
    %2343 = vmatpush1.msra.mxu0 %v1128
    %2344 = vmatprep.subr.mxu0 %v1138
    %2345 = vmatpush1.msra.mxu0 %v1137
    %2346 = vmatprep.subr.mxu0 %v1147
    %2347 = vmatpush1.msra.mxu0 %v1146
    %2348 = vmatprep.subr.mxu0 %v1156
    %2349 = vmatpush1.msra.mxu0 %v1155
    %2350 = vmatprep.subr.mxu0 %v1165
    %2351 = vmatpush1.msra.mxu0 %v1164
    %2352 = vmatprep.subr.mxu0 %v1174
    %2353 = vmatpush1.msra.mxu0 %v1173
    %2354 = vmatprep.subr.mxu0 %v1183
    %2355 = vmatpush1.msra.mxu0 %v1182
    %2356 = vmatprep.subr.mxu0 %v1192
    %2357 = vmatpush1.msra.mxu0 %v1191
    %2358 = vmatprep.subr.mxu0 %v1201
    %2359 = vmatpush1.msra.mxu0 %v1200
    %2360 = vmatprep.subr.mxu0 %v1210
    %2361 = vmatpush1.msra.mxu0 %v1209
    %2362 = vmatprep.subr.mxu0 %v1219
    %2363 = vmatpush1.msra.mxu0 %v1218
    %2364 = vmatprep.subr.mxu0 %v1228
    %2365 = vmatpush1.msra.mxu0 %v1227
    %2366 = vmatprep.subr.mxu0 %v1237
    %2367 = vmatpush1.msra.mxu0 %v1236
    %2368 = vmatprep.subr.mxu0 %v1246
    %2369 = vmatpush1.msra.mxu0 %v1245
    %2370 = vmatprep.subr.mxu0 %v1255
    %2371 = vmatpush1.msra.mxu0 %v1254
    %2372 = vmatprep.subr.mxu0 %v1264
    %2373 = vmatpush1.msra.mxu0 %v1263
    %2374 = vmatprep.subr.mxu0 %v1273
    %2375 = vmatpush1.msra.mxu0 %v1272
    %2376 = vmatprep.subr.mxu0 %v1282
    %2377 = vmatpush1.msra.mxu0 %v1281
    %2378 = vmatprep.subr.mxu0 %v1291
    %2379 = vmatpush1.msra.mxu0 %v1290
    %2380 = vmatprep.subr.mxu0 0.0
    %2381 = vmatpush1.msra.mxu0 0.0
    %2382 = vmatprep.subr.mxu0 0.0
    %2383 = vmatpush1.msra.mxu0 0.0
    %2384 = vmatprep.subr.mxu0 0.0
    %2385 = vmatpush1.msra.mxu0 0.0
    %2386 = vmatprep.subr.mxu0 0.0
    %2387 = vmatpush1.msra.mxu0 0.0
    %2388 = vmatprep.subr.mxu0 0.0
    %2389 = vmatpush1.msra.mxu0 0.0
    %2390 = vmatprep.subr.mxu0 0.0
    %2391 = vmatpush1.msra.mxu0 0.0
    %2392 = vmatprep.subr.mxu0 0.0
    %2393 = vmatpush1.msra.mxu0 0.0
    %2394 = vmatprep.mubr.f32.mxu0 %v2115
    %2395 = vmatmul.mubr.f32.gmra.mrb[0].mxu0 %v2114
    %v2396 = vpop.f32.mrb[0].mxu0
    %v2397 = vadd.f32 %v2326, %v2396
    %v2398 = vpop.f32.mrb[0].mxu0
    %v2399 = vadd.f32 %v2328, %v2398
    %2400 = vdwg.mxu0
    %2401 = vmatprep.subr.mxu0 %v213
    %2402 = vmatpush1.msra.mxu0 %v212
    %2403 = vmatprep.subr.mxu0 %v222
    %2404 = vmatpush1.msra.mxu0 %v221
    %2405 = vmatprep.subr.mxu0 %v231
    %2406 = vmatpush1.msra.mxu0 %v230
    %2407 = vmatprep.subr.mxu0 %v240
    %2408 = vmatpush1.msra.mxu0 %v239
    %2409 = vmatprep.subr.mxu0 %v249
    %2410 = vmatpush1.msra.mxu0 %v248
    %2411 = vmatprep.subr.mxu0 %v258
    %2412 = vmatpush1.msra.mxu0 %v257
    %2413 = vmatprep.subr.mxu0 %v267
    %2414 = vmatpush1.msra.mxu0 %v266
    %2415 = vmatprep.subr.mxu0 %v276
    %2416 = vmatpush1.msra.mxu0 %v275
    %2417 = vmatprep.subr.mxu0 %v285
    %2418 = vmatpush1.msra.mxu0 %v284
    %2419 = vmatprep.subr.mxu0 %v294
    %2420 = vmatpush1.msra.mxu0 %v293
    %2421 = vmatprep.subr.mxu0 %v303
    %2422 = vmatpush1.msra.mxu0 %v302
    %2423 = vmatprep.subr.mxu0 %v312
    %2424 = vmatpush1.msra.mxu0 %v311
    %2425 = vmatprep.subr.mxu0 %v321
    %2426 = vmatpush1.msra.mxu0 %v320
    %2427 = vmatprep.subr.mxu0 %v330
    %2428 = vmatpush1.msra.mxu0 %v329
    %2429 = vmatprep.subr.mxu0 %v339
    %2430 = vmatpush1.msra.mxu0 %v338
    %2431 = vmatprep.subr.mxu0 %v348
    %2432 = vmatpush1.msra.mxu0 %v347
    %2433 = vmatprep.subr.mxu0 %v357
    %2434 = vmatpush1.msra.mxu0 %v356
    %2435 = vmatprep.subr.mxu0 %v366
    %2436 = vmatpush1.msra.mxu0 %v365
    %2437 = vmatprep.subr.mxu0 %v375
    %2438 = vmatpush1.msra.mxu0 %v374
    %2439 = vmatprep.subr.mxu0 %v384
    %2440 = vmatpush1.msra.mxu0 %v383
    %2441 = vmatprep.subr.mxu0 %v393
    %2442 = vmatpush1.msra.mxu0 %v392
    %2443 = vmatprep.subr.mxu0 %v402
    %2444 = vmatpush1.msra.mxu0 %v401
    %2445 = vmatprep.subr.mxu0 %v411
    %2446 = vmatpush1.msra.mxu0 %v410
    %2447 = vmatprep.subr.mxu0 %v420
    %2448 = vmatpush1.msra.mxu0 %v419
    %2449 = vmatprep.subr.mxu0 %v429
    %2450 = vmatpush1.msra.mxu0 %v428
    %2451 = vmatprep.subr.mxu0 %v438
    %2452 = vmatpush1.msra.mxu0 %v437
    %2453 = vmatprep.subr.mxu0 %v447
    %2454 = vmatpush1.msra.mxu0 %v446
    %2455 = vmatprep.subr.mxu0 %v456
    %2456 = vmatpush1.msra.mxu0 %v455
    %2457 = vmatprep.subr.mxu0 %v465
    %2458 = vmatpush1.msra.mxu0 %v464
    %2459 = vmatprep.subr.mxu0 %v474
    %2460 = vmatpush1.msra.mxu0 %v473
    %2461 = vmatprep.subr.mxu0 %v483
    %2462 = vmatpush1.msra.mxu0 %v482
    %2463 = vmatprep.subr.mxu0 %v492
    %2464 = vmatpush1.msra.mxu0 %v491
    %2465 = vmatprep.mubr.f32.mxu0 %v2101
    %2466 = vmatmul.mubr.f32.gmra.mrb[0].mxu0 %v2100
    %v2467 = vpop.f32.mrb[0].mxu0
    %v2468 = vadd.f32 0.0, %v2467
    %v2469 = vpop.f32.mrb[0].mxu0
    %v2470 = vadd.f32 0.0, %v2469
    %2471 = vdwg.mxu0
    %2472 = vmatprep.subr.mxu0 %v501
    %2473 = vmatpush1.msra.mxu0 %v500
    %2474 = vmatprep.subr.mxu0 %v510
    %2475 = vmatpush1.msra.mxu0 %v509
    %2476 = vmatprep.subr.mxu0 %v519
    %2477 = vmatpush1.msra.mxu0 %v518
    %2478 = vmatprep.subr.mxu0 %v528
    %2479 = vmatpush1.msra.mxu0 %v527
    %2480 = vmatprep.subr.mxu0 %v537
    %2481 = vmatpush1.msra.mxu0 %v536
    %2482 = vmatprep.subr.mxu0 %v546
    %2483 = vmatpush1.msra.mxu0 %v545
    %2484 = vmatprep.subr.mxu0 %v555
    %2485 = vmatpush1.msra.mxu0 %v554
    %2486 = vmatprep.subr.mxu0 %v564
    %2487 = vmatpush1.msra.mxu0 %v563
    %2488 = vmatprep.subr.mxu0 %v573
    %2489 = vmatpush1.msra.mxu0 %v572
    %2490 = vmatprep.subr.mxu0 %v582
    %2491 = vmatpush1.msra.mxu0 %v581
    %2492 = vmatprep.subr.mxu0 %v591
    %2493 = vmatpush1.msra.mxu0 %v590
    %2494 = vmatprep.subr.mxu0 %v600
    %2495 = vmatpush1.msra.mxu0 %v599
    %2496 = vmatprep.subr.mxu0 %v609
    %2497 = vmatpush1.msra.mxu0 %v608
    %2498 = vmatprep.subr.mxu0 %v618
    %2499 = vmatpush1.msra.mxu0 %v617
    %2500 = vmatprep.subr.mxu0 %v627
    %2501 = vmatpush1.msra.mxu0 %v626
    %2502 = vmatprep.subr.mxu0 %v636
    %2503 = vmatpush1.msra.mxu0 %v635
    %2504 = vmatprep.subr.mxu0 %v645
    %2505 = vmatpush1.msra.mxu0 %v644
    %2506 = vmatprep.subr.mxu0 %v654
    %2507 = vmatpush1.msra.mxu0 %v653
    %2508 = vmatprep.subr.mxu0 %v663
    %2509 = vmatpush1.msra.mxu0 %v662
    %2510 = vmatprep.subr.mxu0 %v672
    %2511 = vmatpush1.msra.mxu0 %v671
    %2512 = vmatprep.subr.mxu0 %v681
    %2513 = vmatpush1.msra.mxu0 %v680
    %2514 = vmatprep.subr.mxu0 %v690
    %2515 = vmatpush1.msra.mxu0 %v689
    %2516 = vmatprep.subr.mxu0 %v699
    %2517 = vmatpush1.msra.mxu0 %v698
    %2518 = vmatprep.subr.mxu0 %v708
    %2519 = vmatpush1.msra.mxu0 %v707
    %2520 = vmatprep.subr.mxu0 %v717
    %2521 = vmatpush1.msra.mxu0 %v716
    %2522 = vmatprep.subr.mxu0 %v726
    %2523 = vmatpush1.msra.mxu0 %v725
    %2524 = vmatprep.subr.mxu0 %v735
    %2525 = vmatpush1.msra.mxu0 %v734
    %2526 = vmatprep.subr.mxu0 %v744
    %2527 = vmatpush1.msra.mxu0 %v743
    %2528 = vmatprep.subr.mxu0 %v753
    %2529 = vmatpush1.msra.mxu0 %v752
    %2530 = vmatprep.subr.mxu0 %v762
    %2531 = vmatpush1.msra.mxu0 %v761
    %2532 = vmatprep.subr.mxu0 %v771
    %2533 = vmatpush1.msra.mxu0 %v770
    %2534 = vmatprep.subr.mxu0 %v780
    %2535 = vmatpush1.msra.mxu0 %v779
    %2536 = vmatprep.mubr.f32.mxu0 %v2106
    %2537 = vmatmul.mubr.f32.gmra.mrb[0].mxu0 %v2104
    %v2538 = vpop.f32.mrb[0].mxu0
    %v2539 = vadd.f32 %v2468, %v2538
    %v2540 = vpop.f32.mrb[0].mxu0
    %v2541 = vadd.f32 %v2470, %v2540
    %2542 = vdwg.mxu0
    %2543 = vmatprep.subr.mxu0 %v789
    %2544 = vmatpush1.msra.mxu0 %v788
    %2545 = vmatprep.subr.mxu0 %v798
    %2546 = vmatpush1.msra.mxu0 %v797
    %2547 = vmatprep.subr.mxu0 %v807
    %2548 = vmatpush1.msra.mxu0 %v806
    %2549 = vmatprep.subr.mxu0 %v816
    %2550 = vmatpush1.msra.mxu0 %v815
    %2551 = vmatprep.subr.mxu0 %v825
    %2552 = vmatpush1.msra.mxu0 %v824
    %2553 = vmatprep.subr.mxu0 %v834
    %2554 = vmatpush1.msra.mxu0 %v833
    %2555 = vmatprep.subr.mxu0 %v843
    %2556 = vmatpush1.msra.mxu0 %v842
    %2557 = vmatprep.subr.mxu0 %v852
    %2558 = vmatpush1.msra.mxu0 %v851
    %2559 = vmatprep.subr.mxu0 %v861
    %2560 = vmatpush1.msra.mxu0 %v860
    %2561 = vmatprep.subr.mxu0 %v870
    %2562 = vmatpush1.msra.mxu0 %v869
    %2563 = vmatprep.subr.mxu0 %v879
    %2564 = vmatpush1.msra.mxu0 %v878
    %2565 = vmatprep.subr.mxu0 %v888
    %2566 = vmatpush1.msra.mxu0 %v887
    %2567 = vmatprep.subr.mxu0 %v897
    %2568 = vmatpush1.msra.mxu0 %v896
    %2569 = vmatprep.subr.mxu0 %v906
    %2570 = vmatpush1.msra.mxu0 %v905
    %2571 = vmatprep.subr.mxu0 %v915
    %2572 = vmatpush1.msra.mxu0 %v914
    %2573 = vmatprep.subr.mxu0 %v924
    %2574 = vmatpush1.msra.mxu0 %v923
    %2575 = vmatprep.subr.mxu0 %v933
    %2576 = vmatpush1.msra.mxu0 %v932
    %2577 = vmatprep.subr.mxu0 %v942
    %2578 = vmatpush1.msra.mxu0 %v941
    %2579 = vmatprep.subr.mxu0 %v951
    %2580 = vmatpush1.msra.mxu0 %v950
    %2581 = vmatprep.subr.mxu0 %v960
    %2582 = vmatpush1.msra.mxu0 %v959
    %2583 = vmatprep.subr.mxu0 %v969
    %2584 = vmatpush1.msra.mxu0 %v968
    %2585 = vmatprep.subr.mxu0 %v978
    %2586 = vmatpush1.msra.mxu0 %v977
    %2587 = vmatprep.subr.mxu0 %v987
    %2588 = vmatpush1.msra.mxu0 %v986
    %2589 = vmatprep.subr.mxu0 %v996
    %2590 = vmatpush1.msra.mxu0 %v995
    %2591 = vmatprep.subr.mxu0 %v1005
    %2592 = vmatpush1.msra.mxu0 %v1004
    %2593 = vmatprep.subr.mxu0 %v1014
    %2594 = vmatpush1.msra.mxu0 %v1013
    %2595 = vmatprep.subr.mxu0 %v1023
    %2596 = vmatpush1.msra.mxu0 %v1022
    %2597 = vmatprep.subr.mxu0 %v1032
    %2598 = vmatpush1.msra.mxu0 %v1031
    %2599 = vmatprep.subr.mxu0 %v1041
    %2600 = vmatpush1.msra.mxu0 %v1040
    %2601 = vmatprep.subr.mxu0 %v1050
    %2602 = vmatpush1.msra.mxu0 %v1049
    %2603 = vmatprep.subr.mxu0 %v1059
    %2604 = vmatpush1.msra.mxu0 %v1058
    %2605 = vmatprep.subr.mxu0 %v1068
    %2606 = vmatpush1.msra.mxu0 %v1067
    %2607 = vmatprep.mubr.f32.mxu0 %v2110
    %2608 = vmatmul.mubr.f32.gmra.mrb[0].mxu0 %v2109
    %v2609 = vpop.f32.mrb[0].mxu0
    %v2610 = vadd.f32 %v2539, %v2609
    %v2611 = vpop.f32.mrb[0].mxu0
    %v2612 = vadd.f32 %v2541, %v2611
    %2613 = vdwg.mxu0
    %2614 = vmatprep.subr.mxu0 %v1077
    %2615 = vmatpush1.msra.mxu0 %v1076
    %2616 = vmatprep.subr.mxu0 %v1086
    %2617 = vmatpush1.msra.mxu0 %v1085
    %2618 = vmatprep.subr.mxu0 %v1095
    %2619 = vmatpush1.msra.mxu0 %v1094
    %2620 = vmatprep.subr.mxu0 %v1104
    %2621 = vmatpush1.msra.mxu0 %v1103
    %2622 = vmatprep.subr.mxu0 %v1113
    %2623 = vmatpush1.msra.mxu0 %v1112
    %2624 = vmatprep.subr.mxu0 %v1122
    %2625 = vmatpush1.msra.mxu0 %v1121
    %2626 = vmatprep.subr.mxu0 %v1131
    %2627 = vmatpush1.msra.mxu0 %v1130
    %2628 = vmatprep.subr.mxu0 %v1140
    %2629 = vmatpush1.msra.mxu0 %v1139
    %2630 = vmatprep.subr.mxu0 %v1149
    %2631 = vmatpush1.msra.mxu0 %v1148
    %2632 = vmatprep.subr.mxu0 %v1158
    %2633 = vmatpush1.msra.mxu0 %v1157
    %2634 = vmatprep.subr.mxu0 %v1167
    %2635 = vmatpush1.msra.mxu0 %v1166
    %2636 = vmatprep.subr.mxu0 %v1176
    %2637 = vmatpush1.msra.mxu0 %v1175
    %2638 = vmatprep.subr.mxu0 %v1185
    %2639 = vmatpush1.msra.mxu0 %v1184
    %2640 = vmatprep.subr.mxu0 %v1194
    %2641 = vmatpush1.msra.mxu0 %v1193
    %2642 = vmatprep.subr.mxu0 %v1203
    %2643 = vmatpush1.msra.mxu0 %v1202
    %2644 = vmatprep.subr.mxu0 %v1212
    %2645 = vmatpush1.msra.mxu0 %v1211
    %2646 = vmatprep.subr.mxu0 %v1221
    %2647 = vmatpush1.msra.mxu0 %v1220
    %2648 = vmatprep.subr.mxu0 %v1230
    %2649 = vmatpush1.msra.mxu0 %v1229
    %2650 = vmatprep.subr.mxu0 %v1239
    %2651 = vmatpush1.msra.mxu0 %v1238
    %2652 = vmatprep.subr.mxu0 %v1248
    %2653 = vmatpush1.msra.mxu0 %v1247
    %2654 = vmatprep.subr.mxu0 %v1257
    %2655 = vmatpush1.msra.mxu0 %v1256
    %2656 = vmatprep.subr.mxu0 %v1266
    %2657 = vmatpush1.msra.mxu0 %v1265
    %2658 = vmatprep.subr.mxu0 %v1275
    %2659 = vmatpush1.msra.mxu0 %v1274
    %2660 = vmatprep.subr.mxu0 %v1284
    %2661 = vmatpush1.msra.mxu0 %v1283
    %2662 = vmatprep.subr.mxu0 %v1293
    %2663 = vmatpush1.msra.mxu0 %v1292
    %2664 = vmatprep.subr.mxu0 0.0
    %2665 = vmatpush1.msra.mxu0 0.0
    %2666 = vmatprep.subr.mxu0 0.0
    %2667 = vmatpush1.msra.mxu0 0.0
    %2668 = vmatprep.subr.mxu0 0.0
    %2669 = vmatpush1.msra.mxu0 0.0
    %2670 = vmatprep.subr.mxu0 0.0
    %2671 = vmatpush1.msra.mxu0 0.0
    %2672 = vmatprep.subr.mxu0 0.0
    %2673 = vmatpush1.msra.mxu0 0.0
    %2674 = vmatprep.subr.mxu0 0.0
    %2675 = vmatpush1.msra.mxu0 0.0
    %2676 = vmatprep.subr.mxu0 0.0
    %2677 = vmatpush1.msra.mxu0 0.0
    %2678 = vmatprep.mubr.f32.mxu0 %v2115
    %2679 = vmatmul.mubr.f32.gmra.mrb[0].mxu0 %v2114
    %v2680 = vpop.f32.mrb[0].mxu0
    %v2681 = vadd.f32 %v2610, %v2680
    %v2682 = vpop.f32.mrb[0].mxu0
    %v2683 = vadd.f32 %v2612, %v2682
    %2684 = vdwg.mxu0
    %2685 = vmatprep.subr.mxu0 %v215
    %2686 = vmatpush1.msra.mxu0 %v214
    %2687 = vmatprep.subr.mxu0 %v224
    %2688 = vmatpush1.msra.mxu0 %v223
    %2689 = vmatprep.subr.mxu0 %v233
    %2690 = vmatpush1.msra.mxu0 %v232
    %2691 = vmatprep.subr.mxu0 %v242
    %2692 = vmatpush1.msra.mxu0 %v241
    %2693 = vmatprep.subr.mxu0 %v251
    %2694 = vmatpush1.msra.mxu0 %v250
    %2695 = vmatprep.subr.mxu0 %v260
    %2696 = vmatpush1.msra.mxu0 %v259
    %2697 = vmatprep.subr.mxu0 %v269
    %2698 = vmatpush1.msra.mxu0 %v268
    %2699 = vmatprep.subr.mxu0 %v278
    %2700 = vmatpush1.msra.mxu0 %v277
    %2701 = vmatprep.subr.mxu0 %v287
    %2702 = vmatpush1.msra.mxu0 %v286
    %2703 = vmatprep.subr.mxu0 %v296
    %2704 = vmatpush1.msra.mxu0 %v295
    %2705 = vmatprep.subr.mxu0 %v305
    %2706 = vmatpush1.msra.mxu0 %v304
    %2707 = vmatprep.subr.mxu0 %v314
    %2708 = vmatpush1.msra.mxu0 %v313
    %2709 = vmatprep.subr.mxu0 %v323
    %2710 = vmatpush1.msra.mxu0 %v322
    %2711 = vmatprep.subr.mxu0 %v332
    %2712 = vmatpush1.msra.mxu0 %v331
    %2713 = vmatprep.subr.mxu0 %v341
    %2714 = vmatpush1.msra.mxu0 %v340
    %2715 = vmatprep.subr.mxu0 %v350
    %2716 = vmatpush1.msra.mxu0 %v349
    %2717 = vmatprep.subr.mxu0 %v359
    %2718 = vmatpush1.msra.mxu0 %v358
    %2719 = vmatprep.subr.mxu0 %v368
    %2720 = vmatpush1.msra.mxu0 %v367
    %2721 = vmatprep.subr.mxu0 %v377
    %2722 = vmatpush1.msra.mxu0 %v376
    %2723 = vmatprep.subr.mxu0 %v386
    %2724 = vmatpush1.msra.mxu0 %v385
    %2725 = vmatprep.subr.mxu0 %v395
    %2726 = vmatpush1.msra.mxu0 %v394
    %2727 = vmatprep.subr.mxu0 %v404
    %2728 = vmatpush1.msra.mxu0 %v403
    %2729 = vmatprep.subr.mxu0 %v413
    %2730 = vmatpush1.msra.mxu0 %v412
    %2731 = vmatprep.subr.mxu0 %v422
    %2732 = vmatpush1.msra.mxu0 %v421
    %2733 = vmatprep.subr.mxu0 %v431
    %2734 = vmatpush1.msra.mxu0 %v430
    %2735 = vmatprep.subr.mxu0 %v440
    %2736 = vmatpush1.msra.mxu0 %v439
    %2737 = vmatprep.subr.mxu0 %v449
    %2738 = vmatpush1.msra.mxu0 %v448
    %2739 = vmatprep.subr.mxu0 %v458
    %2740 = vmatpush1.msra.mxu0 %v457
    %2741 = vmatprep.subr.mxu0 %v467
    %2742 = vmatpush1.msra.mxu0 %v466
    %2743 = vmatprep.subr.mxu0 %v476
    %2744 = vmatpush1.msra.mxu0 %v475
    %2745 = vmatprep.subr.mxu0 %v485
    %2746 = vmatpush1.msra.mxu0 %v484
    %2747 = vmatprep.subr.mxu0 %v494
    %2748 = vmatpush1.msra.mxu0 %v493
    %2749 = vmatprep.mubr.f32.mxu0 %v2101
    %2750 = vmatmul.mubr.f32.gmra.mrb[0].mxu0 %v2100
    %v2751 = vpop.f32.mrb[0].mxu0
    %v2752 = vadd.f32 0.0, %v2751
    %v2753 = vpop.f32.mrb[0].mxu0
    %v2754 = vadd.f32 0.0, %v2753
    %2755 = vdwg.mxu0
    %2756 = vmatprep.subr.mxu0 %v503
    %2757 = vmatpush1.msra.mxu0 %v502
    %2758 = vmatprep.subr.mxu0 %v512
    %2759 = vmatpush1.msra.mxu0 %v511
    %2760 = vmatprep.subr.mxu0 %v521
    %2761 = vmatpush1.msra.mxu0 %v520
    %2762 = vmatprep.subr.mxu0 %v530
    %2763 = vmatpush1.msra.mxu0 %v529
    %2764 = vmatprep.subr.mxu0 %v539
    %2765 = vmatpush1.msra.mxu0 %v538
    %2766 = vmatprep.subr.mxu0 %v548
    %2767 = vmatpush1.msra.mxu0 %v547
    %2768 = vmatprep.subr.mxu0 %v557
    %2769 = vmatpush1.msra.mxu0 %v556
    %2770 = vmatprep.subr.mxu0 %v566
    %2771 = vmatpush1.msra.mxu0 %v565
    %2772 = vmatprep.subr.mxu0 %v575
    %2773 = vmatpush1.msra.mxu0 %v574
    %2774 = vmatprep.subr.mxu0 %v584
    %2775 = vmatpush1.msra.mxu0 %v583
    %2776 = vmatprep.subr.mxu0 %v593
    %2777 = vmatpush1.msra.mxu0 %v592
    %2778 = vmatprep.subr.mxu0 %v602
    %2779 = vmatpush1.msra.mxu0 %v601
    %2780 = vmatprep.subr.mxu0 %v611
    %2781 = vmatpush1.msra.mxu0 %v610
    %2782 = vmatprep.subr.mxu0 %v620
    %2783 = vmatpush1.msra.mxu0 %v619
    %2784 = vmatprep.subr.mxu0 %v629
    %2785 = vmatpush1.msra.mxu0 %v628
    %2786 = vmatprep.subr.mxu0 %v638
    %2787 = vmatpush1.msra.mxu0 %v637
    %2788 = vmatprep.subr.mxu0 %v647
    %2789 = vmatpush1.msra.mxu0 %v646
    %2790 = vmatprep.subr.mxu0 %v656
    %2791 = vmatpush1.msra.mxu0 %v655
    %2792 = vmatprep.subr.mxu0 %v665
    %2793 = vmatpush1.msra.mxu0 %v664
    %2794 = vmatprep.subr.mxu0 %v674
    %2795 = vmatpush1.msra.mxu0 %v673
    %2796 = vmatprep.subr.mxu0 %v683
    %2797 = vmatpush1.msra.mxu0 %v682
    %2798 = vmatprep.subr.mxu0 %v692
    %2799 = vmatpush1.msra.mxu0 %v691
    %2800 = vmatprep.subr.mxu0 %v701
    %2801 = vmatpush1.msra.mxu0 %v700
    %2802 = vmatprep.subr.mxu0 %v710
    %2803 = vmatpush1.msra.mxu0 %v709
    %2804 = vmatprep.subr.mxu0 %v719
    %2805 = vmatpush1.msra.mxu0 %v718
    %2806 = vmatprep.subr.mxu0 %v728
    %2807 = vmatpush1.msra.mxu0 %v727
    %2808 = vmatprep.subr.mxu0 %v737
    %2809 = vmatpush1.msra.mxu0 %v736
    %2810 = vmatprep.subr.mxu0 %v746
    %2811 = vmatpush1.msra.mxu0 %v745
    %2812 = vmatprep.subr.mxu0 %v755
    %2813 = vmatpush1.msra.mxu0 %v754
    %2814 = vmatprep.subr.mxu0 %v764
    %2815 = vmatpush1.msra.mxu0 %v763
    %2816 = vmatprep.subr.mxu0 %v773
    %2817 = vmatpush1.msra.mxu0 %v772
    %2818 = vmatprep.subr.mxu0 %v782
    %2819 = vmatpush1.msra.mxu0 %v781
    %2820 = vmatprep.mubr.f32.mxu0 %v2106
    %2821 = vmatmul.mubr.f32.gmra.mrb[0].mxu0 %v2104
    %v2822 = vpop.f32.mrb[0].mxu0
    %v2823 = vadd.f32 %v2752, %v2822
    %v2824 = vpop.f32.mrb[0].mxu0
    %v2825 = vadd.f32 %v2754, %v2824
    %2826 = vdwg.mxu0
    %2827 = vmatprep.subr.mxu0 %v791
    %2828 = vmatpush1.msra.mxu0 %v790
    %2829 = vmatprep.subr.mxu0 %v800
    %2830 = vmatpush1.msra.mxu0 %v799
    %2831 = vmatprep.subr.mxu0 %v809
    %2832 = vmatpush1.msra.mxu0 %v808
    %2833 = vmatprep.subr.mxu0 %v818
    %2834 = vmatpush1.msra.mxu0 %v817
    %2835 = vmatprep.subr.mxu0 %v827
    %2836 = vmatpush1.msra.mxu0 %v826
    %2837 = vmatprep.subr.mxu0 %v836
    %2838 = vmatpush1.msra.mxu0 %v835
    %2839 = vmatprep.subr.mxu0 %v845
    %2840 = vmatpush1.msra.mxu0 %v844
    %2841 = vmatprep.subr.mxu0 %v854
    %2842 = vmatpush1.msra.mxu0 %v853
    %2843 = vmatprep.subr.mxu0 %v863
    %2844 = vmatpush1.msra.mxu0 %v862
    %2845 = vmatprep.subr.mxu0 %v872
    %2846 = vmatpush1.msra.mxu0 %v871
    %2847 = vmatprep.subr.mxu0 %v881
    %2848 = vmatpush1.msra.mxu0 %v880
    %2849 = vmatprep.subr.mxu0 %v890
    %2850 = vmatpush1.msra.mxu0 %v889
    %2851 = vmatprep.subr.mxu0 %v899
    %2852 = vmatpush1.msra.mxu0 %v898
    %2853 = vmatprep.subr.mxu0 %v908
    %2854 = vmatpush1.msra.mxu0 %v907
    %2855 = vmatprep.subr.mxu0 %v917
    %2856 = vmatpush1.msra.mxu0 %v916
    %2857 = vmatprep.subr.mxu0 %v926
    %2858 = vmatpush1.msra.mxu0 %v925
    %2859 = vmatprep.subr.mxu0 %v935
    %2860 = vmatpush1.msra.mxu0 %v934
    %2861 = vmatprep.subr.mxu0 %v944
    %2862 = vmatpush1.msra.mxu0 %v943
    %2863 = vmatprep.subr.mxu0 %v953
    %2864 = vmatpush1.msra.mxu0 %v952
    %2865 = vmatprep.subr.mxu0 %v962
    %2866 = vmatpush1.msra.mxu0 %v961
    %2867 = vmatprep.subr.mxu0 %v971
    %2868 = vmatpush1.msra.mxu0 %v970
    %2869 = vmatprep.subr.mxu0 %v980
    %2870 = vmatpush1.msra.mxu0 %v979
    %2871 = vmatprep.subr.mxu0 %v989
    %2872 = vmatpush1.msra.mxu0 %v988
    %2873 = vmatprep.subr.mxu0 %v998
    %2874 = vmatpush1.msra.mxu0 %v997
    %2875 = vmatprep.subr.mxu0 %v1007
    %2876 = vmatpush1.msra.mxu0 %v1006
    %2877 = vmatprep.subr.mxu0 %v1016
    %2878 = vmatpush1.msra.mxu0 %v1015
    %2879 = vmatprep.subr.mxu0 %v1025
    %2880 = vmatpush1.msra.mxu0 %v1024
    %2881 = vmatprep.subr.mxu0 %v1034
    %2882 = vmatpush1.msra.mxu0 %v1033
    %2883 = vmatprep.subr.mxu0 %v1043
    %2884 = vmatpush1.msra.mxu0 %v1042
    %2885 = vmatprep.subr.mxu0 %v1052
    %2886 = vmatpush1.msra.mxu0 %v1051
    %2887 = vmatprep.subr.mxu0 %v1061
    %2888 = vmatpush1.msra.mxu0 %v1060
    %2889 = vmatprep.subr.mxu0 %v1070
    %2890 = vmatpush1.msra.mxu0 %v1069
    %2891 = vmatprep.mubr.f32.mxu0 %v2110
    %2892 = vmatmul.mubr.f32.gmra.mrb[0].mxu0 %v2109
    %v2893 = vpop.f32.mrb[0].mxu0
    %v2894 = vadd.f32 %v2823, %v2893
    %v2895 = vpop.f32.mrb[0].mxu0
    %v2896 = vadd.f32 %v2825, %v2895
    %2897 = vdwg.mxu0
    %2898 = vmatprep.subr.mxu0 %v1079
    %2899 = vmatpush1.msra.mxu0 %v1078
    %2900 = vmatprep.subr.mxu0 %v1088
    %2901 = vmatpush1.msra.mxu0 %v1087
    %2902 = vmatprep.subr.mxu0 %v1097
    %2903 = vmatpush1.msra.mxu0 %v1096
    %2904 = vmatprep.subr.mxu0 %v1106
    %2905 = vmatpush1.msra.mxu0 %v1105
    %2906 = vmatprep.subr.mxu0 %v1115
    %2907 = vmatpush1.msra.mxu0 %v1114
    %2908 = vmatprep.subr.mxu0 %v1124
    %2909 = vmatpush1.msra.mxu0 %v1123
    %2910 = vmatprep.subr.mxu0 %v1133
    %2911 = vmatpush1.msra.mxu0 %v1132
    %2912 = vmatprep.subr.mxu0 %v1142
    %2913 = vmatpush1.msra.mxu0 %v1141
    %2914 = vmatprep.subr.mxu0 %v1151
    %2915 = vmatpush1.msra.mxu0 %v1150
    %2916 = vmatprep.subr.mxu0 %v1160
    %2917 = vmatpush1.msra.mxu0 %v1159
    %2918 = vmatprep.subr.mxu0 %v1169
    %2919 = vmatpush1.msra.mxu0 %v1168
    %2920 = vmatprep.subr.mxu0 %v1178
    %2921 = vmatpush1.msra.mxu0 %v1177
    %2922 = vmatprep.subr.mxu0 %v1187
    %2923 = vmatpush1.msra.mxu0 %v1186
    %2924 = vmatprep.subr.mxu0 %v1196
    %2925 = vmatpush1.msra.mxu0 %v1195
    %2926 = vmatprep.subr.mxu0 %v1205
    %2927 = vmatpush1.msra.mxu0 %v1204
    %2928 = vmatprep.subr.mxu0 %v1214
    %2929 = vmatpush1.msra.mxu0 %v1213
    %2930 = vmatprep.subr.mxu0 %v1223
    %2931 = vmatpush1.msra.mxu0 %v1222
    %2932 = vmatprep.subr.mxu0 %v1232
    %2933 = vmatpush1.msra.mxu0 %v1231
    %2934 = vmatprep.subr.mxu0 %v1241
    %2935 = vmatpush1.msra.mxu0 %v1240
    %2936 = vmatprep.subr.mxu0 %v1250
    %2937 = vmatpush1.msra.mxu0 %v1249
    %2938 = vmatprep.subr.mxu0 %v1259
    %2939 = vmatpush1.msra.mxu0 %v1258
    %2940 = vmatprep.subr.mxu0 %v1268
    %2941 = vmatpush1.msra.mxu0 %v1267
    %2942 = vmatprep.subr.mxu0 %v1277
    %2943 = vmatpush1.msra.mxu0 %v1276
    %2944 = vmatprep.subr.mxu0 %v1286
    %2945 = vmatpush1.msra.mxu0 %v1285
    %2946 = vmatprep.subr.mxu0 %v1295
    %2947 = vmatpush1.msra.mxu0 %v1294
    %2948 = vmatprep.subr.mxu0 0.0
    %2949 = vmatpush1.msra.mxu0 0.0
    %2950 = vmatprep.subr.mxu0 0.0
    %2951 = vmatpush1.msra.mxu0 0.0
    %2952 = vmatprep.subr.mxu0 0.0
    %2953 = vmatpush1.msra.mxu0 0.0
    %2954 = vmatprep.subr.mxu0 0.0
    %2955 = vmatpush1.msra.mxu0 0.0
    %2956 = vmatprep.subr.mxu0 0.0
    %2957 = vmatpush1.msra.mxu0 0.0
    %2958 = vmatprep.subr.mxu0 0.0
    %2959 = vmatpush1.msra.mxu0 0.0
    %2960 = vmatprep.subr.mxu0 0.0
    %2961 = vmatpush1.msra.mxu0 0.0
    %2962 = vmatprep.mubr.f32.mxu0 %v2115
    %2963 = vmatmul.mubr.f32.gmra.mrb[0].mxu0 %v2114
    %v2964 = vpop.f32.mrb[0].mxu0
    %v2965 = vadd.f32 %v2894, %v2964
    %v2966 = vpop.f32.mrb[0].mxu0
    %v2967 = vadd.f32 %v2896, %v2966
    %2968 = vdwg.mxu0
    %2969 = vmatprep.subr.mxu0 %v217
    %2970 = vmatpush1.msra.mxu0 %v216
    %2971 = vmatprep.subr.mxu0 %v226
    %2972 = vmatpush1.msra.mxu0 %v225
    %2973 = vmatprep.subr.mxu0 %v235
    %2974 = vmatpush1.msra.mxu0 %v234
    %2975 = vmatprep.subr.mxu0 %v244
    %2976 = vmatpush1.msra.mxu0 %v243
    %2977 = vmatprep.subr.mxu0 %v253
    %2978 = vmatpush1.msra.mxu0 %v252
    %2979 = vmatprep.subr.mxu0 %v262
    %2980 = vmatpush1.msra.mxu0 %v261
    %2981 = vmatprep.subr.mxu0 %v271
    %2982 = vmatpush1.msra.mxu0 %v270
    %2983 = vmatprep.subr.mxu0 %v280
    %2984 = vmatpush1.msra.mxu0 %v279
    %2985 = vmatprep.subr.mxu0 %v289
    %2986 = vmatpush1.msra.mxu0 %v288
    %2987 = vmatprep.subr.mxu0 %v298
    %2988 = vmatpush1.msra.mxu0 %v297
    %2989 = vmatprep.subr.mxu0 %v307
    %2990 = vmatpush1.msra.mxu0 %v306
    %2991 = vmatprep.subr.mxu0 %v316
    %2992 = vmatpush1.msra.mxu0 %v315
    %2993 = vmatprep.subr.mxu0 %v325
    %2994 = vmatpush1.msra.mxu0 %v324
    %2995 = vmatprep.subr.mxu0 %v334
    %2996 = vmatpush1.msra.mxu0 %v333
    %2997 = vmatprep.subr.mxu0 %v343
    %2998 = vmatpush1.msra.mxu0 %v342
    %2999 = vmatprep.subr.mxu0 %v352
    %3000 = vmatpush1.msra.mxu0 %v351
    %3001 = vmatprep.subr.mxu0 %v361
    %3002 = vmatpush1.msra.mxu0 %v360
    %3003 = vmatprep.subr.mxu0 %v370
    %3004 = vmatpush1.msra.mxu0 %v369
    %3005 = vmatprep.subr.mxu0 %v379
    %3006 = vmatpush1.msra.mxu0 %v378
    %3007 = vmatprep.subr.mxu0 %v388
    %3008 = vmatpush1.msra.mxu0 %v387
    %3009 = vmatprep.subr.mxu0 %v397
    %3010 = vmatpush1.msra.mxu0 %v396
    %3011 = vmatprep.subr.mxu0 %v406
    %3012 = vmatpush1.msra.mxu0 %v405
    %3013 = vmatprep.subr.mxu0 %v415
    %3014 = vmatpush1.msra.mxu0 %v414
    %3015 = vmatprep.subr.mxu0 %v424
    %3016 = vmatpush1.msra.mxu0 %v423
    %3017 = vmatprep.subr.mxu0 %v433
    %3018 = vmatpush1.msra.mxu0 %v432
    %3019 = vmatprep.subr.mxu0 %v442
    %3020 = vmatpush1.msra.mxu0 %v441
    %3021 = vmatprep.subr.mxu0 %v451
    %3022 = vmatpush1.msra.mxu0 %v450
    %3023 = vmatprep.subr.mxu0 %v460
    %3024 = vmatpush1.msra.mxu0 %v459
    %3025 = vmatprep.subr.mxu0 %v469
    %3026 = vmatpush1.msra.mxu0 %v468
    %3027 = vmatprep.subr.mxu0 %v478
    %3028 = vmatpush1.msra.mxu0 %v477
    %3029 = vmatprep.subr.mxu0 %v487
    %3030 = vmatpush1.msra.mxu0 %v486
    %3031 = vmatprep.subr.mxu0 %v496
    %3032 = vmatpush1.msra.mxu0 %v495
    %3033 = vmatprep.mubr.f32.mxu0 %v2101
    %3034 = vmatmul.mubr.f32.gmra.mrb[0].mxu0 %v2100
    %v3035 = vpop.f32.mrb[0].mxu0
    %v3036 = vadd.f32 0.0, %v3035
    %v3037 = vpop.f32.mrb[0].mxu0
    %v3038 = vadd.f32 0.0, %v3037
    %3039 = vdwg.mxu0
    %3040 = vmatprep.subr.mxu0 %v505
    %3041 = vmatpush1.msra.mxu0 %v504
    %3042 = vmatprep.subr.mxu0 %v514
    %3043 = vmatpush1.msra.mxu0 %v513
    %3044 = vmatprep.subr.mxu0 %v523
    %3045 = vmatpush1.msra.mxu0 %v522
    %3046 = vmatprep.subr.mxu0 %v532
    %3047 = vmatpush1.msra.mxu0 %v531
    %3048 = vmatprep.subr.mxu0 %v541
    %3049 = vmatpush1.msra.mxu0 %v540
    %3050 = vmatprep.subr.mxu0 %v550
    %3051 = vmatpush1.msra.mxu0 %v549
    %3052 = vmatprep.subr.mxu0 %v559
    %3053 = vmatpush1.msra.mxu0 %v558
    %3054 = vmatprep.subr.mxu0 %v568
    %3055 = vmatpush1.msra.mxu0 %v567
    %3056 = vmatprep.subr.mxu0 %v577
    %3057 = vmatpush1.msra.mxu0 %v576
    %3058 = vmatprep.subr.mxu0 %v586
    %3059 = vmatpush1.msra.mxu0 %v585
    %3060 = vmatprep.subr.mxu0 %v595
    %3061 = vmatpush1.msra.mxu0 %v594
    %3062 = vmatprep.subr.mxu0 %v604
    %3063 = vmatpush1.msra.mxu0 %v603
    %3064 = vmatprep.subr.mxu0 %v613
    %3065 = vmatpush1.msra.mxu0 %v612
    %3066 = vmatprep.subr.mxu0 %v622
    %3067 = vmatpush1.msra.mxu0 %v621
    %3068 = vmatprep.subr.mxu0 %v631
    %3069 = vmatpush1.msra.mxu0 %v630
    %3070 = vmatprep.subr.mxu0 %v640
    %3071 = vmatpush1.msra.mxu0 %v639
    %3072 = vmatprep.subr.mxu0 %v649
    %3073 = vmatpush1.msra.mxu0 %v648
    %3074 = vmatprep.subr.mxu0 %v658
    %3075 = vmatpush1.msra.mxu0 %v657
    %3076 = vmatprep.subr.mxu0 %v667
    %3077 = vmatpush1.msra.mxu0 %v666
    %3078 = vmatprep.subr.mxu0 %v676
    %3079 = vmatpush1.msra.mxu0 %v675
    %3080 = vmatprep.subr.mxu0 %v685
    %3081 = vmatpush1.msra.mxu0 %v684
    %3082 = vmatprep.subr.mxu0 %v694
    %3083 = vmatpush1.msra.mxu0 %v693
    %3084 = vmatprep.subr.mxu0 %v703
    %3085 = vmatpush1.msra.mxu0 %v702
    %3086 = vmatprep.subr.mxu0 %v712
    %3087 = vmatpush1.msra.mxu0 %v711
    %3088 = vmatprep.subr.mxu0 %v721
    %3089 = vmatpush1.msra.mxu0 %v720
    %3090 = vmatprep.subr.mxu0 %v730
    %3091 = vmatpush1.msra.mxu0 %v729
    %3092 = vmatprep.subr.mxu0 %v739
    %3093 = vmatpush1.msra.mxu0 %v738
    %3094 = vmatprep.subr.mxu0 %v748
    %3095 = vmatpush1.msra.mxu0 %v747
    %3096 = vmatprep.subr.mxu0 %v757
    %3097 = vmatpush1.msra.mxu0 %v756
    %3098 = vmatprep.subr.mxu0 %v766
    %3099 = vmatpush1.msra.mxu0 %v765
    %3100 = vmatprep.subr.mxu0 %v775
    %3101 = vmatpush1.msra.mxu0 %v774
    %3102 = vmatprep.subr.mxu0 %v784
    %3103 = vmatpush1.msra.mxu0 %v783
    %3104 = vmatprep.mubr.f32.mxu0 %v2106
    %3105 = vmatmul.mubr.f32.gmra.mrb[0].mxu0 %v2104
    %v3106 = vpop.f32.mrb[0].mxu0
    %v3107 = vadd.f32 %v3036, %v3106
    %v3108 = vpop.f32.mrb[0].mxu0
    %v3109 = vadd.f32 %v3038, %v3108
    %3110 = vdwg.mxu0
    %3111 = vmatprep.subr.mxu0 %v793
    %3112 = vmatpush1.msra.mxu0 %v792
    %3113 = vmatprep.subr.mxu0 %v802
    %3114 = vmatpush1.msra.mxu0 %v801
    %3115 = vmatprep.subr.mxu0 %v811
    %3116 = vmatpush1.msra.mxu0 %v810
    %3117 = vmatprep.subr.mxu0 %v820
    %3118 = vmatpush1.msra.mxu0 %v819
    %3119 = vmatprep.subr.mxu0 %v829
    %3120 = vmatpush1.msra.mxu0 %v828
    %3121 = vmatprep.subr.mxu0 %v838
    %3122 = vmatpush1.msra.mxu0 %v837
    %3123 = vmatprep.subr.mxu0 %v847
    %3124 = vmatpush1.msra.mxu0 %v846
    %3125 = vmatprep.subr.mxu0 %v856
    %3126 = vmatpush1.msra.mxu0 %v855
    %3127 = vmatprep.subr.mxu0 %v865
    %3128 = vmatpush1.msra.mxu0 %v864
    %3129 = vmatprep.subr.mxu0 %v874
    %3130 = vmatpush1.msra.mxu0 %v873
    %3131 = vmatprep.subr.mxu0 %v883
    %3132 = vmatpush1.msra.mxu0 %v882
    %3133 = vmatprep.subr.mxu0 %v892
    %3134 = vmatpush1.msra.mxu0 %v891
    %3135 = vmatprep.subr.mxu0 %v901
    %3136 = vmatpush1.msra.mxu0 %v900
    %3137 = vmatprep.subr.mxu0 %v910
    %3138 = vmatpush1.msra.mxu0 %v909
    %3139 = vmatprep.subr.mxu0 %v919
    %3140 = vmatpush1.msra.mxu0 %v918
    %3141 = vmatprep.subr.mxu0 %v928
    %3142 = vmatpush1.msra.mxu0 %v927
    %3143 = vmatprep.subr.mxu0 %v937
    %3144 = vmatpush1.msra.mxu0 %v936
    %3145 = vmatprep.subr.mxu0 %v946
    %3146 = vmatpush1.msra.mxu0 %v945
    %3147 = vmatprep.subr.mxu0 %v955
    %3148 = vmatpush1.msra.mxu0 %v954
    %3149 = vmatprep.subr.mxu0 %v964
    %3150 = vmatpush1.msra.mxu0 %v963
    %3151 = vmatprep.subr.mxu0 %v973
    %3152 = vmatpush1.msra.mxu0 %v972
    %3153 = vmatprep.subr.mxu0 %v982
    %3154 = vmatpush1.msra.mxu0 %v981
    %3155 = vmatprep.subr.mxu0 %v991
    %3156 = vmatpush1.msra.mxu0 %v990
    %3157 = vmatprep.subr.mxu0 %v1000
    %3158 = vmatpush1.msra.mxu0 %v999
    %3159 = vmatprep.subr.mxu0 %v1009
    %3160 = vmatpush1.msra.mxu0 %v1008
    %3161 = vmatprep.subr.mxu0 %v1018
    %3162 = vmatpush1.msra.mxu0 %v1017
    %3163 = vmatprep.subr.mxu0 %v1027
    %3164 = vmatpush1.msra.mxu0 %v1026
    %3165 = vmatprep.subr.mxu0 %v1036
    %3166 = vmatpush1.msra.mxu0 %v1035
    %3167 = vmatprep.subr.mxu0 %v1045
    %3168 = vmatpush1.msra.mxu0 %v1044
    %3169 = vmatprep.subr.mxu0 %v1054
    %3170 = vmatpush1.msra.mxu0 %v1053
    %3171 = vmatprep.subr.mxu0 %v1063
    %3172 = vmatpush1.msra.mxu0 %v1062
    %3173 = vmatprep.subr.mxu0 %v1072
    %3174 = vmatpush1.msra.mxu0 %v1071
    %3175 = vmatprep.mubr.f32.mxu0 %v2110
    %3176 = vmatmul.mubr.f32.gmra.mrb[0].mxu0 %v2109
    %v3177 = vpop.f32.mrb[0].mxu0
    %v3178 = vadd.f32 %v3107, %v3177
    %v3179 = vpop.f32.mrb[0].mxu0
    %v3180 = vadd.f32 %v3109, %v3179
    %3181 = vdwg.mxu0
    %3182 = vmatprep.subr.mxu0 %v1081
    %3183 = vmatpush1.msra.mxu0 %v1080
    %3184 = vmatprep.subr.mxu0 %v1090
    %3185 = vmatpush1.msra.mxu0 %v1089
    %3186 = vmatprep.subr.mxu0 %v1099
    %3187 = vmatpush1.msra.mxu0 %v1098
    %3188 = vmatprep.subr.mxu0 %v1108
    %3189 = vmatpush1.msra.mxu0 %v1107
    %3190 = vmatprep.subr.mxu0 %v1117
    %3191 = vmatpush1.msra.mxu0 %v1116
    %3192 = vmatprep.subr.mxu0 %v1126
    %3193 = vmatpush1.msra.mxu0 %v1125
    %3194 = vmatprep.subr.mxu0 %v1135
    %3195 = vmatpush1.msra.mxu0 %v1134
    %3196 = vmatprep.subr.mxu0 %v1144
    %3197 = vmatpush1.msra.mxu0 %v1143
    %3198 = vmatprep.subr.mxu0 %v1153
    %3199 = vmatpush1.msra.mxu0 %v1152
    %3200 = vmatprep.subr.mxu0 %v1162
    %3201 = vmatpush1.msra.mxu0 %v1161
    %3202 = vmatprep.subr.mxu0 %v1171
    %3203 = vmatpush1.msra.mxu0 %v1170
    %3204 = vmatprep.subr.mxu0 %v1180
    %3205 = vmatpush1.msra.mxu0 %v1179
    %3206 = vmatprep.subr.mxu0 %v1189
    %3207 = vmatpush1.msra.mxu0 %v1188
    %3208 = vmatprep.subr.mxu0 %v1198
    %3209 = vmatpush1.msra.mxu0 %v1197
    %3210 = vmatprep.subr.mxu0 %v1207
    %3211 = vmatpush1.msra.mxu0 %v1206
    %3212 = vmatprep.subr.mxu0 %v1216
    %3213 = vmatpush1.msra.mxu0 %v1215
    %3214 = vmatprep.subr.mxu0 %v1225
    %3215 = vmatpush1.msra.mxu0 %v1224
    %3216 = vmatprep.subr.mxu0 %v1234
    %3217 = vmatpush1.msra.mxu0 %v1233
    %3218 = vmatprep.subr.mxu0 %v1243
    %3219 = vmatpush1.msra.mxu0 %v1242
    %3220 = vmatprep.subr.mxu0 %v1252
    %3221 = vmatpush1.msra.mxu0 %v1251
    %3222 = vmatprep.subr.mxu0 %v1261
    %3223 = vmatpush1.msra.mxu0 %v1260
    %3224 = vmatprep.subr.mxu0 %v1270
    %3225 = vmatpush1.msra.mxu0 %v1269
    %3226 = vmatprep.subr.mxu0 %v1279
    %3227 = vmatpush1.msra.mxu0 %v1278
    %3228 = vmatprep.subr.mxu0 %v1288
    %3229 = vmatpush1.msra.mxu0 %v1287
    %3230 = vmatprep.subr.mxu0 %v1297
    %3231 = vmatpush1.msra.mxu0 %v1296
    %3232 = vmatprep.subr.mxu0 0.0
    %3233 = vmatpush1.msra.mxu0 0.0
    %3234 = vmatprep.subr.mxu0 0.0
    %3235 = vmatpush1.msra.mxu0 0.0
    %3236 = vmatprep.subr.mxu0 0.0
    %3237 = vmatpush1.msra.mxu0 0.0
    %3238 = vmatprep.subr.mxu0 0.0
    %3239 = vmatpush1.msra.mxu0 0.0
    %3240 = vmatprep.subr.mxu0 0.0
    %3241 = vmatpush1.msra.mxu0 0.0
    %3242 = vmatprep.subr.mxu0 0.0
    %3243 = vmatpush1.msra.mxu0 0.0
    %3244 = vmatprep.subr.mxu0 0.0
    %3245 = vmatpush1.msra.mxu0 0.0
    %3246 = vmatprep.mubr.f32.mxu0 %v2115
    %3247 = vmatmul.mubr.f32.gmra.mrb[0].mxu0 %v2114
    %v3248 = vpop.f32.mrb[0].mxu0
    %v3249 = vadd.f32 %v3178, %v3248
    %v3250 = vpop.f32.mrb[0].mxu0
    %v3251 = vadd.f32 %v3180, %v3250
    %3252 = vdwg.mxu0
    %3253 = vmatprep.subr.mxu0 0.0
    %3254 = vmatpush1.msra.mxu0 %v218
    %3255 = vmatprep.subr.mxu0 0.0
    %3256 = vmatpush1.msra.mxu0 %v227
    %3257 = vmatprep.subr.mxu0 0.0
    %3258 = vmatpush1.msra.mxu0 %v236
    %3259 = vmatprep.subr.mxu0 0.0
    %3260 = vmatpush1.msra.mxu0 %v245
    %3261 = vmatprep.subr.mxu0 0.0
    %3262 = vmatpush1.msra.mxu0 %v254
    %3263 = vmatprep.subr.mxu0 0.0
    %3264 = vmatpush1.msra.mxu0 %v263
    %3265 = vmatprep.subr.mxu0 0.0
    %3266 = vmatpush1.msra.mxu0 %v272
    %3267 = vmatprep.subr.mxu0 0.0
    %3268 = vmatpush1.msra.mxu0 %v281
    %3269 = vmatprep.subr.mxu0 0.0
    %3270 = vmatpush1.msra.mxu0 %v290
    %3271 = vmatprep.subr.mxu0 0.0
    %3272 = vmatpush1.msra.mxu0 %v299
    %3273 = vmatprep.subr.mxu0 0.0
    %3274 = vmatpush1.msra.mxu0 %v308
    %3275 = vmatprep.subr.mxu0 0.0
    %3276 = vmatpush1.msra.mxu0 %v317
    %3277 = vmatprep.subr.mxu0 0.0
    %3278 = vmatpush1.msra.mxu0 %v326
    %3279 = vmatprep.subr.mxu0 0.0
    %3280 = vmatpush1.msra.mxu0 %v335
    %3281 = vmatprep.subr.mxu0 0.0
    %3282 = vmatpush1.msra.mxu0 %v344
    %3283 = vmatprep.subr.mxu0 0.0
    %3284 = vmatpush1.msra.mxu0 %v353
    %3285 = vmatprep.subr.mxu0 0.0
    %3286 = vmatpush1.msra.mxu0 %v362
    %3287 = vmatprep.subr.mxu0 0.0
    %3288 = vmatpush1.msra.mxu0 %v371
    %3289 = vmatprep.subr.mxu0 0.0
    %3290 = vmatpush1.msra.mxu0 %v380
    %3291 = vmatprep.subr.mxu0 0.0
    %3292 = vmatpush1.msra.mxu0 %v389
    %3293 = vmatprep.subr.mxu0 0.0
    %3294 = vmatpush1.msra.mxu0 %v398
    %3295 = vmatprep.subr.mxu0 0.0
    %3296 = vmatpush1.msra.mxu0 %v407
    %3297 = vmatprep.subr.mxu0 0.0
    %3298 = vmatpush1.msra.mxu0 %v416
    %3299 = vmatprep.subr.mxu0 0.0
    %3300 = vmatpush1.msra.mxu0 %v425
    %3301 = vmatprep.subr.mxu0 0.0
    %3302 = vmatpush1.msra.mxu0 %v434
    %3303 = vmatprep.subr.mxu0 0.0
    %3304 = vmatpush1.msra.mxu0 %v443
    %3305 = vmatprep.subr.mxu0 0.0
    %3306 = vmatpush1.msra.mxu0 %v452
    %3307 = vmatprep.subr.mxu0 0.0
    %3308 = vmatpush1.msra.mxu0 %v461
    %3309 = vmatprep.subr.mxu0 0.0
    %3310 = vmatpush1.msra.mxu0 %v470
    %3311 = vmatprep.subr.mxu0 0.0
    %3312 = vmatpush1.msra.mxu0 %v479
    %3313 = vmatprep.subr.mxu0 0.0
    %3314 = vmatpush1.msra.mxu0 %v488
    %3315 = vmatprep.subr.mxu0 0.0
    %3316 = vmatpush1.msra.mxu0 %v497
    %3317 = vmatprep.mubr.f32.mxu0 %v2101
    %3318 = vmatmul.mubr.f32.gmra.mrb[0].mxu0 %v2100
    %v3319 = vpop.f32.mrb[0].mxu0
    %v3320 = vadd.f32 0.0, %v3319
    %v3321 = vpop.f32.mrb[0].mxu0
    %3322 = vdwg.mxu0
    %3323 = vmatprep.subr.mxu0 0.0
    %3324 = vmatpush1.msra.mxu0 %v506
    %3325 = vmatprep.subr.mxu0 0.0
    %3326 = vmatpush1.msra.mxu0 %v515
    %3327 = vmatprep.subr.mxu0 0.0
    %3328 = vmatpush1.msra.mxu0 %v524
    %3329 = vmatprep.subr.mxu0 0.0
    %3330 = vmatpush1.msra.mxu0 %v533
    %3331 = vmatprep.subr.mxu0 0.0
    %3332 = vmatpush1.msra.mxu0 %v542
    %3333 = vmatprep.subr.mxu0 0.0
    %3334 = vmatpush1.msra.mxu0 %v551
    %3335 = vmatprep.subr.mxu0 0.0
    %3336 = vmatpush1.msra.mxu0 %v560
    %3337 = vmatprep.subr.mxu0 0.0
    %3338 = vmatpush1.msra.mxu0 %v569
    %3339 = vmatprep.subr.mxu0 0.0
    %3340 = vmatpush1.msra.mxu0 %v578
    %3341 = vmatprep.subr.mxu0 0.0
    %3342 = vmatpush1.msra.mxu0 %v587
    %3343 = vmatprep.subr.mxu0 0.0
    %3344 = vmatpush1.msra.mxu0 %v596
    %3345 = vmatprep.subr.mxu0 0.0
    %3346 = vmatpush1.msra.mxu0 %v605
    %3347 = vmatprep.subr.mxu0 0.0
    %3348 = vmatpush1.msra.mxu0 %v614
    %3349 = vmatprep.subr.mxu0 0.0
    %3350 = vmatpush1.msra.mxu0 %v623
    %3351 = vmatprep.subr.mxu0 0.0
    %3352 = vmatpush1.msra.mxu0 %v632
    %3353 = vmatprep.subr.mxu0 0.0
    %3354 = vmatpush1.msra.mxu0 %v641
    %3355 = vmatprep.subr.mxu0 0.0
    %3356 = vmatpush1.msra.mxu0 %v650
    %3357 = vmatprep.subr.mxu0 0.0
    %3358 = vmatpush1.msra.mxu0 %v659
    %3359 = vmatprep.subr.mxu0 0.0
    %3360 = vmatpush1.msra.mxu0 %v668
    %3361 = vmatprep.subr.mxu0 0.0
    %3362 = vmatpush1.msra.mxu0 %v677
    %3363 = vmatprep.subr.mxu0 0.0
    %3364 = vmatpush1.msra.mxu0 %v686
    %3365 = vmatprep.subr.mxu0 0.0
    %3366 = vmatpush1.msra.mxu0 %v695
    %3367 = vmatprep.subr.mxu0 0.0
    %3368 = vmatpush1.msra.mxu0 %v704
    %3369 = vmatprep.subr.mxu0 0.0
    %3370 = vmatpush1.msra.mxu0 %v713
    %3371 = vmatprep.subr.mxu0 0.0
    %3372 = vmatpush1.msra.mxu0 %v722
    %3373 = vmatprep.subr.mxu0 0.0
    %3374 = vmatpush1.msra.mxu0 %v731
    %3375 = vmatprep.subr.mxu0 0.0
    %3376 = vmatpush1.msra.mxu0 %v740
    %3377 = vmatprep.subr.mxu0 0.0
    %3378 = vmatpush1.msra.mxu0 %v749
    %3379 = vmatprep.subr.mxu0 0.0
    %3380 = vmatpush1.msra.mxu0 %v758
    %3381 = vmatprep.subr.mxu0 0.0
    %3382 = vmatpush1.msra.mxu0 %v767
    %3383 = vmatprep.subr.mxu0 0.0
    %3384 = vmatpush1.msra.mxu0 %v776
    %3385 = vmatprep.subr.mxu0 0.0
    %3386 = vmatpush1.msra.mxu0 %v785
    %3387 = vmatprep.mubr.f32.mxu0 %v2106
    %3388 = vmatmul.mubr.f32.gmra.mrb[0].mxu0 %v2104
    %v3389 = vpop.f32.mrb[0].mxu0
    %v3390 = vadd.f32 %v3320, %v3389
    %v3391 = vpop.f32.mrb[0].mxu0
    %3392 = vdwg.mxu0
    %3393 = vmatprep.subr.mxu0 0.0
    %3394 = vmatpush1.msra.mxu0 %v794
    %3395 = vmatprep.subr.mxu0 0.0
    %3396 = vmatpush1.msra.mxu0 %v803
    %3397 = vmatprep.subr.mxu0 0.0
    %3398 = vmatpush1.msra.mxu0 %v812
    %3399 = vmatprep.subr.mxu0 0.0
    %3400 = vmatpush1.msra.mxu0 %v821
    %3401 = vmatprep.subr.mxu0 0.0
    %3402 = vmatpush1.msra.mxu0 %v830
    %3403 = vmatprep.subr.mxu0 0.0
    %3404 = vmatpush1.msra.mxu0 %v839
    %3405 = vmatprep.subr.mxu0 0.0
    %3406 = vmatpush1.msra.mxu0 %v848
    %3407 = vmatprep.subr.mxu0 0.0
    %3408 = vmatpush1.msra.mxu0 %v857
    %3409 = vmatprep.subr.mxu0 0.0
    %3410 = vmatpush1.msra.mxu0 %v866
    %3411 = vmatprep.subr.mxu0 0.0
    %3412 = vmatpush1.msra.mxu0 %v875
    %3413 = vmatprep.subr.mxu0 0.0
    %3414 = vmatpush1.msra.mxu0 %v884
    %3415 = vmatprep.subr.mxu0 0.0
    %3416 = vmatpush1.msra.mxu0 %v893
    %3417 = vmatprep.subr.mxu0 0.0
    %3418 = vmatpush1.msra.mxu0 %v902
    %3419 = vmatprep.subr.mxu0 0.0
    %3420 = vmatpush1.msra.mxu0 %v911
    %3421 = vmatprep.subr.mxu0 0.0
    %3422 = vmatpush1.msra.mxu0 %v920
    %3423 = vmatprep.subr.mxu0 0.0
    %3424 = vmatpush1.msra.mxu0 %v929
    %3425 = vmatprep.subr.mxu0 0.0
    %3426 = vmatpush1.msra.mxu0 %v938
    %3427 = vmatprep.subr.mxu0 0.0
    %3428 = vmatpush1.msra.mxu0 %v947
    %3429 = vmatprep.subr.mxu0 0.0
    %3430 = vmatpush1.msra.mxu0 %v956
    %3431 = vmatprep.subr.mxu0 0.0
    %3432 = vmatpush1.msra.mxu0 %v965
    %3433 = vmatprep.subr.mxu0 0.0
    %3434 = vmatpush1.msra.mxu0 %v974
    %3435 = vmatprep.subr.mxu0 0.0
    %3436 = vmatpush1.msra.mxu0 %v983
    %3437 = vmatprep.subr.mxu0 0.0
    %3438 = vmatpush1.msra.mxu0 %v992
    %3439 = vmatprep.subr.mxu0 0.0
    %3440 = vmatpush1.msra.mxu0 %v1001
    %3441 = vmatprep.subr.mxu0 0.0
    %3442 = vmatpush1.msra.mxu0 %v1010
    %3443 = vmatprep.subr.mxu0 0.0
    %3444 = vmatpush1.msra.mxu0 %v1019
    %3445 = vmatprep.subr.mxu0 0.0
    %3446 = vmatpush1.msra.mxu0 %v1028
    %3447 = vmatprep.subr.mxu0 0.0
    %3448 = vmatpush1.msra.mxu0 %v1037
    %3449 = vmatprep.subr.mxu0 0.0
    %3450 = vmatpush1.msra.mxu0 %v1046
    %3451 = vmatprep.subr.mxu0 0.0
    %3452 = vmatpush1.msra.mxu0 %v1055
    %3453 = vmatprep.subr.mxu0 0.0
    %3454 = vmatpush1.msra.mxu0 %v1064
    %3455 = vmatprep.subr.mxu0 0.0
    %3456 = vmatpush1.msra.mxu0 %v1073
    %3457 = vmatprep.mubr.f32.mxu0 %v2110
    %3458 = vmatmul.mubr.f32.gmra.mrb[0].mxu0 %v2109
    %v3459 = vpop.f32.mrb[0].mxu0
    %v3460 = vadd.f32 %v3390, %v3459
    %v3461 = vpop.f32.mrb[0].mxu0
    %3462 = vdwg.mxu0
    %3463 = vmatprep.subr.mxu0 0.0
    %3464 = vmatpush1.msra.mxu0 %v1082
    %3465 = vmatprep.subr.mxu0 0.0
    %3466 = vmatpush1.msra.mxu0 %v1091
    %3467 = vmatprep.subr.mxu0 0.0
    %3468 = vmatpush1.msra.mxu0 %v1100
    %3469 = vmatprep.subr.mxu0 0.0
    %3470 = vmatpush1.msra.mxu0 %v1109
    %3471 = vmatprep.subr.mxu0 0.0
    %3472 = vmatpush1.msra.mxu0 %v1118
    %3473 = vmatprep.subr.mxu0 0.0
    %3474 = vmatpush1.msra.mxu0 %v1127
    %3475 = vmatprep.subr.mxu0 0.0
    %3476 = vmatpush1.msra.mxu0 %v1136
    %3477 = vmatprep.subr.mxu0 0.0
    %3478 = vmatpush1.msra.mxu0 %v1145
    %3479 = vmatprep.subr.mxu0 0.0
    %3480 = vmatpush1.msra.mxu0 %v1154
    %3481 = vmatprep.subr.mxu0 0.0
    %3482 = vmatpush1.msra.mxu0 %v1163
    %3483 = vmatprep.subr.mxu0 0.0
    %3484 = vmatpush1.msra.mxu0 %v1172
    %3485 = vmatprep.subr.mxu0 0.0
    %3486 = vmatpush1.msra.mxu0 %v1181
    %3487 = vmatprep.subr.mxu0 0.0
    %3488 = vmatpush1.msra.mxu0 %v1190
    %3489 = vmatprep.subr.mxu0 0.0
    %3490 = vmatpush1.msra.mxu0 %v1199
    %3491 = vmatprep.subr.mxu0 0.0
    %3492 = vmatpush1.msra.mxu0 %v1208
    %3493 = vmatprep.subr.mxu0 0.0
    %3494 = vmatpush1.msra.mxu0 %v1217
    %3495 = vmatprep.subr.mxu0 0.0
    %3496 = vmatpush1.msra.mxu0 %v1226
    %3497 = vmatprep.subr.mxu0 0.0
    %3498 = vmatpush1.msra.mxu0 %v1235
    %3499 = vmatprep.subr.mxu0 0.0
    %3500 = vmatpush1.msra.mxu0 %v1244
    %3501 = vmatprep.subr.mxu0 0.0
    %3502 = vmatpush1.msra.mxu0 %v1253
    %3503 = vmatprep.subr.mxu0 0.0
    %3504 = vmatpush1.msra.mxu0 %v1262
    %3505 = vmatprep.subr.mxu0 0.0
    %3506 = vmatpush1.msra.mxu0 %v1271
    %3507 = vmatprep.subr.mxu0 0.0
    %3508 = vmatpush1.msra.mxu0 %v1280
    %3509 = vmatprep.subr.mxu0 0.0
    %3510 = vmatpush1.msra.mxu0 %v1289
    %3511 = vmatprep.subr.mxu0 0.0
    %3512 = vmatpush1.msra.mxu0 %v1298
    %3513 = vmatprep.subr.mxu0 0.0
    %3514 = vmatpush1.msra.mxu0 0.0
    %3515 = vmatprep.subr.mxu0 0.0
    %3516 = vmatpush1.msra.mxu0 0.0
    %3517 = vmatprep.subr.mxu0 0.0
    %3518 = vmatpush1.msra.mxu0 0.0
    %3519 = vmatprep.subr.mxu0 0.0
    %3520 = vmatpush1.msra.mxu0 0.0
    %3521 = vmatprep.subr.mxu0 0.0
    %3522 = vmatpush1.msra.mxu0 0.0
    %3523 = vmatprep.subr.mxu0 0.0
    %3524 = vmatpush1.msra.mxu0 0.0
    %3525 = vmatprep.subr.mxu0 0.0
    %3526 = vmatpush1.msra.mxu0 0.0
    %3527 = vmatprep.mubr.f32.mxu0 %v2115
    %3528 = vmatmul.mubr.f32.gmra.mrb[0].mxu0 %v2114
    %v3529 = vpop.f32.mrb[0].mxu0
    %v3530 = vadd.f32 %v3460, %v3529
    %v3531 = vpop.f32.mrb[0].mxu0
    %3532 = vdwg.mxu0
    %3538 = vrot.lane.b32.xlu0 %v2965, 64
    %v3539 = vpop.permute.xlu0 %3538
    %3540 = vrot.lane.b32.xlu0 %v2967, 64
    %v3541 = vpop.permute.xlu0 %3540
    %3542 = vrot.lane.b32.xlu0 %v3249, 64
    %v3543 = vpop.permute.xlu0 %3542
    %3544 = vrot.lane.b32.xlu0 %v3251, 64
    %v3545 = vpop.permute.xlu0 %3544
    %3546 = vrot.lane.b32.xlu0 %v3530, 64
    %v3547 = vpop.permute.xlu0 %3546
    %v3548 = vsel %vm1341, %v3539, %v3541
    %v3549 = vsel %vm1341, %v3541, %v3543
    %v3550 = vsel %vm1341, %v3543, %v3545
    %v3551 = vsel %vm1341, %v3545, %v3547
    %v3557 = vmax.f32 %v2397, %v3548
    %v3558 = vmax.f32 %v2399, %v3549
    %v3559 = vmax.f32 %v2681, %v3550
    %v3560 = vmax.f32 %v2683, %v3551
    %v3561 = vmax.f32 %v2965, %v3547
    %3565 = vrot.lane.b32.xlu0 %v3559, 96
    %v3566 = vpop.permute.xlu0 %3565
    %3567 = vrot.lane.b32.xlu0 %v3560, 96
    %v3568 = vpop.permute.xlu0 %3567
    %3569 = vrot.lane.b32.xlu0 %v3561, 96
    %v3570 = vpop.permute.xlu0 %3569
    %v3571 = vsel %vm1356, %v3566, %v3568
    %v3572 = vsel %vm1356, %v3568, %v3570
    %v3576 = vmax.f32 %v3557, %v3571
    %v3577 = vmax.f32 %v3558, %v3572
    %v3578 = vmax.f32 %v3559, %v3570
    %v3579 = vld [vmem:[#allocation7] sm:$0x7]
    %v3581 = vlaneseq
    %v3582 = vshrl.u32 %v3581, 7
    %v3583 = vsub.s32 0, %v3582
    %v3584 = vrot.slane %v3579, %v3583
    %v3585 = vlaneseq
    %v3586 = vshrl.u32 %v3585, 7
    %v3587 = vsub.s32 1, %v3586
    %v3588 = vrot.slane %v3579, %v3587
    %v3589 = vlaneseq
    %v3590 = vshrl.u32 %v3589, 7
    %v3591 = vsub.s32 2, %v3590
    %v3592 = vrot.slane %v3579, %v3591
    %v3596 = vadd.f32 %v3576, %v3584
    %v3597 = vadd.f32 %v3577, %v3588
    %v3598 = vadd.f32 %v3578, %v3592
    %v3599 = vmax.f32 %v3596, 0.0
    %v3600 = vmax.f32 %v3597, 0.0
    %v3601 = vmax.f32 %v3598, 0.0
    %v3602 = vld [vmem:[#allocation9] sm:$0xff]
    %v3603 = vld [vmem:[#allocation9 + $0x8] sm:$0xff]
    %v3604 = vld [vmem:[#allocation9 + $0x10] sm:$0xff]
    %v3605 = vld [vmem:[#allocation9 + $0x18] sm:$0xff]
    %v3606 = vld [vmem:[#allocation9 + $0x20] sm:$0xff]
    %v3607 = vld [vmem:[#allocation9 + $0x28] sm:$0xff]
    %v3608 = vld [vmem:[#allocation9 + $0x30] sm:$0xff]
    %v3609 = vld [vmem:[#allocation9 + $0x38] sm:$0xff]
    %v3610 = vld [vmem:[#allocation9 + $0x40] sm:$0xff]
    %v3611 = vld [vmem:[#allocation9 + $0x48] sm:$0xff]
    %v3612 = vld [vmem:[#allocation9 + $0x50] sm:$0xff]
    %v3613 = vld [vmem:[#allocation9 + $0x58] sm:$0xff]
    %v3614 = vld [vmem:[#allocation9 + $0x60] sm:$0xff]
    %v3615 = vld [vmem:[#allocation9 + $0x68] sm:$0xff]
    %v3616 = vld [vmem:[#allocation9 + $0x70] sm:$0xff]
    %v3617 = vld [vmem:[#allocation9 + $0x78] sm:$0xff]
    %v3618 = vld [vmem:[#allocation9 + $0x80] sm:$0xff]
    %v3619 = vld [vmem:[#allocation9 + $0x88] sm:$0xff]
    %v3620 = vld [vmem:[#allocation9 + $0x90] sm:$0xff]
    %v3621 = vld [vmem:[#allocation9 + $0x98] sm:$0xff]
    %v3622 = vld [vmem:[#allocation9 + $0xa0] sm:$0xff]
    %v3623 = vld [vmem:[#allocation9 + $0xa8] sm:$0xff]
    %v3624 = vld [vmem:[#allocation9 + $0xb0] sm:$0xff]
    %v3625 = vld [vmem:[#allocation9 + $0xb8] sm:$0xff]
    %v3626 = vld [vmem:[#allocation9 + $0xc0] sm:$0xff]
    %v3627 = vld [vmem:[#allocation9 + $0xc8] sm:$0xff]
    %v3628 = vld [vmem:[#allocation9 + $0xd0] sm:$0xff]
    %v3629 = vld [vmem:[#allocation9 + $0xd8] sm:$0xff]
    %v3630 = vld [vmem:[#allocation9 + $0xe0] sm:$0xff]
    %v3631 = vld [vmem:[#allocation9 + $0xe8] sm:$0xff]
    %v3632 = vld [vmem:[#allocation9 + $0xf0] sm:$0xff]
    %v3633 = vld [vmem:[#allocation9 + $0xf8] sm:$0xff]
    %v3634 = vld [vmem:[#allocation9 + $0x100] sm:$0xff]
    %v3635 = vld [vmem:[#allocation9 + $0x108] sm:$0xff]
    %v3636 = vld [vmem:[#allocation9 + $0x110] sm:$0xff]
    %v3637 = vld [vmem:[#allocation9 + $0x118] sm:$0xff]
    %v3638 = vld [vmem:[#allocation10] sm:$0x1]
    %v3640 = vlaneseq
    %v3641 = vshrl.u32 %v3640, 7
    %v3642 = vsub.s32 0, %v3641
    %v3643 = vrot.slane %v3638, %v3642
    %v3646 = vsel %vm1319, %v3601, 0
    %3648 = vmatprep.subr.mxu0 0.0
    %3649 = vmatpush1.msra.mxu0 %v3602
    %3650 = vmatprep.subr.mxu0 0.0
    %3651 = vmatpush1.msra.mxu0 %v3603
    %3652 = vmatprep.subr.mxu0 0.0
    %3653 = vmatpush1.msra.mxu0 %v3604
    %3654 = vmatprep.subr.mxu0 0.0
    %3655 = vmatpush1.msra.mxu0 %v3605
    %3656 = vmatprep.subr.mxu0 0.0
    %3657 = vmatpush1.msra.mxu0 %v3606
    %3658 = vmatprep.subr.mxu0 0.0
    %3659 = vmatpush1.msra.mxu0 %v3607
    %3660 = vmatprep.subr.mxu0 0.0
    %3661 = vmatpush1.msra.mxu0 %v3608
    %3662 = vmatprep.subr.mxu0 0.0
    %3663 = vmatpush1.msra.mxu0 %v3609
    %3664 = vmatprep.subr.mxu0 0.0
    %3665 = vmatpush1.msra.mxu0 %v3610
    %3666 = vmatprep.subr.mxu0 0.0
    %3667 = vmatpush1.msra.mxu0 %v3611
    %3668 = vmatprep.subr.mxu0 0.0
    %3669 = vmatpush1.msra.mxu0 %v3612
    %3670 = vmatprep.subr.mxu0 0.0
    %3671 = vmatpush1.msra.mxu0 %v3613
    %3672 = vmatprep.subr.mxu0 0.0
    %3673 = vmatpush1.msra.mxu0 %v3614
    %3674 = vmatprep.subr.mxu0 0.0
    %3675 = vmatpush1.msra.mxu0 %v3615
    %3676 = vmatprep.subr.mxu0 0.0
    %3677 = vmatpush1.msra.mxu0 %v3616
    %3678 = vmatprep.subr.mxu0 0.0
    %3679 = vmatpush1.msra.mxu0 %v3617
    %3680 = vmatprep.subr.mxu0 0.0
    %3681 = vmatpush1.msra.mxu0 %v3618
    %3682 = vmatprep.subr.mxu0 0.0
    %3683 = vmatpush1.msra.mxu0 %v3619
    %3684 = vmatprep.subr.mxu0 0.0
    %3685 = vmatpush1.msra.mxu0 %v3620
    %3686 = vmatprep.subr.mxu0 0.0
    %3687 = vmatpush1.msra.mxu0 %v3621
    %3688 = vmatprep.subr.mxu0 0.0
    %3689 = vmatpush1.msra.mxu0 %v3622
    %3690 = vmatprep.subr.mxu0 0.0
    %3691 = vmatpush1.msra.mxu0 %v3623
    %3692 = vmatprep.subr.mxu0 0.0
    %3693 = vmatpush1.msra.mxu0 %v3624
    %3694 = vmatprep.subr.mxu0 0.0
    %3695 = vmatpush1.msra.mxu0 %v3625
    %3696 = vmatprep.subr.mxu0 0.0
    %3697 = vmatpush1.msra.mxu0 %v3626
    %3698 = vmatprep.subr.mxu0 0.0
    %3699 = vmatpush1.msra.mxu0 %v3627
    %3700 = vmatprep.subr.mxu0 0.0
    %3701 = vmatpush1.msra.mxu0 %v3628
    %3702 = vmatprep.subr.mxu0 0.0
    %3703 = vmatpush1.msra.mxu0 %v3629
    %3704 = vmatprep.subr.mxu0 0.0
    %3705 = vmatpush1.msra.mxu0 %v3630
    %3706 = vmatprep.subr.mxu0 0.0
    %3707 = vmatpush1.msra.mxu0 %v3631
    %3708 = vmatprep.subr.mxu0 0.0
    %3709 = vmatpush1.msra.mxu0 %v3632
    %3710 = vmatprep.subr.mxu0 0.0
    %3711 = vmatpush1.msra.mxu0 %v3633
    %3712 = vmatprep.mubr.f32.mxu0 %v3600
    %3713 = vmatmul.mubr.f32.gmra.mrb[0].mxu0 %v3599
    %v3714 = vpop.f32.mrb[0].mxu0
    %v3715 = vadd.f32 %v3643, %v3714
    %v3716 = vpop.f32.mrb[0].mxu0
    %3717 = vdwg.mxu0
    %3718 = vmatprep.subr.mxu0 0.0
    %3719 = vmatpush1.msra.mxu0 %v3634
    %3720 = vmatprep.subr.mxu0 0.0
    %3721 = vmatpush1.msra.mxu0 %v3635
    %3722 = vmatprep.subr.mxu0 0.0
    %3723 = vmatpush1.msra.mxu0 %v3636
    %3724 = vmatprep.subr.mxu0 0.0
    %3725 = vmatpush1.msra.mxu0 %v3637
    %3726 = vmatprep.subr.mxu0 0.0
    %3727 = vmatpush1.msra.mxu0 0.0
    %3728 = vmatprep.subr.mxu0 0.0
    %3729 = vmatpush1.msra.mxu0 0.0
    %3730 = vmatprep.subr.mxu0 0.0
    %3731 = vmatpush1.msra.mxu0 0.0
    %3732 = vmatprep.subr.mxu0 0.0
    %3733 = vmatpush1.msra.mxu0 0.0
    %3734 = vmatprep.subr.mxu0 0.0
    %3735 = vmatpush1.msra.mxu0 0.0
    %3736 = vmatprep.subr.mxu0 0.0
    %3737 = vmatpush1.msra.mxu0 0.0
    %3738 = vmatprep.subr.mxu0 0.0
    %3739 = vmatpush1.msra.mxu0 0.0
    %3740 = vmatprep.subr.mxu0 0.0
    %3741 = vmatpush1.msra.mxu0 0.0
    %3742 = vmatprep.subr.mxu0 0.0
    %3743 = vmatpush1.msra.mxu0 0.0
    %3744 = vmatprep.subr.mxu0 0.0
    %3745 = vmatpush1.msra.mxu0 0.0
    %3746 = vmatprep.subr.mxu0 0.0
    %3747 = vmatpush1.msra.mxu0 0.0
    %3748 = vmatprep.subr.mxu0 0.0
    %3749 = vmatpush1.msra.mxu0 0.0
    %3750 = vmatprep.subr.mxu0 0.0
    %3751 = vmatpush1.msra.mxu0 0.0
    %3752 = vmatprep.subr.mxu0 0.0
    %3753 = vmatpush1.msra.mxu0 0.0
    %3754 = vmatprep.subr.mxu0 0.0
    %3755 = vmatpush1.msra.mxu0 0.0
    %3756 = vmatprep.subr.mxu0 0.0
    %3757 = vmatpush1.msra.mxu0 0.0
    %3758 = vmatprep.subr.mxu0 0.0
    %3759 = vmatpush1.msra.mxu0 0.0
    %3760 = vmatprep.subr.mxu0 0.0
    %3761 = vmatpush1.msra.mxu0 0.0
    %3762 = vmatprep.subr.mxu0 0.0
    %3763 = vmatpush1.msra.mxu0 0.0
    %3764 = vmatprep.subr.mxu0 0.0
    %3765 = vmatpush1.msra.mxu0 0.0
    %3766 = vmatprep.subr.mxu0 0.0
    %3767 = vmatpush1.msra.mxu0 0.0
    %3768 = vmatprep.subr.mxu0 0.0
    %3769 = vmatpush1.msra.mxu0 0.0
    %3770 = vmatprep.subr.mxu0 0.0
    %3771 = vmatpush1.msra.mxu0 0.0
    %3772 = vmatprep.subr.mxu0 0.0
    %3773 = vmatpush1.msra.mxu0 0.0
    %3774 = vmatprep.subr.mxu0 0.0
    %3775 = vmatpush1.msra.mxu0 0.0
    %3776 = vmatprep.subr.mxu0 0.0
    %3777 = vmatpush1.msra.mxu0 0.0
    %3778 = vmatprep.subr.mxu0 0.0
    %3779 = vmatpush1.msra.mxu0 0.0
    %3780 = vmatprep.subr.mxu0 0.0
    %3781 = vmatpush1.msra.mxu0 0.0
    %3782 = vmatprep.mubr.f32.mxu0 0.0
    %3783 = vmatmul.mubr.f32.gmra.mrb[0].mxu0 %v3646
    %v3784 = vpop.f32.mrb[0].mxu0
    %v3785 = vadd.f32 %v3715, %v3784
    %v3786 = vpop.f32.mrb[0].mxu0
    %3787 = vdwg.mxu0
    %v3788 = vmax.f32 %v3785, 0.0
    %v3789 = vld [vmem:[%s7] sm:$0xff]
    %v3790 = vld [vmem:[%s7 + $0x8] sm:$0xff]
    %v3791 = vld [vmem:[%s7 + $0x10] sm:$0xff]
    %v3792 = vld [vmem:[%s7 + $0x18] sm:$0xff]
    %v3793 = vld [vmem:[%s7 + $0x20] sm:$0xff]
    %v3794 = vld [vmem:[%s7 + $0x28] sm:$0xff]
    %v3795 = vld [vmem:[%s7 + $0x30] sm:$0xff]
    %v3796 = vld [vmem:[%s7 + $0x38] sm:$0xff]
    %v3797 = vld [vmem:[%s7 + $0x40] sm:$0xff]
    %v3798 = vld [vmem:[%s7 + $0x48] sm:$0xff]
    %v3799 = vld [vmem:[%s7 + $0x50] sm:$0xff]
    %v3800 = vld [vmem:[%s7 + $0x58] sm:$0xff]
    %v3801 = vld [vmem:[%s7 + $0x60] sm:$0xff]
    %v3802 = vld [vmem:[%s7 + $0x68] sm:$0xff]
    %v3803 = vld [vmem:[%s7 + $0x70] sm:$0xff]
    %v3804 = vld [vmem:[%s7 + $0x78] sm:$0xff]
    %v3805 = vld [vmem:[#allocation12] sm:$0x1]
    %v3807 = vlaneseq
    %v3808 = vshrl.u32 %v3807, 7
    %v3809 = vsub.s32 0, %v3808
    %v3810 = vrot.slane %v3805, %v3809
    %3812 = vmatprep.subr.mxu0 0.0
    %3813 = vmatpush1.msra.mxu0 %v3789
    %3814 = vmatprep.subr.mxu0 0.0
    %3815 = vmatpush1.msra.mxu0 %v3790
    %3816 = vmatprep.subr.mxu0 0.0
    %3817 = vmatpush1.msra.mxu0 %v3791
    %3818 = vmatprep.subr.mxu0 0.0
    %3819 = vmatpush1.msra.mxu0 %v3792
    %3820 = vmatprep.subr.mxu0 0.0
    %3821 = vmatpush1.msra.mxu0 %v3793
    %3822 = vmatprep.subr.mxu0 0.0
    %3823 = vmatpush1.msra.mxu0 %v3794
    %3824 = vmatprep.subr.mxu0 0.0
    %3825 = vmatpush1.msra.mxu0 %v3795
    %3826 = vmatprep.subr.mxu0 0.0
    %3827 = vmatpush1.msra.mxu0 %v3796
    %3828 = vmatprep.subr.mxu0 0.0
    %3829 = vmatpush1.msra.mxu0 %v3797
    %3830 = vmatprep.subr.mxu0 0.0
    %3831 = vmatpush1.msra.mxu0 %v3798
    %3832 = vmatprep.subr.mxu0 0.0
    %3833 = vmatpush1.msra.mxu0 %v3799
    %3834 = vmatprep.subr.mxu0 0.0
    %3835 = vmatpush1.msra.mxu0 %v3800
    %3836 = vmatprep.subr.mxu0 0.0
    %3837 = vmatpush1.msra.mxu0 %v3801
    %3838 = vmatprep.subr.mxu0 0.0
    %3839 = vmatpush1.msra.mxu0 %v3802
    %3840 = vmatprep.subr.mxu0 0.0
    %3841 = vmatpush1.msra.mxu0 %v3803
    %3842 = vmatprep.subr.mxu0 0.0
    %3843 = vmatpush1.msra.mxu0 %v3804
    %3844 = vmatprep.subr.mxu0 0.0
    %3845 = vmatpush1.msra.mxu0 0.0
    %3846 = vmatprep.subr.mxu0 0.0
    %3847 = vmatpush1.msra.mxu0 0.0
    %3848 = vmatprep.subr.mxu0 0.0
    %3849 = vmatpush1.msra.mxu0 0.0
    %3850 = vmatprep.subr.mxu0 0.0
    %3851 = vmatpush1.msra.mxu0 0.0
    %3852 = vmatprep.subr.mxu0 0.0
    %3853 = vmatpush1.msra.mxu0 0.0
    %3854 = vmatprep.subr.mxu0 0.0
    %3855 = vmatpush1.msra.mxu0 0.0
    %3856 = vmatprep.subr.mxu0 0.0
    %3857 = vmatpush1.msra.mxu0 0.0
    %3858 = vmatprep.subr.mxu0 0.0
    %3859 = vmatpush1.msra.mxu0 0.0
    %3860 = vmatprep.subr.mxu0 0.0
    %3861 = vmatpush1.msra.mxu0 0.0
    %3862 = vmatprep.subr.mxu0 0.0
    %3863 = vmatpush1.msra.mxu0 0.0
    %3864 = vmatprep.subr.mxu0 0.0
    %3865 = vmatpush1.msra.mxu0 0.0
    %3866 = vmatprep.subr.mxu0 0.0
    %3867 = vmatpush1.msra.mxu0 0.0
    %3868 = vmatprep.subr.mxu0 0.0
    %3869 = vmatpush1.msra.mxu0 0.0
    %3870 = vmatprep.subr.mxu0 0.0
    %3871 = vmatpush1.msra.mxu0 0.0
    %3872 = vmatprep.subr.mxu0 0.0
    %3873 = vmatpush1.msra.mxu0 0.0
    %3874 = vmatprep.subr.mxu0 0.0
    %3875 = vmatpush1.msra.mxu0 0.0
    %3876 = vmatprep.mubr.f32.mxu0 0.0
    %3877 = vmatmul.mubr.f32.gmra.mrb[0].mxu0 %v3788
    %v3878 = vpop.f32.mrb[0].mxu0
    %v3879 = vadd.f32 %v3810, %v3878
    %v3880 = vpop.f32.mrb[0].mxu0
    %3881 = vdwg.mxu0
    %v3882 = vmax.f32 %v3879, 0.0
    %vm3883 = vcmask 80896
    %v3884 = vsel %vm3883, %v3882, -inf
    %3885 = vmax.xlane.f32.xlu0 %v3884
    %v3886 = vpop.xlane.xlu0 %3885
    %v3887 = vsub.f32 %v3882, %v3886
    %v3888 = vmul.f32 %v3887, 1.442695
    %v3889 = vpow.pop %v3888
    %v3890 = vsel %vm3883, %v3889, 0.0
    %3891 = vadd.xlane.f32.xlu0 %v3890
    %v3892 = vpop.xlane.xlu0 %3891
    %v3893 = vlog2.pop %v3892
    %v3894 = vmul.f32 %v3893, 0.6931472
    %v3895 = vsub.f32 %v3887, %v3894
    %3896 = vst.msk [vmem:[%s9] sm:$0xff] %vm3883, %v3895
    // Predicated region
    $region66: #{cnn_net_forward.1} parent=1 // pred_check
      _
    $region67: #{cnn_net_forward.1} parent=1 // pred_check_branch
      %3898 = sbr.rel (0) target = $region69
    $region68: #{cnn_net_forward.1} parent=1 // pred_region
      _
    $region69: #{cnn_net_forward.1} parent=1 // pred_fallthru
      _
    // Predicated region
    $region70: #{cnn_net_forward.1} parent=1 // pred_check
      _
    $region71: #{cnn_net_forward.1} parent=1 // pred_check_branch
      %3900 = sbr.rel (0) target = $region73
    $region72: #{cnn_net_forward.1} parent=1 // pred_region
      _
    $region73: #{cnn_net_forward.1} parent=1 // pred_fallthru
      _
    %3901 = vsyncpa [#allocation3], 1
    %3902 = vsyncpa [#allocation5], 1
    %3903 = vsyncpa [#allocation8], 1
    %3904 = vsyncpa [#allocation11], 1

</llo_original>
